<compile_context>
chip_gen: v5e
topology: v5e:2x2
jax: 0.10.0
libtpu: 0.0.40
codegen_flags: <defaults>
</compile_context>

<pallas_src>
import math
import functools

import jax
import jax.numpy as jnp
from jax import lax
from jax.experimental import pallas as pl
from jax.experimental.pallas import tpu as pltpu

# Matmul operand dtype for the transformer blocks (weights stored in this dtype
# at the call boundary; accumulation is always f32).  Set to jnp.float32 for
# bit-faithful reference numerics.
COMPUTE_DTYPE = jnp.bfloat16

_PAD_WW = 1.0e30          # ||w||^2 sentinel for padded vocab rows (huge finite distance)


# ----------------------------- small helpers ---------------------------------

def _round_up(a, m):
    return (a + m - 1) // m * m


def _vmem_limit_bytes():
    """Generation-aware scoped-VMEM limit (review: don't hardcode 48 MiB)."""
    try:
        info = pltpu.get_tpu_info()
        cap = getattr(info, "vmem_capacity_bytes", None)
        if cap and cap >= 32 * 1024 * 1024:
            # ~100 MiB on 128-MiB parts (v5e/v6e), ~56 MiB on v7x (64 MiB physical).
            return int(min(cap - 8 * 1024 * 1024, 100 * 1024 * 1024))
    except Exception:
        pass
    return 48 * 1024 * 1024


def _fillnan(x, v=0.0):
    # torch.nan_to_num(x, nan=v, posinf=v, neginf=v) -- fused single select.
    return jnp.where(jnp.isfinite(x), x, jnp.asarray(v, x.dtype))


def _layernorm(x, w, b):
    mu = jnp.mean(x, axis=-1, keepdims=True)
    xc = x - mu
    var = jnp.mean(xc * xc, axis=-1, keepdims=True)
    return xc * lax.rsqrt(var + 1e-5) * w + b


def _new_gelu(x):
    c = math.sqrt(2.0 / math.pi)
    return 0.5 * x * (1.0 + jnp.tanh(c * (x + 0.044715 * x * x * x)))


def _pow_int(x, n):
    """x ** n for a python int n >= 0, exact repeated squaring (integer-pow semantics)."""
    result = None
    base = x
    m = int(n)
    while m:
        if m & 1:
            result = base if result is None else result * base
        m >>= 1
        if m:
            base = base * base
    if result is None:
        return jnp.ones_like(x)
    return result


def _pow_int_neg(x, n):
    """x ** (-n) for a python int n >= 1."""
    return 1.0 / _pow_int(x, n)


def _mm(a, w):
    """MXU matmul: activation cast to the weight dtype, f32 accumulation."""
    return jnp.dot(a.astype(w.dtype), w, preferred_element_type=jnp.float32)


# ----------------------------- transformer block kernels ---------------------

def attn_kernel(x_ref, ln1w, ln1b, wqkv, bqkv, wap, bap, o_ref, *, T, C, nh, scale):
    """ln_1 + causal self-attention + output proj + residual on a (TB,T,C) tile."""
    TB = x_ref.shape[0]
    hd = C // nh
    R = TB * T
    x = x_ref[...].reshape(R, C)

    xn = _layernorm(x, ln1w[...], ln1b[...])
    qkv = _mm(xn, wqkv[...]) + bqkv[...]                    # (R, 3C), f32 accumulation
    q = qkv[:, 0:C] * jnp.float32(scale)                    # attention scale folded into q
    k = qkv[:, C:2 * C]
    v = qkv[:, 2 * C:3 * C]

    row = lax.broadcasted_iota(jnp.int32, (T, T), 0)
    col = lax.broadcasted_iota(jnp.int32, (T, T), 1)
    causal = (col <= row)[None, :, :]                       # (1, T, T)

    # TODO(synk): batch all heads in one einsum ((TB,T,nh,hd)->(TB,nh,T,hd)
    # relayout) + flash-style KV tiling so no full (T,T) score matrix is live
    # on v7x; per-head loop kept here for Mosaic lowering robustness.
    heads = []
    for h in range(nh):                                     # compile-time loop over heads
        c0 = h * hd
        qh = q[:, c0:c0 + hd].reshape(TB, T, hd).astype(COMPUTE_DTYPE)
        kh = k[:, c0:c0 + hd].reshape(TB, T, hd).astype(COMPUTE_DTYPE)
        vh = v[:, c0:c0 + hd].reshape(TB, T, hd).astype(COMPUTE_DTYPE)
        att = jnp.einsum('bqd,bkd->bqk', qh, kh,
                         preferred_element_type=jnp.float32)     # (TB, T, T)
        att = jnp.where(causal, att, -jnp.inf)
        m = jnp.max(att, axis=-1, keepdims=True)
        e = jnp.exp(att - m)
        p = e / jnp.sum(e, axis=-1, keepdims=True)               # exact softmax
        yh = jnp.einsum('bqk,bkd->bqd', p.astype(COMPUTE_DTYPE), vh,
                        preferred_element_type=jnp.float32)
        heads.append(yh.reshape(R, hd))
    y = jnp.concatenate(heads, axis=-1)                     # (R, C)

    y = _mm(y, wap[...]) + bap[...]
    # Only the Block-level nan_to_num is kept (inner ones are no-ops for finite inputs).
    o_ref[...] = _fillnan(x + y).reshape(TB, T, C)


def mlp_kernel(x_ref, ln2w, ln2b, wfc, bfc, wmp, bmp, o_ref, *, n_chunks):
    """ln_2 + MLP + residual, hidden (4C) axis chunked to bound live VMEM."""
    TB, T, C = x_ref.shape
    R = TB * T
    x = x_ref[...].reshape(R, C)
    xn = _layernorm(x, ln2w[...], ln2b[...])

    H = wfc.shape[1]
    cw = H // n_chunks
    acc = jnp.zeros((R, C), jnp.float32)
    for c in range(n_chunks):                               # compile-time hidden chunks
        c0 = c * cw
        h = _mm(xn, wfc[:, c0:c0 + cw]) + bfc[:, c0:c0 + cw]
        h = _new_gelu(h)
        acc = acc + _mm(h, wmp[c0:c0 + cw, :])
    y = acc + bmp[...]
    o_ref[...] = _fillnan(x + y).reshape(TB, T, C)


# ----------------------------- DistLayer head kernels ------------------------

def _dist_tile(xn, xx, w, ww, n_embd):
    """One (TR, TV) tile of the squared-distance matrix (reference fillnan order)."""
    wx = lax.dot_general(xn, w, (((1,), (1,)), ((), ())),
                         preferred_element_type=jnp.float32)      # xn @ w^T  (TR, TV)
    wx = _fillnan(wx, 0.0)
    d = _fillnan(ww + xx - 2.0 * wx, 768.0)
    d = _fillnan(d / jnp.float32(n_embd), 1.0)
    return d


def dist_stats_kernel(x_ref, lnfw, lnfb, w_ref, ww_ref, dmin_ref, dsum_ref,
                      xn_s, xx_s, *, n_embd):
    """Pass 1: running row-min of d and running sum of (d/min)^(-n) (online rescale)."""
    v = pl.program_id(1)
    first = v == 0

    @pl.when(first)
    def _():
        xn = _layernorm(x_ref[...], lnfw[...], lnfb[...])
        xn_s[...] = xn
        xx_s[...] = _fillnan(jnp.sum(xn * xn, axis=-1, keepdims=True), 1.0)

    d = _dist_tile(xn_s[...], xx_s[...], w_ref[...], ww_ref[...], n_embd)
    tile_min = jnp.min(d, axis=-1, keepdims=True)

    m_old = jnp.where(first, tile_min, dmin_ref[...])
    m_new = jnp.minimum(m_old, tile_min)
    # online rescale: previously accumulated (d/m_old)^-n terms become (d/m_new)^-n.
    s_old = jnp.where(first, 0.0, dsum_ref[...] * _pow_int(m_new / m_old, n_embd))
    p = _fillnan(_pow_int_neg(_fillnan(d / m_new, 1.0), n_embd), 1.0)
    dsum_ref[...] = s_old + jnp.sum(p, axis=-1, keepdims=True)
    dmin_ref[...] = m_new


def logits_kernel(x_ref, lnfw, lnfb, w_ref, ww_ref, dmin_ref, dsum_ref, tgt_ref,
                  out_ref, lsem_ref, lsee_ref, amax_ref, aidx_ref, pick_ref,
                  xn_s, xx_s, *, n_embd, V, TV, alpha_term):
    """Pass 2: logits + fused cross-entropy reductions (online lse, argmax, gather)."""
    v = pl.program_id(1)
    first = v == 0

    @pl.when(first)
    def _():
        xn = _layernorm(x_ref[...], lnfw[...], lnfb[...])
        xn_s[...] = xn
        xx_s[...] = _fillnan(jnp.sum(xn * xn, axis=-1, keepdims=True), 1.0)

    d = _dist_tile(xn_s[...], xx_s[...], w_ref[...], ww_ref[...], n_embd)
    p = _fillnan(_pow_int_neg(_fillnan(d / dmin_ref[...], 1.0), n_embd), 1.0)
    prob = _fillnan(p / dsum_ref[...], 0.0) + jnp.float32(alpha_term)
    logits = _fillnan(jnp.log(prob), 0.0)
    out_ref[...] = logits

    TR = logits.shape[0]
    cols = v * TV + lax.broadcasted_iota(jnp.int32, (TR, TV), 1)
    col_ok = cols < V
    lmask = jnp.where(col_ok, logits, -jnp.inf)             # exclude vocab padding

    # running logsumexp
    tile_max = jnp.max(lmask, axis=-1, keepdims=True)
    m_old = jnp.where(first, tile_max, lsem_ref[...])
    m_new = jnp.maximum(m_old, tile_max)
    e_old = jnp.where(first, 0.0, lsee_ref[...] * jnp.exp(m_old - m_new))
    lsee_ref[...] = e_old + jnp.sum(jnp.exp(lmask - m_new), axis=-1, keepdims=True)
    lsem_ref[...] = m_new

    # running argmax (first maximal index, like torch.argmax)
    colsf = cols.astype(jnp.float32)
    tile_arg = jnp.min(jnp.where(lmask >= tile_max, colsf, jnp.float32(3.0e38)),
                       axis=-1, keepdims=True)
    a_old = jnp.where(first, -jnp.inf, amax_ref[...])
    i_old = jnp.where(first, 0.0, aidx_ref[...])
    take = tile_max > a_old
    amax_ref[...] = jnp.where(take, tile_max, a_old)
    aidx_ref[...] = jnp.where(take, tile_arg, i_old)

    # target-logit gather (ignore_index=-1 never matches any column)
    hit = cols == tgt_ref[...]
    tile_pick = jnp.sum(jnp.where(hit, logits, 0.0), axis=-1, keepdims=True)
    pick_ref[...] = jnp.where(first, tile_pick, pick_ref[...] + tile_pick)


# ----------------------------- tiling helpers ---------------------------------

def _pick_batch_tile(B, T, target_rows=512):
    tb = max(1, min(B, max(1, target_rows // max(T, 1))))
    while B % tb:
        tb -= 1
    if B > 1 and tb == B:          # keep >=2 grid steps (pipelining / megacore)
        tb = max(1, B // 2)
        while B % tb:
            tb -= 1
    return max(1, tb)


def _pick_hidden_chunks(H):
    """Number of ~1024-wide, lane-aligned chunks of the MLP hidden axis."""
    for n in range(max(1, H // 1024), 0, -1):
        if H % n == 0 and (H // n) % 128 == 0:
            return n
    return 1


# ----------------------------- model -----------------------------------------

def init_params(key, cfg):
    V, C, L, BS = cfg['vocab_size'], cfg['n_embd'], cfg['n_layer'], cfg['block_size']
    scale = 1.0 / math.sqrt(C) / 0.0357 * 0.02
    proj_scale = scale / math.sqrt(2 * L)
    keys = jax.random.split(key, 2 + 4 * L)

    wte = scale * jax.random.normal(keys[0], (V, C), jnp.float32)   # tied lm_head (f32 for head)
    wpe = scale * jax.random.normal(keys[1], (BS, C), jnp.float32)

    blocks = []
    ki = 2
    for _ in range(L):
        blocks.append(dict(
            ln1_w=jnp.ones((1, C), jnp.float32), ln1_b=jnp.zeros((1, C), jnp.float32),
            # nn.Linear weights stored pre-transposed (in_features, out_features), bf16.
            w_attn=(scale * jax.random.normal(keys[ki], (C, 3 * C))).astype(COMPUTE_DTYPE),
            b_attn=jnp.zeros((1, 3 * C), jnp.float32),
            w_aproj=(proj_scale * jax.random.normal(keys[ki + 1], (C, C))).astype(COMPUTE_DTYPE),
            b_aproj=jnp.zeros((1, C), jnp.float32),
            ln2_w=jnp.ones((1, C), jnp.float32), ln2_b=jnp.zeros((1, C), jnp.float32),
            w_fc=(scale * jax.random.normal(keys[ki + 2], (C, 4 * C))).astype(COMPUTE_DTYPE),
            b_fc=jnp.zeros((1, 4 * C), jnp.float32),
            w_mproj=(proj_scale * jax.random.normal(keys[ki + 3], (4 * C, C))).astype(COMPUTE_DTYPE),
            b_mproj=jnp.zeros((1, C), jnp.float32),
        ))
        ki += 4

    return dict(wte=wte, wpe=wpe, blocks=blocks,
                lnf_w=jnp.ones((1, C), jnp.float32),
                lnf_b=jnp.zeros((1, C), jnp.float32))


def gpt_forward(params, idx, targets, cfg):
    B, T = idx.shape
    C, nh, V = cfg['n_embd'], cfg['n_head'], cfg['vocab_size']
    assert T <= cfg['block_size']
    hd = C // nh
    BT = B * T
    VMEM_LIMIT = _vmem_limit_bytes()

    # ---- embeddings (glue; dropout p=0 identity) ----
    tok = jnp.take(params['wte'], idx, axis=0)                # (B, T, C)
    pos = params['wpe'][:T][None, :, :]
    x = tok + pos

    # ---- transformer blocks: attention kernel + MLP kernel per layer ----
    TB = _pick_batch_tile(B, T)
    nb = B // TB
    xspec = pl.BlockSpec((TB, T, C), lambda i: (i, 0, 0))

    def wspec(shape):
        # Resident weights: constant index_map -> DMA'd once, kept in VMEM across
        # the grid.  TODO(synk): pipeline_mode=pl.Buffered(1) to drop the unused
        # second buffer once single-buffered operands are reliably supported.
        return pl.BlockSpec(shape, lambda i: (0, 0))

    block_cparams = pltpu.CompilerParams(
        dimension_semantics=("parallel",), vmem_limit_bytes=VMEM_LIMIT)
    n_mlp_chunks = _pick_hidden_chunks(4 * C)

    for l, blk in enumerate(params['blocks']):
        scale = 1.0 / math.sqrt(hd)
        if cfg['scale_attn_by_inverse_layer_idx']:
            scale = scale / float(l + 1)

        x = pl.pallas_call(
            functools.partial(attn_kernel, T=T, C=C, nh=nh, scale=scale),
            grid=(nb,),
            out_shape=jax.ShapeDtypeStruct((B, T, C), jnp.float32),
            in_specs=[xspec,
                      wspec((1, C)), wspec((1, C)),
                      wspec((C, 3 * C)), wspec((1, 3 * C)),
                      wspec((C, C)), wspec((1, C))],
            out_specs=xspec,
            input_output_aliases={0: 0},                      # residual slab in place
            compiler_params=block_cparams,
        )(x, blk['ln1_w'], blk['ln1_b'], blk['w_attn'], blk['b_attn'],
          blk['w_aproj'], blk['b_aproj'])

        x = pl.pallas_call(
            functools.partial(mlp_kernel, n_chunks=n_mlp_chunks),
            grid=(nb,),
            out_shape=jax.ShapeDtypeStruct((B, T, C), jnp.float32),
            in_specs=[xspec,
                      wspec((1, C)), wspec((1, C)),
                      wspec((C, 4 * C)), wspec((1, 4 * C)),
                      wspec((4 * C, C)), wspec((1, C))],
            out_specs=xspec,
            input_output_aliases={0: 0},
            compiler_params=block_cparams,
        )(x, blk['ln2_w'], blk['ln2_b'], blk['w_fc'], blk['b_fc'],
          blk['w_mproj'], blk['b_mproj'])

    # ---- ln_f + DistLayer head + fused CE reductions (rows x vocab tiled) ----
    xf = x.reshape(BT, C)
    wte = params['wte']                                       # (V, C) f32 (tied head weight)

    TR = min(256, _round_up(BT, 8))
    Rpad = _round_up(BT, TR)
    TV = min(1024, _round_up(V, 128))
    Vpad = _round_up(V, TV)
    Rt, Vt = Rpad // TR, Vpad // TV

    if Rpad != BT:
        xf = jnp.pad(xf, ((0, Rpad - BT), (0, 0)))
    t_flat = targets.reshape(-1).astype(jnp.int32)
    t_pad = t_flat if Rpad == BT else jnp.pad(t_flat, (0, Rpad - BT), constant_values=-1)
    t_pad = t_pad.reshape(Rpad, 1)

    ww = _fillnan(jnp.sum(wte * wte, axis=-1), 1.0)           # ||w||^2, once per forward
    if Vpad != V:
        wte_p = jnp.pad(wte, ((0, Vpad - V), (0, 0)))
        ww_p = jnp.pad(ww, (0, Vpad - V), constant_values=_PAD_WW)
    else:
        wte_p, ww_p = wte, ww
    ww_p = ww_p.reshape(1, Vpad)

    head_cparams = pltpu.CompilerParams(
        dimension_semantics=("parallel", "arbitrary"), vmem_limit_bytes=VMEM_LIMIT)

    row_spec = pl.BlockSpec((TR, C), lambda r, v: (r, 0))
    vec_spec = pl.BlockSpec((TR, 1), lambda r, v: (r, 0))
    ln_spec = pl.BlockSpec((1, C), lambda r, v: (0, 0))
    w_spec = pl.BlockSpec((TV, C), lambda r, v: (v, 0))
    ww_spec = pl.BlockSpec((1, TV), lambda r, v: (0, v))

    dmin, dsum = pl.pallas_call(
        functools.partial(dist_stats_kernel, n_embd=C),
        grid=(Rt, Vt),
        out_shape=(jax.ShapeDtypeStruct((Rpad, 1), jnp.float32),
                   jax.ShapeDtypeStruct((Rpad, 1), jnp.float32)),
        in_specs=[row_spec, ln_spec, ln_spec, w_spec, ww_spec],
        out_specs=(vec_spec, vec_spec),
        scratch_shapes=[pltpu.VMEM((TR, C), jnp.float32),
                        pltpu.VMEM((TR, 1), jnp.float32)],
        compiler_params=head_cparams,
    )(xf, params['lnf_w'], params['lnf_b'], wte_p, ww_p)

    # alpha/50304 and log(50304) below are hard-coded in the reference (independent
    # of cfg['vocab_size']), so they are kept as-is for faithfulness.
    logits_p, lse_m, lse_e, _amax, aidx, pick = pl.pallas_call(
        functools.partial(logits_kernel, n_embd=C, V=V, TV=TV,
                          alpha_term=0.01 / 50304.0),
        grid=(Rt, Vt),
        out_shape=(jax.ShapeDtypeStruct((Rpad, Vpad), jnp.float32),
                   jax.ShapeDtypeStruct((Rpad, 1), jnp.float32),
                   jax.ShapeDtypeStruct((Rpad, 1), jnp.float32),
                   jax.ShapeDtypeStruct((Rpad, 1), jnp.float32),
                   jax.ShapeDtypeStruct((Rpad, 1), jnp.float32),
                   jax.ShapeDtypeStruct((Rpad, 1), jnp.float32)),
        in_specs=[row_spec, ln_spec, ln_spec, w_spec, ww_spec,
                  vec_spec, vec_spec, vec_spec],
        out_specs=(pl.BlockSpec((TR, TV), lambda r, v: (r, v)),
                   vec_spec, vec_spec, vec_spec, vec_spec, vec_spec),
        scratch_shapes=[pltpu.VMEM((TR, C), jnp.float32),
                        pltpu.VMEM((TR, 1), jnp.float32)],
        compiler_params=head_cparams,
    )(xf, params['lnf_w'], params['lnf_b'], wte_p, ww_p, dmin, dsum, t_pad)

    # ---- tiny scalar glue: mean loss / accuracy from the fused reductions ----
    lse = lse_m[:BT, 0] + jnp.log(lse_e[:BT, 0])
    picked = pick[:BT, 0]
    pred = aidx[:BT, 0].astype(jnp.int32)
    valid = t_flat != -1
    loss_per = jnp.where(valid, lse - picked, 0.0)            # ignore_index=-1 -> 0
    loss_per = _fillnan(loss_per, math.log(50304.0))
    loss = jnp.mean(loss_per)
    acc = jnp.mean((pred == t_flat).astype(jnp.float32))
    logits = logits_p[:BT, :V]
    return logits, loss, acc


# ----------------------------- main -------------------------------------------

if __name__ == "__main__":
    cfg = dict(block_size=16, vocab_size=512, n_layer=2, n_head=4, n_embd=32,
               dropout=0.0, bias=True, scale_attn_by_inverse_layer_idx=False)
    B, T = 4, 8

    key = jax.random.PRNGKey(0)
    kp, ki, kt = jax.random.split(key, 3)
    params = init_params(kp, cfg)
    idx = jax.random.randint(ki, (B, T), 0, cfg['vocab_size'], dtype=jnp.int32)
    targets = jax.random.randint(kt, (B, T), 0, cfg['vocab_size'], dtype=jnp.int32)

    fwd = jax.jit(functools.partial(gpt_forward, cfg=cfg))
    logits, loss, acc = fwd(params, idx, targets)
    jax.block_until_ready((logits, loss, acc))

    assert logits.shape == (B * T, cfg['vocab_size'])
    assert bool(jnp.isfinite(loss)) and bool(jnp.isfinite(acc))
    print("KERNEL_OK")
</pallas_src>

<mosaic_0001>
module attributes {stable_mosaic.version = 11 : i64} {
  func.func @dist_stats_kernel(%arg0: i32, %arg1: i32, %arg2: memref<32x32xf32, #tpu.memory_space<vmem>>, %arg3: memref<1x32xf32, #tpu.memory_space<vmem>>, %arg4: memref<1x32xf32, #tpu.memory_space<vmem>>, %arg5: memref<512x32xf32, #tpu.memory_space<vmem>>, %arg6: memref<1x512xf32, #tpu.memory_space<vmem>>, %arg7: memref<32x1xf32, #tpu.memory_space<vmem>>, %arg8: memref<32x1xf32, #tpu.memory_space<vmem>>, %arg9: memref<32x32xf32, #tpu.memory_space<vmem>>, %arg10: memref<32x1xf32, #tpu.memory_space<vmem>>) attributes {dimension_semantics = [#tpu.dimension_semantics<parallel>, #tpu.dimension_semantics<arbitrary>], iteration_bounds = array<i64: 1, 1>, scalar_prefetch = 0 : i64, scratch_operands = 2 : i64, tpu.core_type = #tpu.core_type<tc>, window_params = [{transform_indices = @transform_0, window_bounds = array<i64: 32, 32>}, {pipeline_mode = #tpu.pipeline_mode<synchronous>, transform_indices = @transform_1, window_bounds = array<i64: 1, 32>}, {pipeline_mode = #tpu.pipeline_mode<synchronous>, transform_indices = @transform_2, window_bounds = array<i64: 1, 32>}, {transform_indices = @transform_3, window_bounds = array<i64: 512, 32>}, {transform_indices = @transform_4, window_bounds = array<i64: 1, 512>}, {transform_indices = @transform_5, window_bounds = array<i64: 32, 1>}, {transform_indices = @transform_6, window_bounds = array<i64: 32, 1>}]} {
    %c0_i32 = arith.constant 0 : i32
    %0 = arith.cmpi eq, %arg1, %c0_i32 : i32
    %1 = arith.extui %0 : i1 to i32
    %c0_i32_0 = arith.constant 0 : i32
    %2 = arith.cmpi ne, %1, %c0_i32_0 : i32
    scf.if %2 {
      %c0_32 = arith.constant 0 : index
      %c0_33 = arith.constant 0 : index
      %65 = vector.load %arg2[%c0_32, %c0_33] : memref<32x32xf32, #tpu.memory_space<vmem>>, vector<32x32xf32>
      %c0_34 = arith.constant 0 : index
      %c0_35 = arith.constant 0 : index
      %66 = vector.load %arg3[%c0_34, %c0_35] : memref<1x32xf32, #tpu.memory_space<vmem>>, vector<1x32xf32>
      %c0_36 = arith.constant 0 : index
      %c0_37 = arith.constant 0 : index
      %67 = vector.load %arg4[%c0_36, %c0_37] : memref<1x32xf32, #tpu.memory_space<vmem>>, vector<1x32xf32>
      %cst_38 = arith.constant dense<0.000000e+00> : vector<32xf32>
      %68 = vector.multi_reduction <add>, %65, %cst_38 [1] : vector<32x32xf32> to vector<32xf32>
      %69 = vector.shape_cast %68 : vector<32xf32> to vector<32x1xf32>
      %cst_39 = arith.constant 3.200000e+01 : f32
      %70 = vector.broadcast %cst_39 : f32 to vector<32x1xf32>
      %71 = arith.divf %69, %70 : vector<32x1xf32>
      %72 = vector.broadcast %71 : vector<32x1xf32> to vector<32x32xf32>
      %73 = arith.subf %65, %72 : vector<32x32xf32>
      %74 = arith.mulf %73, %73 : vector<32x32xf32>
      %cst_40 = arith.constant dense<0.000000e+00> : vector<32xf32>
      %75 = vector.multi_reduction <add>, %74, %cst_40 [1] : vector<32x32xf32> to vector<32xf32>
      %76 = vector.shape_cast %75 : vector<32xf32> to vector<32x1xf32>
      %cst_41 = arith.constant 3.200000e+01 : f32
      %77 = vector.broadcast %cst_41 : f32 to vector<32x1xf32>
      %78 = arith.divf %76, %77 : vector<32x1xf32>
      %cst_42 = arith.constant 9.99999974E-6 : f32
      %79 = vector.broadcast %cst_42 : f32 to vector<32x1xf32>
      %80 = arith.addf %78, %79 : vector<32x1xf32>
      %81 = math.rsqrt %80 : vector<32x1xf32>
      %82 = vector.broadcast %81 : vector<32x1xf32> to vector<32x32xf32>
      %83 = arith.mulf %73, %82 : vector<32x32xf32>
      %84 = vector.broadcast %66 : vector<1x32xf32> to vector<32x32xf32>
      %85 = arith.mulf %83, %84 : vector<32x32xf32>
      %86 = vector.broadcast %67 : vector<1x32xf32> to vector<32x32xf32>
      %87 = arith.addf %85, %86 : vector<32x32xf32>
      %c0_43 = arith.constant 0 : index
      %c0_44 = arith.constant 0 : index
      %88 = vector.load %arg9[%c0_43, %c0_44] : memref<32x32xf32, #tpu.memory_space<vmem>>, vector<32x32xf32>
      tpu.vector_store %arg9[%c0_43, %c0_44], %87 {strides = array<i32>} : memref<32x32xf32, #tpu.memory_space<vmem>>, vector<32x32xf32>,
      %89 = arith.mulf %87, %87 : vector<32x32xf32>
      %cst_45 = arith.constant dense<0.000000e+00> : vector<32xf32>
      %90 = vector.multi_reduction <add>, %89, %cst_45 [1] : vector<32x32xf32> to vector<32xf32>
      %91 = vector.shape_cast %90 : vector<32xf32> to vector<32x1xf32>
      %92 = tpu.weird %91 : vector<32x1xf32> -> vector<32x1xi1>
      %cst_46 = arith.constant dense<true> : vector<32x1xi1>
      %93 = arith.xori %92, %cst_46 : vector<32x1xi1>
      %cst_47 = arith.constant 1.000000e+00 : f32
      %94 = vector.broadcast %cst_47 : f32 to vector<32x1xf32>
      %95 = arith.select %93, %91, %94 : vector<32x1xi1>, vector<32x1xf32>
      %c0_48 = arith.constant 0 : index
      %c0_49 = arith.constant 0 : index
      %96 = vector.load %arg10[%c0_48, %c0_49] : memref<32x1xf32, #tpu.memory_space<vmem>>, vector<32x1xf32>
      tpu.vector_store %arg10[%c0_48, %c0_49], %95 {strides = array<i32>} : memref<32x1xf32, #tpu.memory_space<vmem>>, vector<32x1xf32>,
    } else {
    }
    %c0 = arith.constant 0 : index
    %c0_1 = arith.constant 0 : index
    %3 = vector.load %arg9[%c0, %c0_1] : memref<32x32xf32, #tpu.memory_space<vmem>>, vector<32x32xf32>
    %c0_2 = arith.constant 0 : index
    %c0_3 = arith.constant 0 : index
    %4 = vector.load %arg10[%c0_2, %c0_3] : memref<32x1xf32, #tpu.memory_space<vmem>>, vector<32x1xf32>
    %c0_4 = arith.constant 0 : index
    %c0_5 = arith.constant 0 : index
    %5 = vector.load %arg5[%c0_4, %c0_5] : memref<512x32xf32, #tpu.memory_space<vmem>>, vector<512x32xf32>
    %c0_6 = arith.constant 0 : index
    %c0_7 = arith.constant 0 : index
    %6 = vector.load %arg6[%c0_6, %c0_7] : memref<1x512xf32, #tpu.memory_space<vmem>>, vector<1x512xf32>
    %cst = arith.constant dense<0.000000e+00> : vector<32x512xf32>
    %7 = tpu.matmul %3, %5, %cst {dimension_numbers = #tpu.dot_dimension_numbers<[1], [1], [0], [0], [0, 0, 1, 0], [], []>} : vector<32x32xf32>, vector<512x32xf32>, vector<32x512xf32> -> vector<32x512xf32>
    %8 = tpu.weird %7 : vector<32x512xf32> -> vector<32x512xi1>
    %cst_8 = arith.constant dense<true> : vector<32x512xi1>
    %9 = arith.xori %8, %cst_8 : vector<32x512xi1>
    %cst_9 = arith.constant 0.000000e+00 : f32
    %10 = vector.broadcast %cst_9 : f32 to vector<32x512xf32>
    %11 = arith.select %9, %7, %10 : vector<32x512xi1>, vector<32x512xf32>
    %12 = vector.broadcast %6 : vector<1x512xf32> to vector<32x512xf32>
    %13 = vector.broadcast %4 : vector<32x1xf32> to vector<32x512xf32>
    %14 = arith.addf %12, %13 : vector<32x512xf32>
    %cst_10 = arith.constant 2.000000e+00 : f32
    %15 = vector.broadcast %cst_10 : f32 to vector<32x512xf32>
    %16 = arith.mulf %15, %11 : vector<32x512xf32>
    %17 = arith.subf %14, %16 : vector<32x512xf32>
    %18 = tpu.weird %17 : vector<32x512xf32> -> vector<32x512xi1>
    %cst_11 = arith.constant dense<true> : vector<32x512xi1>
    %19 = arith.xori %18, %cst_11 : vector<32x512xi1>
    %cst_12 = arith.constant 7.680000e+02 : f32
    %20 = vector.broadcast %cst_12 : f32 to vector<32x512xf32>
    %21 = arith.select %19, %17, %20 : vector<32x512xi1>, vector<32x512xf32>
    %cst_13 = arith.constant 3.200000e+01 : f32
    %22 = vector.broadcast %cst_13 : f32 to vector<32x512xf32>
    %23 = arith.divf %21, %22 : vector<32x512xf32>
    %24 = tpu.weird %23 : vector<32x512xf32> -> vector<32x512xi1>
    %cst_14 = arith.constant dense<true> : vector<32x512xi1>
    %25 = arith.xori %24, %cst_14 : vector<32x512xi1>
    %cst_15 = arith.constant 1.000000e+00 : f32
    %26 = vector.broadcast %cst_15 : f32 to vector<32x512xf32>
    %27 = arith.select %25, %23, %26 : vector<32x512xi1>, vector<32x512xf32>
    %cst_16 = arith.constant dense<0x7F800000> : vector<32xf32>
    %28 = vector.multi_reduction <minimumf>, %27, %cst_16 [1] : vector<32x512xf32> to vector<32xf32>
    %29 = vector.shape_cast %28 : vector<32xf32> to vector<32x1xf32>
    %c0_17 = arith.constant 0 : index
    %c0_18 = arith.constant 0 : index
    %30 = vector.load %arg7[%c0_17, %c0_18] : memref<32x1xf32, #tpu.memory_space<vmem>>, vector<32x1xf32>
    %31 = arith.select %0, %29, %30 : vector<32x1xf32>
    %32 = arith.minimumf %31, %29 : vector<32x1xf32>
    %c0_19 = arith.constant 0 : index
    %c0_20 = arith.constant 0 : index
    %33 = vector.load %arg8[%c0_19, %c0_20] : memref<32x1xf32, #tpu.memory_space<vmem>>, vector<32x1xf32>
    %34 = arith.divf %32, %31 : vector<32x1xf32>
    %35 = arith.mulf %34, %34 : vector<32x1xf32>
    %36 = arith.mulf %35, %35 : vector<32x1xf32>
    %37 = arith.mulf %36, %36 : vector<32x1xf32>
    %38 = arith.mulf %37, %37 : vector<32x1xf32>
    %39 = arith.mulf %38, %38 : vector<32x1xf32>
    %40 = arith.mulf %33, %39 : vector<32x1xf32>
    %cst_21 = arith.constant 0.000000e+00 : f32
    %41 = vector.broadcast %cst_21 : f32 to vector<32x1xf32>
    %42 = arith.select %0, %41, %40 : vector<32x1xf32>
    %43 = vector.broadcast %32 : vector<32x1xf32> to vector<32x512xf32>
    %44 = arith.divf %27, %43 : vector<32x512xf32>
    %45 = tpu.weird %44 : vector<32x512xf32> -> vector<32x512xi1>
    %cst_22 = arith.constant dense<true> : vector<32x512xi1>
    %46 = arith.xori %45, %cst_22 : vector<32x512xi1>
    %cst_23 = arith.constant 1.000000e+00 : f32
    %47 = vector.broadcast %cst_23 : f32 to vector<32x512xf32>
    %48 = arith.select %46, %44, %47 : vector<32x512xi1>, vector<32x512xf32>
    %49 = arith.mulf %48, %48 : vector<32x512xf32>
    %50 = arith.mulf %49, %49 : vector<32x512xf32>
    %51 = arith.mulf %50, %50 : vector<32x512xf32>
    %52 = arith.mulf %51, %51 : vector<32x512xf32>
    %53 = arith.mulf %52, %52 : vector<32x512xf32>
    %cst_24 = arith.constant 1.000000e+00 : f32
    %54 = vector.broadcast %cst_24 : f32 to vector<32x512xf32>
    %55 = arith.divf %54, %53 : vector<32x512xf32>
    %56 = tpu.weird %55 : vector<32x512xf32> -> vector<32x512xi1>
    %cst_25 = arith.constant dense<true> : vector<32x512xi1>
    %57 = arith.xori %56, %cst_25 : vector<32x512xi1>
    %cst_26 = arith.constant 1.000000e+00 : f32
    %58 = vector.broadcast %cst_26 : f32 to vector<32x512xf32>
    %59 = arith.select %57, %55, %58 : vector<32x512xi1>, vector<32x512xf32>
    %cst_27 = arith.constant dense<0.000000e+00> : vector<32xf32>
    %60 = vector.multi_reduction <add>, %59, %cst_27 [1] : vector<32x512xf32> to vector<32xf32>
    %61 = vector.shape_cast %60 : vector<32xf32> to vector<32x1xf32>
    %62 = arith.addf %42, %61 : vector<32x1xf32>
    %c0_28 = arith.constant 0 : index
    %c0_29 = arith.constant 0 : index
    %63 = vector.load %arg8[%c0_28, %c0_29] : memref<32x1xf32, #tpu.memory_space<vmem>>, vector<32x1xf32>
    tpu.vector_store %arg8[%c0_28, %c0_29], %62 {strides = array<i32>} : memref<32x1xf32, #tpu.memory_space<vmem>>, vector<32x1xf32>,
    %c0_30 = arith.constant 0 : index
    %c0_31 = arith.constant 0 : index
    %64 = vector.load %arg7[%c0_30, %c0_31] : memref<32x1xf32, #tpu.memory_space<vmem>>, vector<32x1xf32>
    tpu.vector_store %arg7[%c0_30, %c0_31], %32 {strides = array<i32>} : memref<32x1xf32, #tpu.memory_space<vmem>>, vector<32x1xf32>,
    return
  }
  func.func @transform_0(%arg0: i32, %arg1: i32) -> (i32, i32) {
    %c0_i32 = arith.constant 0 : i32
    %c0_i32_0 = arith.constant 0 : i32
    return %arg0, %c0_i32 : i32, i32
  }
  func.func @transform_1(%arg0: i32, %arg1: i32) -> (i32, i32) {
    %c0_i32 = arith.constant 0 : i32
    %c0_i32_0 = arith.constant 0 : i32
    %c0_i32_1 = arith.constant 0 : i32
    return %c0_i32, %c0_i32_0 : i32, i32
  }
  func.func @transform_2(%arg0: i32, %arg1: i32) -> (i32, i32) {
    %c0_i32 = arith.constant 0 : i32
    %c0_i32_0 = arith.constant 0 : i32
    %c0_i32_1 = arith.constant 0 : i32
    return %c0_i32, %c0_i32_0 : i32, i32
  }
  func.func @transform_3(%arg0: i32, %arg1: i32) -> (i32, i32) {
    %c0_i32 = arith.constant 0 : i32
    %c0_i32_0 = arith.constant 0 : i32
    return %arg1, %c0_i32 : i32, i32
  }
  func.func @transform_4(%arg0: i32, %arg1: i32) -> (i32, i32) {
    %c0_i32 = arith.constant 0 : i32
    %c0_i32_0 = arith.constant 0 : i32
    return %c0_i32, %arg1 : i32, i32
  }
  func.func @transform_5(%arg0: i32, %arg1: i32) -> (i32, i32) {
    %c0_i32 = arith.constant 0 : i32
    %c0_i32_0 = arith.constant 0 : i32
    return %arg0, %c0_i32 : i32, i32
  }
  func.func @transform_6(%arg0: i32, %arg1: i32) -> (i32, i32) {
    %c0_i32 = arith.constant 0 : i32
    %c0_i32_0 = arith.constant 0 : i32
    return %arg0, %c0_i32 : i32, i32
  }
}

module attributes {stable_mosaic.version = 11 : i64} {
  func.func @mlp_kernel(%arg0: i32, %arg1: memref<2x8x32xf32, #tpu.memory_space<vmem>>, %arg2: memref<1x32xf32, #tpu.memory_space<vmem>>, %arg3: memref<1x32xf32, #tpu.memory_space<vmem>>, %arg4: memref<32x128xbf16, #tpu.memory_space<vmem>>, %arg5: memref<1x128xf32, #tpu.memory_space<vmem>>, %arg6: memref<128x32xbf16, #tpu.memory_space<vmem>>, %arg7: memref<1x32xf32, #tpu.memory_space<vmem>>, %arg8: memref<2x8x32xf32, #tpu.memory_space<vmem>>) attributes {dimension_semantics = [#tpu.dimension_semantics<parallel>], iteration_bounds = array<i64: 2>, scalar_prefetch = 0 : i64, scratch_operands = 0 : i64, tpu.core_type = #tpu.core_type<tc>, window_params = [{transform_indices = @transform_0, window_bounds = array<i64: 2, 8, 32>}, {pipeline_mode = #tpu.pipeline_mode<synchronous>, transform_indices = @transform_1, window_bounds = array<i64: 1, 32>}, {pipeline_mode = #tpu.pipeline_mode<synchronous>, transform_indices = @transform_2, window_bounds = array<i64: 1, 32>}, {pipeline_mode = #tpu.pipeline_mode<synchronous>, transform_indices = @transform_3, window_bounds = array<i64: 32, 128>}, {pipeline_mode = #tpu.pipeline_mode<synchronous>, transform_indices = @transform_4, window_bounds = array<i64: 1, 128>}, {pipeline_mode = #tpu.pipeline_mode<synchronous>, transform_indices = @transform_5, window_bounds = array<i64: 128, 32>}, {pipeline_mode = #tpu.pipeline_mode<synchronous>, transform_indices = @transform_6, window_bounds = array<i64: 1, 32>}, {transform_indices = @transform_7, window_bounds = array<i64: 2, 8, 32>}]} {
    %c0 = arith.constant 0 : index
    %c0_0 = arith.constant 0 : index
    %c0_1 = arith.constant 0 : index
    %0 = vector.load %arg1[%c0, %c0_0, %c0_1] : memref<2x8x32xf32, #tpu.memory_space<vmem>>, vector<2x8x32xf32>
    %1 = vector.shape_cast %0 : vector<2x8x32xf32> to vector<16x32xf32>
    %c0_2 = arith.constant 0 : index
    %c0_3 = arith.constant 0 : index
    %2 = vector.load %arg2[%c0_2, %c0_3] : memref<1x32xf32, #tpu.memory_space<vmem>>, vector<1x32xf32>
    %c0_4 = arith.constant 0 : index
    %c0_5 = arith.constant 0 : index
    %3 = vector.load %arg3[%c0_4, %c0_5] : memref<1x32xf32, #tpu.memory_space<vmem>>, vector<1x32xf32>
    %cst = arith.constant dense<0.000000e+00> : vector<16xf32>
    %4 = vector.multi_reduction <add>, %1, %cst [1] : vector<16x32xf32> to vector<16xf32>
    %5 = vector.shape_cast %4 : vector<16xf32> to vector<16x1xf32>
    %cst_6 = arith.constant 3.200000e+01 : f32
    %6 = vector.broadcast %cst_6 : f32 to vector<16x1xf32>
    %7 = arith.divf %5, %6 : vector<16x1xf32>
    %8 = vector.broadcast %7 : vector<16x1xf32> to vector<16x32xf32>
    %9 = arith.subf %1, %8 : vector<16x32xf32>
    %10 = arith.mulf %9, %9 : vector<16x32xf32>
    %cst_7 = arith.constant dense<0.000000e+00> : vector<16xf32>
    %11 = vector.multi_reduction <add>, %10, %cst_7 [1] : vector<16x32xf32> to vector<16xf32>
    %12 = vector.shape_cast %11 : vector<16xf32> to vector<16x1xf32>
    %cst_8 = arith.constant 3.200000e+01 : f32
    %13 = vector.broadcast %cst_8 : f32 to vector<16x1xf32>
    %14 = arith.divf %12, %13 : vector<16x1xf32>
    %cst_9 = arith.constant 9.99999974E-6 : f32
    %15 = vector.broadcast %cst_9 : f32 to vector<16x1xf32>
    %16 = arith.addf %14, %15 : vector<16x1xf32>
    %17 = math.rsqrt %16 : vector<16x1xf32>
    %18 = vector.broadcast %17 : vector<16x1xf32> to vector<16x32xf32>
    %19 = arith.mulf %9, %18 : vector<16x32xf32>
    %20 = vector.broadcast %2 : vector<1x32xf32> to vector<16x32xf32>
    %21 = arith.mulf %19, %20 : vector<16x32xf32>
    %22 = vector.broadcast %3 : vector<1x32xf32> to vector<16x32xf32>
    %23 = arith.addf %21, %22 : vector<16x32xf32>
    %cst_10 = arith.constant 0.000000e+00 : f32
    %24 = vector.broadcast %cst_10 : f32 to vector<16x32xf32>
    %c0_11 = arith.constant 0 : index
    %c0_12 = arith.constant 0 : index
    %25 = vector.load %arg4[%c0_11, %c0_12] : memref<32x128xbf16, #tpu.memory_space<vmem>>, vector<32x128xbf16>
    %26 = arith.truncf %23 : vector<16x32xf32> to vector<16x32xbf16>
    %cst_13 = arith.constant dense<0.000000e+00> : vector<16x128xf32>
    %27 = tpu.matmul %26, %25, %cst_13 {dimension_numbers = #tpu.dot_dimension_numbers<[1], [0], [0], [1], [0, 0, 1, 1], [], []>} : vector<16x32xbf16>, vector<32x128xbf16>, vector<16x128xf32> -> vector<16x128xf32>
    %c0_14 = arith.constant 0 : index
    %c0_15 = arith.constant 0 : index
    %28 = vector.load %arg5[%c0_14, %c0_15] : memref<1x128xf32, #tpu.memory_space<vmem>>, vector<1x128xf32>
    %29 = vector.broadcast %28 : vector<1x128xf32> to vector<16x128xf32>
    %30 = arith.addf %27, %29 : vector<16x128xf32>
    %cst_16 = arith.constant 5.000000e-01 : f32
    %31 = vector.broadcast %cst_16 : f32 to vector<16x128xf32>
    %32 = arith.mulf %31, %30 : vector<16x128xf32>
    %cst_17 = arith.constant 4.471500e-02 : f32
    %33 = vector.broadcast %cst_17 : f32 to vector<16x128xf32>
    %34 = arith.mulf %33, %30 : vector<16x128xf32>
    %35 = arith.mulf %34, %30 : vector<16x128xf32>
    %36 = arith.mulf %35, %30 : vector<16x128xf32>
    %37 = arith.addf %30, %36 : vector<16x128xf32>
    %cst_18 = arith.constant 0.797884583 : f32
    %38 = vector.broadcast %cst_18 : f32 to vector<16x128xf32>
    %39 = arith.mulf %38, %37 : vector<16x128xf32>
    %40 = math.tanh %39 : vector<16x128xf32>
    %cst_19 = arith.constant 1.000000e+00 : f32
    %41 = vector.broadcast %cst_19 : f32 to vector<16x128xf32>
    %42 = arith.addf %41, %40 : vector<16x128xf32>
    %43 = arith.mulf %32, %42 : vector<16x128xf32>
    %c0_20 = arith.constant 0 : index
    %c0_21 = arith.constant 0 : index
    %44 = vector.load %arg6[%c0_20, %c0_21] : memref<128x32xbf16, #tpu.memory_space<vmem>>, vector<128x32xbf16>
    %45 = arith.truncf %43 : vector<16x128xf32> to vector<16x128xbf16>
    %cst_22 = arith.constant dense<0.000000e+00> : vector<16x32xf32>
    %46 = tpu.matmul %45, %44, %cst_22 {dimension_numbers = #tpu.dot_dimension_numbers<[1], [0], [0], [1], [0, 0, 1, 1], [], []>} : vector<16x128xbf16>, vector<128x32xbf16>, vector<16x32xf32> -> vector<16x32xf32>
    %47 = arith.addf %24, %46 : vector<16x32xf32>
    %c0_23 = arith.constant 0 : index
    %c0_24 = arith.constant 0 : index
    %48 = vector.load %arg7[%c0_23, %c0_24] : memref<1x32xf32, #tpu.memory_space<vmem>>, vector<1x32xf32>
    %49 = vector.broadcast %48 : vector<1x32xf32> to vector<16x32xf32>
    %50 = arith.addf %47, %49 : vector<16x32xf32>
    %51 = arith.addf %1, %50 : vector<16x32xf32>
    %52 = tpu.weird %51 : vector<16x32xf32> -> vector<16x32xi1>
    %cst_25 = arith.constant dense<true> : vector<16x32xi1>
    %53 = arith.xori %52, %cst_25 : vector<16x32xi1>
    %cst_26 = arith.constant 0.000000e+00 : f32
    %54 = vector.broadcast %cst_26 : f32 to vector<16x32xf32>
    %55 = arith.select %53, %51, %54 : vector<16x32xi1>, vector<16x32xf32>
    %56 = vector.shape_cast %55 : vector<16x32xf32> to vector<2x8x32xf32>
    %c0_27 = arith.constant 0 : index
    %c0_28 = arith.constant 0 : index
    %c0_29 = arith.constant 0 : index
    %57 = vector.load %arg8[%c0_27, %c0_28, %c0_29] : memref<2x8x32xf32, #tpu.memory_space<vmem>>, vector<2x8x32xf32>
    tpu.vector_store %arg8[%c0_27, %c0_28, %c0_29], %56 {strides = array<i32>} : memref<2x8x32xf32, #tpu.memory_space<vmem>>, vector<2x8x32xf32>,
    return
  }
  func.func @transform_0(%arg0: i32) -> (i32, i32, i32) {
    %c0_i32 = arith.constant 0 : i32
    %c0_i32_0 = arith.constant 0 : i32
    %c0_i32_1 = arith.constant 0 : i32
    return %arg0, %c0_i32, %c0_i32_0 : i32, i32, i32
  }
  func.func @transform_1(%arg0: i32) -> (i32, i32) {
    %c0_i32 = arith.constant 0 : i32
    %c0_i32_0 = arith.constant 0 : i32
    %c0_i32_1 = arith.constant 0 : i32
    return %c0_i32, %c0_i32_0 : i32, i32
  }
  func.func @transform_2(%arg0: i32) -> (i32, i32) {
    %c0_i32 = arith.constant 0 : i32
    %c0_i32_0 = arith.constant 0 : i32
    %c0_i32_1 = arith.constant 0 : i32
    return %c0_i32, %c0_i32_0 : i32, i32
  }
  func.func @transform_3(%arg0: i32) -> (i32, i32) {
    %c0_i32 = arith.constant 0 : i32
    %c0_i32_0 = arith.constant 0 : i32
    %c0_i32_1 = arith.constant 0 : i32
    return %c0_i32, %c0_i32_0 : i32, i32
  }
  func.func @transform_4(%arg0: i32) -> (i32, i32) {
    %c0_i32 = arith.constant 0 : i32
    %c0_i32_0 = arith.constant 0 : i32
    %c0_i32_1 = arith.constant 0 : i32
    return %c0_i32, %c0_i32_0 : i32, i32
  }
  func.func @transform_5(%arg0: i32) -> (i32, i32) {
    %c0_i32 = arith.constant 0 : i32
    %c0_i32_0 = arith.constant 0 : i32
    %c0_i32_1 = arith.constant 0 : i32
    return %c0_i32, %c0_i32_0 : i32, i32
  }
  func.func @transform_6(%arg0: i32) -> (i32, i32) {
    %c0_i32 = arith.constant 0 : i32
    %c0_i32_0 = arith.constant 0 : i32
    %c0_i32_1 = arith.constant 0 : i32
    return %c0_i32, %c0_i32_0 : i32, i32
  }
  func.func @transform_7(%arg0: i32) -> (i32, i32, i32) {
    %c0_i32 = arith.constant 0 : i32
    %c0_i32_0 = arith.constant 0 : i32
    %c0_i32_1 = arith.constant 0 : i32
    return %arg0, %c0_i32, %c0_i32_0 : i32, i32, i32
  }
}

module attributes {stable_mosaic.version = 11 : i64} {
  func.func @logits_kernel(%arg0: i32, %arg1: i32, %arg2: memref<32x32xf32, #tpu.memory_space<vmem>>, %arg3: memref<1x32xf32, #tpu.memory_space<vmem>>, %arg4: memref<1x32xf32, #tpu.memory_space<vmem>>, %arg5: memref<512x32xf32, #tpu.memory_space<vmem>>, %arg6: memref<1x512xf32, #tpu.memory_space<vmem>>, %arg7: memref<32x1xf32, #tpu.memory_space<vmem>>, %arg8: memref<32x1xf32, #tpu.memory_space<vmem>>, %arg9: memref<32x1xi32, #tpu.memory_space<vmem>>, %arg10: memref<32x512xf32, #tpu.memory_space<vmem>>, %arg11: memref<32x1xf32, #tpu.memory_space<vmem>>, %arg12: memref<32x1xf32, #tpu.memory_space<vmem>>, %arg13: memref<32x1xf32, #tpu.memory_space<vmem>>, %arg14: memref<32x1xf32, #tpu.memory_space<vmem>>, %arg15: memref<32x1xf32, #tpu.memory_space<vmem>>, %arg16: memref<32x32xf32, #tpu.memory_space<vmem>>, %arg17: memref<32x1xf32, #tpu.memory_space<vmem>>) attributes {dimension_semantics = [#tpu.dimension_semantics<parallel>, #tpu.dimension_semantics<arbitrary>], iteration_bounds = array<i64: 1, 1>, scalar_prefetch = 0 : i64, scratch_operands = 2 : i64, tpu.core_type = #tpu.core_type<tc>, window_params = [{transform_indices = @transform_0, window_bounds = array<i64: 32, 32>}, {pipeline_mode = #tpu.pipeline_mode<synchronous>, transform_indices = @transform_1, window_bounds = array<i64: 1, 32>}, {pipeline_mode = #tpu.pipeline_mode<synchronous>, transform_indices = @transform_2, window_bounds = array<i64: 1, 32>}, {transform_indices = @transform_3, window_bounds = array<i64: 512, 32>}, {transform_indices = @transform_4, window_bounds = array<i64: 1, 512>}, {transform_indices = @transform_5, window_bounds = array<i64: 32, 1>}, {transform_indices = @transform_6, window_bounds = array<i64: 32, 1>}, {transform_indices = @transform_7, window_bounds = array<i64: 32, 1>}, {transform_indices = @transform_8, window_bounds = array<i64: 32, 512>}, {transform_indices = @transform_9, window_bounds = array<i64: 32, 1>}, {transform_indices = @transform_10, window_bounds = array<i64: 32, 1>}, {transform_indices = @transform_11, window_bounds = array<i64: 32, 1>}, {transform_indices = @transform_12, window_bounds = array<i64: 32, 1>}, {transform_indices = @transform_13, window_bounds = array<i64: 32, 1>}]} {
    %c0_i32 = arith.constant 0 : i32
    %0 = arith.cmpi eq, %arg1, %c0_i32 : i32
    %1 = arith.extui %0 : i1 to i32
    %c0_i32_0 = arith.constant 0 : i32
    %2 = arith.cmpi ne, %1, %c0_i32_0 : i32
    scf.if %2 {
      %c0_65 = arith.constant 0 : index
      %c0_66 = arith.constant 0 : index
      %117 = vector.load %arg2[%c0_65, %c0_66] : memref<32x32xf32, #tpu.memory_space<vmem>>, vector<32x32xf32>
      %c0_67 = arith.constant 0 : index
      %c0_68 = arith.constant 0 : index
      %118 = vector.load %arg3[%c0_67, %c0_68] : memref<1x32xf32, #tpu.memory_space<vmem>>, vector<1x32xf32>
      %c0_69 = arith.constant 0 : index
      %c0_70 = arith.constant 0 : index
      %119 = vector.load %arg4[%c0_69, %c0_70] : memref<1x32xf32, #tpu.memory_space<vmem>>, vector<1x32xf32>
      %cst_71 = arith.constant dense<0.000000e+00> : vector<32xf32>
      %120 = vector.multi_reduction <add>, %117, %cst_71 [1] : vector<32x32xf32> to vector<32xf32>
      %121 = vector.shape_cast %120 : vector<32xf32> to vector<32x1xf32>
      %cst_72 = arith.constant 3.200000e+01 : f32
      %122 = vector.broadcast %cst_72 : f32 to vector<32x1xf32>
      %123 = arith.divf %121, %122 : vector<32x1xf32>
      %124 = vector.broadcast %123 : vector<32x1xf32> to vector<32x32xf32>
      %125 = arith.subf %117, %124 : vector<32x32xf32>
      %126 = arith.mulf %125, %125 : vector<32x32xf32>
      %cst_73 = arith.constant dense<0.000000e+00> : vector<32xf32>
      %127 = vector.multi_reduction <add>, %126, %cst_73 [1] : vector<32x32xf32> to vector<32xf32>
      %128 = vector.shape_cast %127 : vector<32xf32> to vector<32x1xf32>
      %cst_74 = arith.constant 3.200000e+01 : f32
      %129 = vector.broadcast %cst_74 : f32 to vector<32x1xf32>
      %130 = arith.divf %128, %129 : vector<32x1xf32>
      %cst_75 = arith.constant 9.99999974E-6 : f32
      %131 = vector.broadcast %cst_75 : f32 to vector<32x1xf32>
      %132 = arith.addf %130, %131 : vector<32x1xf32>
      %133 = math.rsqrt %132 : vector<32x1xf32>
      %134 = vector.broadcast %133 : vector<32x1xf32> to vector<32x32xf32>
      %135 = arith.mulf %125, %134 : vector<32x32xf32>
      %136 = vector.broadcast %118 : vector<1x32xf32> to vector<32x32xf32>
      %137 = arith.mulf %135, %136 : vector<32x32xf32>
      %138 = vector.broadcast %119 : vector<1x32xf32> to vector<32x32xf32>
      %139 = arith.addf %137, %138 : vector<32x32xf32>
      %c0_76 = arith.constant 0 : index
      %c0_77 = arith.constant 0 : index
      %140 = vector.load %arg16[%c0_76, %c0_77] : memref<32x32xf32, #tpu.memory_space<vmem>>, vector<32x32xf32>
      tpu.vector_store %arg16[%c0_76, %c0_77], %139 {strides = array<i32>} : memref<32x32xf32, #tpu.memory_space<vmem>>, vector<32x32xf32>,
      %141 = arith.mulf %139, %139 : vector<32x32xf32>
      %cst_78 = arith.constant dense<0.000000e+00> : vector<32xf32>
      %142 = vector.multi_reduction <add>, %141, %cst_78 [1] : vector<32x32xf32> to vector<32xf32>
      %143 = vector.shape_cast %142 : vector<32xf32> to vector<32x1xf32>
      %144 = tpu.weird %143 : vector<32x1xf32> -> vector<32x1xi1>
      %cst_79 = arith.constant dense<true> : vector<32x1xi1>
      %145 = arith.xori %144, %cst_79 : vector<32x1xi1>
      %cst_80 = arith.constant 1.000000e+00 : f32
      %146 = vector.broadcast %cst_80 : f32 to vector<32x1xf32>
      %147 = arith.select %145, %143, %146 : vector<32x1xi1>, vector<32x1xf32>
      %c0_81 = arith.constant 0 : index
      %c0_82 = arith.constant 0 : index
      %148 = vector.load %arg17[%c0_81, %c0_82] : memref<32x1xf32, #tpu.memory_space<vmem>>, vector<32x1xf32>
      tpu.vector_store %arg17[%c0_81, %c0_82], %147 {strides = array<i32>} : memref<32x1xf32, #tpu.memory_space<vmem>>, vector<32x1xf32>,
    } else {
    }
    %c0 = arith.constant 0 : index
    %c0_1 = arith.constant 0 : index
    %3 = vector.load %arg16[%c0, %c0_1] : memref<32x32xf32, #tpu.memory_space<vmem>>, vector<32x32xf32>
    %c0_2 = arith.constant 0 : index
    %c0_3 = arith.constant 0 : index
    %4 = vector.load %arg17[%c0_2, %c0_3] : memref<32x1xf32, #tpu.memory_space<vmem>>, vector<32x1xf32>
    %c0_4 = arith.constant 0 : index
    %c0_5 = arith.constant 0 : index
    %5 = vector.load %arg5[%c0_4, %c0_5] : memref<512x32xf32, #tpu.memory_space<vmem>>, vector<512x32xf32>
    %c0_6 = arith.constant 0 : index
    %c0_7 = arith.constant 0 : index
    %6 = vector.load %arg6[%c0_6, %c0_7] : memref<1x512xf32, #tpu.memory_space<vmem>>, vector<1x512xf32>
    %cst = arith.constant dense<0.000000e+00> : vector<32x512xf32>
    %7 = tpu.matmul %3, %5, %cst {dimension_numbers = #tpu.dot_dimension_numbers<[1], [1], [0], [0], [0, 0, 1, 0], [], []>} : vector<32x32xf32>, vector<512x32xf32>, vector<32x512xf32> -> vector<32x512xf32>
    %8 = tpu.weird %7 : vector<32x512xf32> -> vector<32x512xi1>
    %cst_8 = arith.constant dense<true> : vector<32x512xi1>
    %9 = arith.xori %8, %cst_8 : vector<32x512xi1>
    %cst_9 = arith.constant 0.000000e+00 : f32
    %10 = vector.broadcast %cst_9 : f32 to vector<32x512xf32>
    %11 = arith.select %9, %7, %10 : vector<32x512xi1>, vector<32x512xf32>
    %12 = vector.broadcast %6 : vector<1x512xf32> to vector<32x512xf32>
    %13 = vector.broadcast %4 : vector<32x1xf32> to vector<32x512xf32>
    %14 = arith.addf %12, %13 : vector<32x512xf32>
    %cst_10 = arith.constant 2.000000e+00 : f32
    %15 = vector.broadcast %cst_10 : f32 to vector<32x512xf32>
    %16 = arith.mulf %15, %11 : vector<32x512xf32>
    %17 = arith.subf %14, %16 : vector<32x512xf32>
    %18 = tpu.weird %17 : vector<32x512xf32> -> vector<32x512xi1>
    %cst_11 = arith.constant dense<true> : vector<32x512xi1>
    %19 = arith.xori %18, %cst_11 : vector<32x512xi1>
    %cst_12 = arith.constant 7.680000e+02 : f32
    %20 = vector.broadcast %cst_12 : f32 to vector<32x512xf32>
    %21 = arith.select %19, %17, %20 : vector<32x512xi1>, vector<32x512xf32>
    %cst_13 = arith.constant 3.200000e+01 : f32
    %22 = vector.broadcast %cst_13 : f32 to vector<32x512xf32>
    %23 = arith.divf %21, %22 : vector<32x512xf32>
    %24 = tpu.weird %23 : vector<32x512xf32> -> vector<32x512xi1>
    %cst_14 = arith.constant dense<true> : vector<32x512xi1>
    %25 = arith.xori %24, %cst_14 : vector<32x512xi1>
    %cst_15 = arith.constant 1.000000e+00 : f32
    %26 = vector.broadcast %cst_15 : f32 to vector<32x512xf32>
    %27 = arith.select %25, %23, %26 : vector<32x512xi1>, vector<32x512xf32>
    %c0_16 = arith.constant 0 : index
    %c0_17 = arith.constant 0 : index
    %28 = vector.load %arg7[%c0_16, %c0_17] : memref<32x1xf32, #tpu.memory_space<vmem>>, vector<32x1xf32>
    %29 = vector.broadcast %28 : vector<32x1xf32> to vector<32x512xf32>
    %30 = arith.divf %27, %29 : vector<32x512xf32>
    %31 = tpu.weird %30 : vector<32x512xf32> -> vector<32x512xi1>
    %cst_18 = arith.constant dense<true> : vector<32x512xi1>
    %32 = arith.xori %31, %cst_18 : vector<32x512xi1>
    %cst_19 = arith.constant 1.000000e+00 : f32
    %33 = vector.broadcast %cst_19 : f32 to vector<32x512xf32>
    %34 = arith.select %32, %30, %33 : vector<32x512xi1>, vector<32x512xf32>
    %35 = arith.mulf %34, %34 : vector<32x512xf32>
    %36 = arith.mulf %35, %35 : vector<32x512xf32>
    %37 = arith.mulf %36, %36 : vector<32x512xf32>
    %38 = arith.mulf %37, %37 : vector<32x512xf32>
    %39 = arith.mulf %38, %38 : vector<32x512xf32>
    %cst_20 = arith.constant 1.000000e+00 : f32
    %40 = vector.broadcast %cst_20 : f32 to vector<32x512xf32>
    %41 = arith.divf %40, %39 : vector<32x512xf32>
    %42 = tpu.weird %41 : vector<32x512xf32> -> vector<32x512xi1>
    %cst_21 = arith.constant dense<true> : vector<32x512xi1>
    %43 = arith.xori %42, %cst_21 : vector<32x512xi1>
    %cst_22 = arith.constant 1.000000e+00 : f32
    %44 = vector.broadcast %cst_22 : f32 to vector<32x512xf32>
    %45 = arith.select %43, %41, %44 : vector<32x512xi1>, vector<32x512xf32>
    %c0_23 = arith.constant 0 : index
    %c0_24 = arith.constant 0 : index
    %46 = vector.load %arg8[%c0_23, %c0_24] : memref<32x1xf32, #tpu.memory_space<vmem>>, vector<32x1xf32>
    %47 = vector.broadcast %46 : vector<32x1xf32> to vector<32x512xf32>
    %48 = arith.divf %45, %47 : vector<32x512xf32>
    %49 = tpu.weird %48 : vector<32x512xf32> -> vector<32x512xi1>
    %cst_25 = arith.constant dense<true> : vector<32x512xi1>
    %50 = arith.xori %49, %cst_25 : vector<32x512xi1>
    %cst_26 = arith.constant 0.000000e+00 : f32
    %51 = vector.broadcast %cst_26 : f32 to vector<32x512xf32>
    %52 = arith.select %50, %48, %51 : vector<32x512xi1>, vector<32x512xf32>
    %cst_27 = arith.constant 1.98791355E-7 : f32
    %53 = vector.broadcast %cst_27 : f32 to vector<32x512xf32>
    %54 = arith.addf %52, %53 : vector<32x512xf32>
    %55 = math.log %54 : vector<32x512xf32>
    %56 = tpu.weird %55 : vector<32x512xf32> -> vector<32x512xi1>
    %cst_28 = arith.constant dense<true> : vector<32x512xi1>
    %57 = arith.xori %56, %cst_28 : vector<32x512xi1>
    %cst_29 = arith.constant 0.000000e+00 : f32
    %58 = vector.broadcast %cst_29 : f32 to vector<32x512xf32>
    %59 = arith.select %57, %55, %58 : vector<32x512xi1>, vector<32x512xf32>
    %c0_30 = arith.constant 0 : index
    %c0_31 = arith.constant 0 : index
    %60 = vector.load %arg10[%c0_30, %c0_31] : memref<32x512xf32, #tpu.memory_space<vmem>>, vector<32x512xf32>
    tpu.vector_store %arg10[%c0_30, %c0_31], %59 {strides = array<i32>} : memref<32x512xf32, #tpu.memory_space<vmem>>, vector<32x512xf32>,
    %c512_i32 = arith.constant 512 : i32
    %61 = arith.muli %arg1, %c512_i32 : i32
    %62 = tpu.iota {dimensions = array<i32: 1>} : vector<32x512xi32>
    %63 = vector.broadcast %61 : i32 to vector<32x512xi32>
    %64 = arith.addi %63, %62 : vector<32x512xi32>
    %c512_i32_32 = arith.constant 512 : i32
    %65 = vector.broadcast %c512_i32_32 : i32 to vector<32x512xi32>
    %66 = arith.cmpi slt, %64, %65 : vector<32x512xi32>
    %cst_33 = arith.constant 0xFF800000 : f32
    %67 = vector.broadcast %cst_33 : f32 to vector<32x512xf32>
    %68 = arith.select %66, %59, %67 : vector<32x512xi1>, vector<32x512xf32>
    %cst_34 = arith.constant dense<0xFF800000> : vector<32xf32>
    %69 = vector.multi_reduction <maximumf>, %68, %cst_34 [1] : vector<32x512xf32> to vector<32xf32>
    %70 = vector.shape_cast %69 : vector<32xf32> to vector<32x1xf32>
    %c0_35 = arith.constant 0 : index
    %c0_36 = arith.constant 0 : index
    %71 = vector.load %arg11[%c0_35, %c0_36] : memref<32x1xf32, #tpu.memory_space<vmem>>, vector<32x1xf32>
    %72 = arith.select %0, %70, %71 : vector<32x1xf32>
    %73 = arith.maximumf %72, %70 : vector<32x1xf32>
    %c0_37 = arith.constant 0 : index
    %c0_38 = arith.constant 0 : index
    %74 = vector.load %arg12[%c0_37, %c0_38] : memref<32x1xf32, #tpu.memory_space<vmem>>, vector<32x1xf32>
    %75 = arith.subf %72, %73 : vector<32x1xf32>
    %76 = math.exp %75 : vector<32x1xf32>
    %77 = arith.mulf %74, %76 : vector<32x1xf32>
    %cst_39 = arith.constant 0.000000e+00 : f32
    %78 = vector.broadcast %cst_39 : f32 to vector<32x1xf32>
    %79 = arith.select %0, %78, %77 : vector<32x1xf32>
    %80 = vector.broadcast %73 : vector<32x1xf32> to vector<32x512xf32>
    %81 = arith.subf %68, %80 : vector<32x512xf32>
    %82 = math.exp %81 : vector<32x512xf32>
    %cst_40 = arith.constant dense<0.000000e+00> : vector<32xf32>
    %83 = vector.multi_reduction <add>, %82, %cst_40 [1] : vector<32x512xf32> to vector<32xf32>
    %84 = vector.shape_cast %83 : vector<32xf32> to vector<32x1xf32>
    %85 = arith.addf %79, %84 : vector<32x1xf32>
    %c0_41 = arith.constant 0 : index
    %c0_42 = arith.constant 0 : index
    %86 = vector.load %arg12[%c0_41, %c0_42] : memref<32x1xf32, #tpu.memory_space<vmem>>, vector<32x1xf32>
    tpu.vector_store %arg12[%c0_41, %c0_42], %85 {strides = array<i32>} : memref<32x1xf32, #tpu.memory_space<vmem>>, vector<32x1xf32>,
    %c0_43 = arith.constant 0 : index
    %c0_44 = arith.constant 0 : index
    %87 = vector.load %arg11[%c0_43, %c0_44] : memref<32x1xf32, #tpu.memory_space<vmem>>, vector<32x1xf32>
    tpu.vector_store %arg11[%c0_43, %c0_44], %73 {strides = array<i32>} : memref<32x1xf32, #tpu.memory_space<vmem>>, vector<32x1xf32>,
    %88 = arith.sitofp %64 : vector<32x512xi32> to vector<32x512xf32>
    %89 = vector.broadcast %70 : vector<32x1xf32> to vector<32x512xf32>
    %90 = arith.cmpf oge, %68, %89 : vector<32x512xf32>
    %cst_45 = arith.constant 3.000000e+38 : f32
    %91 = vector.broadcast %cst_45 : f32 to vector<32x512xf32>
    %92 = arith.select %90, %88, %91 : vector<32x512xi1>, vector<32x512xf32>
    %cst_46 = arith.constant dense<0x7F800000> : vector<32xf32>
    %93 = vector.multi_reduction <minimumf>, %92, %cst_46 [1] : vector<32x512xf32> to vector<32xf32>
    %94 = vector.shape_cast %93 : vector<32xf32> to vector<32x1xf32>
    %c0_47 = arith.constant 0 : index
    %c0_48 = arith.constant 0 : index
    %95 = vector.load %arg13[%c0_47, %c0_48] : memref<32x1xf32, #tpu.memory_space<vmem>>, vector<32x1xf32>
    %cst_49 = arith.constant 0xFF800000 : f32
    %96 = vector.broadcast %cst_49 : f32 to vector<32x1xf32>
    %97 = arith.select %0, %96, %95 : vector<32x1xf32>
    %c0_50 = arith.constant 0 : index
    %c0_51 = arith.constant 0 : index
    %98 = vector.load %arg14[%c0_50, %c0_51] : memref<32x1xf32, #tpu.memory_space<vmem>>, vector<32x1xf32>
    %cst_52 = arith.constant 0.000000e+00 : f32
    %99 = vector.broadcast %cst_52 : f32 to vector<32x1xf32>
    %100 = arith.select %0, %99, %98 : vector<32x1xf32>
    %101 = arith.cmpf ogt, %70, %97 : vector<32x1xf32>
    %102 = arith.select %101, %70, %97 : vector<32x1xi1>, vector<32x1xf32>
    %c0_53 = arith.constant 0 : index
    %c0_54 = arith.constant 0 : index
    %103 = vector.load %arg13[%c0_53, %c0_54] : memref<32x1xf32, #tpu.memory_space<vmem>>, vector<32x1xf32>
    tpu.vector_store %arg13[%c0_53, %c0_54], %102 {strides = array<i32>} : memref<32x1xf32, #tpu.memory_space<vmem>>, vector<32x1xf32>,
    %104 = arith.select %101, %94, %100 : vector<32x1xi1>, vector<32x1xf32>
    %c0_55 = arith.constant 0 : index
    %c0_56 = arith.constant 0 : index
    %105 = vector.load %arg14[%c0_55, %c0_56] : memref<32x1xf32, #tpu.memory_space<vmem>>, vector<32x1xf32>
    tpu.vector_store %arg14[%c0_55, %c0_56], %104 {strides = array<i32>} : memref<32x1xf32, #tpu.memory_space<vmem>>, vector<32x1xf32>,
    %c0_57 = arith.constant 0 : index
    %c0_58 = arith.constant 0 : index
    %106 = vector.load %arg9[%c0_57, %c0_58] : memref<32x1xi32, #tpu.memory_space<vmem>>, vector<32x1xi32>
    %107 = vector.broadcast %106 : vector<32x1xi32> to vector<32x512xi32>
    %108 = arith.cmpi eq, %64, %107 : vector<32x512xi32>
    %cst_59 = arith.constant 0.000000e+00 : f32
    %109 = vector.broadcast %cst_59 : f32 to vector<32x512xf32>
    %110 = arith.select %108, %59, %109 : vector<32x512xi1>, vector<32x512xf32>
    %cst_60 = arith.constant dense<0.000000e+00> : vector<32xf32>
    %111 = vector.multi_reduction <add>, %110, %cst_60 [1] : vector<32x512xf32> to vector<32xf32>
    %112 = vector.shape_cast %111 : vector<32xf32> to vector<32x1xf32>
    %c0_61 = arith.constant 0 : index
    %c0_62 = arith.constant 0 : index
    %113 = vector.load %arg15[%c0_61, %c0_62] : memref<32x1xf32, #tpu.memory_space<vmem>>, vector<32x1xf32>
    %114 = arith.addf %113, %112 : vector<32x1xf32>
    %115 = arith.select %0, %112, %114 : vector<32x1xf32>
    %c0_63 = arith.constant 0 : index
    %c0_64 = arith.constant 0 : index
    %116 = vector.load %arg15[%c0_63, %c0_64] : memref<32x1xf32, #tpu.memory_space<vmem>>, vector<32x1xf32>
    tpu.vector_store %arg15[%c0_63, %c0_64], %115 {strides = array<i32>} : memref<32x1xf32, #tpu.memory_space<vmem>>, vector<32x1xf32>,
    return
  }
  func.func @transform_0(%arg0: i32, %arg1: i32) -> (i32, i32) {
    %c0_i32 = arith.constant 0 : i32
    %c0_i32_0 = arith.constant 0 : i32
    return %arg0, %c0_i32 : i32, i32
  }
  func.func @transform_1(%arg0: i32, %arg1: i32) -> (i32, i32) {
    %c0_i32 = arith.constant 0 : i32
    %c0_i32_0 = arith.constant 0 : i32
    %c0_i32_1 = arith.constant 0 : i32
    return %c0_i32, %c0_i32_0 : i32, i32
  }
  func.func @transform_2(%arg0: i32, %arg1: i32) -> (i32, i32) {
    %c0_i32 = arith.constant 0 : i32
    %c0_i32_0 = arith.constant 0 : i32
    %c0_i32_1 = arith.constant 0 : i32
    return %c0_i32, %c0_i32_0 : i32, i32
  }
  func.func @transform_3(%arg0: i32, %arg1: i32) -> (i32, i32) {
    %c0_i32 = arith.constant 0 : i32
    %c0_i32_0 = arith.constant 0 : i32
    return %arg1, %c0_i32 : i32, i32
  }
  func.func @transform_4(%arg0: i32, %arg1: i32) -> (i32, i32) {
    %c0_i32 = arith.constant 0 : i32
    %c0_i32_0 = arith.constant 0 : i32
    return %c0_i32, %arg1 : i32, i32
  }
  func.func @transform_5(%arg0: i32, %arg1: i32) -> (i32, i32) {
    %c0_i32 = arith.constant 0 : i32
    %c0_i32_0 = arith.constant 0 : i32
    return %arg0, %c0_i32 : i32, i32
  }
  func.func @transform_6(%arg0: i32, %arg1: i32) -> (i32, i32) {
    %c0_i32 = arith.constant 0 : i32
    %c0_i32_0 = arith.constant 0 : i32
    return %arg0, %c0_i32 : i32, i32
  }
  func.func @transform_7(%arg0: i32, %arg1: i32) -> (i32, i32) {
    %c0_i32 = arith.constant 0 : i32
    %c0_i32_0 = arith.constant 0 : i32
    return %arg0, %c0_i32 : i32, i32
  }
  func.func @transform_8(%arg0: i32, %arg1: i32) -> (i32, i32) {
    %c0_i32 = arith.constant 0 : i32
    return %arg0, %arg1 : i32, i32
  }
  func.func @transform_9(%arg0: i32, %arg1: i32) -> (i32, i32) {
    %c0_i32 = arith.constant 0 : i32
    %c0_i32_0 = arith.constant 0 : i32
    return %arg0, %c0_i32 : i32, i32
  }
  func.func @transform_10(%arg0: i32, %arg1: i32) -> (i32, i32) {
    %c0_i32 = arith.constant 0 : i32
    %c0_i32_0 = arith.constant 0 : i32
    return %arg0, %c0_i32 : i32, i32
  }
  func.func @transform_11(%arg0: i32, %arg1: i32) -> (i32, i32) {
    %c0_i32 = arith.constant 0 : i32
    %c0_i32_0 = arith.constant 0 : i32
    return %arg0, %c0_i32 : i32, i32
  }
  func.func @transform_12(%arg0: i32, %arg1: i32) -> (i32, i32) {
    %c0_i32 = arith.constant 0 : i32
    %c0_i32_0 = arith.constant 0 : i32
    return %arg0, %c0_i32 : i32, i32
  }
  func.func @transform_13(%arg0: i32, %arg1: i32) -> (i32, i32) {
    %c0_i32 = arith.constant 0 : i32
    %c0_i32_0 = arith.constant 0 : i32
    return %arg0, %c0_i32 : i32, i32
  }
}

module attributes {stable_mosaic.version = 11 : i64} {
  func.func @attn_kernel(%arg0: i32, %arg1: memref<2x8x32xf32, #tpu.memory_space<vmem>>, %arg2: memref<1x32xf32, #tpu.memory_space<vmem>>, %arg3: memref<1x32xf32, #tpu.memory_space<vmem>>, %arg4: memref<32x96xbf16, #tpu.memory_space<vmem>>, %arg5: memref<1x96xf32, #tpu.memory_space<vmem>>, %arg6: memref<32x32xbf16, #tpu.memory_space<vmem>>, %arg7: memref<1x32xf32, #tpu.memory_space<vmem>>, %arg8: memref<2x8x32xf32, #tpu.memory_space<vmem>>) attributes {dimension_semantics = [#tpu.dimension_semantics<parallel>], iteration_bounds = array<i64: 2>, scalar_prefetch = 0 : i64, scratch_operands = 0 : i64, tpu.core_type = #tpu.core_type<tc>, window_params = [{transform_indices = @transform_0, window_bounds = array<i64: 2, 8, 32>}, {pipeline_mode = #tpu.pipeline_mode<synchronous>, transform_indices = @transform_1, window_bounds = array<i64: 1, 32>}, {pipeline_mode = #tpu.pipeline_mode<synchronous>, transform_indices = @transform_2, window_bounds = array<i64: 1, 32>}, {pipeline_mode = #tpu.pipeline_mode<synchronous>, transform_indices = @transform_3, window_bounds = array<i64: 32, 96>}, {pipeline_mode = #tpu.pipeline_mode<synchronous>, transform_indices = @transform_4, window_bounds = array<i64: 1, 96>}, {pipeline_mode = #tpu.pipeline_mode<synchronous>, transform_indices = @transform_5, window_bounds = array<i64: 32, 32>}, {pipeline_mode = #tpu.pipeline_mode<synchronous>, transform_indices = @transform_6, window_bounds = array<i64: 1, 32>}, {transform_indices = @transform_7, window_bounds = array<i64: 2, 8, 32>}]} {
    %c0 = arith.constant 0 : index
    %c0_0 = arith.constant 0 : index
    %c0_1 = arith.constant 0 : index
    %0 = vector.load %arg1[%c0, %c0_0, %c0_1] : memref<2x8x32xf32, #tpu.memory_space<vmem>>, vector<2x8x32xf32>
    %1 = vector.shape_cast %0 : vector<2x8x32xf32> to vector<16x32xf32>
    %c0_2 = arith.constant 0 : index
    %c0_3 = arith.constant 0 : index
    %2 = vector.load %arg2[%c0_2, %c0_3] : memref<1x32xf32, #tpu.memory_space<vmem>>, vector<1x32xf32>
    %c0_4 = arith.constant 0 : index
    %c0_5 = arith.constant 0 : index
    %3 = vector.load %arg3[%c0_4, %c0_5] : memref<1x32xf32, #tpu.memory_space<vmem>>, vector<1x32xf32>
    %cst = arith.constant dense<0.000000e+00> : vector<16xf32>
    %4 = vector.multi_reduction <add>, %1, %cst [1] : vector<16x32xf32> to vector<16xf32>
    %5 = vector.shape_cast %4 : vector<16xf32> to vector<16x1xf32>
    %cst_6 = arith.constant 3.200000e+01 : f32
    %6 = vector.broadcast %cst_6 : f32 to vector<16x1xf32>
    %7 = arith.divf %5, %6 : vector<16x1xf32>
    %8 = vector.broadcast %7 : vector<16x1xf32> to vector<16x32xf32>
    %9 = arith.subf %1, %8 : vector<16x32xf32>
    %10 = arith.mulf %9, %9 : vector<16x32xf32>
    %cst_7 = arith.constant dense<0.000000e+00> : vector<16xf32>
    %11 = vector.multi_reduction <add>, %10, %cst_7 [1] : vector<16x32xf32> to vector<16xf32>
    %12 = vector.shape_cast %11 : vector<16xf32> to vector<16x1xf32>
    %cst_8 = arith.constant 3.200000e+01 : f32
    %13 = vector.broadcast %cst_8 : f32 to vector<16x1xf32>
    %14 = arith.divf %12, %13 : vector<16x1xf32>
    %cst_9 = arith.constant 9.99999974E-6 : f32
    %15 = vector.broadcast %cst_9 : f32 to vector<16x1xf32>
    %16 = arith.addf %14, %15 : vector<16x1xf32>
    %17 = math.rsqrt %16 : vector<16x1xf32>
    %18 = vector.broadcast %17 : vector<16x1xf32> to vector<16x32xf32>
    %19 = arith.mulf %9, %18 : vector<16x32xf32>
    %20 = vector.broadcast %2 : vector<1x32xf32> to vector<16x32xf32>
    %21 = arith.mulf %19, %20 : vector<16x32xf32>
    %22 = vector.broadcast %3 : vector<1x32xf32> to vector<16x32xf32>
    %23 = arith.addf %21, %22 : vector<16x32xf32>
    %c0_10 = arith.constant 0 : index
    %c0_11 = arith.constant 0 : index
    %24 = vector.load %arg4[%c0_10, %c0_11] : memref<32x96xbf16, #tpu.memory_space<vmem>>, vector<32x96xbf16>
    %25 = arith.truncf %23 : vector<16x32xf32> to vector<16x32xbf16>
    %cst_12 = arith.constant dense<0.000000e+00> : vector<16x96xf32>
    %26 = tpu.matmul %25, %24, %cst_12 {dimension_numbers = #tpu.dot_dimension_numbers<[1], [0], [0], [1], [0, 0, 1, 1], [], []>} : vector<16x32xbf16>, vector<32x96xbf16>, vector<16x96xf32> -> vector<16x96xf32>
    %c0_13 = arith.constant 0 : index
    %c0_14 = arith.constant 0 : index
    %27 = vector.load %arg5[%c0_13, %c0_14] : memref<1x96xf32, #tpu.memory_space<vmem>>, vector<1x96xf32>
    %28 = vector.broadcast %27 : vector<1x96xf32> to vector<16x96xf32>
    %29 = arith.addf %26, %28 : vector<16x96xf32>
    %30 = vector.extract_strided_slice %29 {offsets = [0, 0], sizes = [16, 32], strides = [1, 1]} : vector<16x96xf32> to vector<16x32xf32>
    %cst_15 = arith.constant 0.353553385 : f32
    %31 = vector.broadcast %cst_15 : f32 to vector<16x32xf32>
    %32 = arith.mulf %30, %31 : vector<16x32xf32>
    %33 = vector.extract_strided_slice %29 {offsets = [0, 32], sizes = [16, 32], strides = [1, 1]} : vector<16x96xf32> to vector<16x32xf32>
    %34 = vector.extract_strided_slice %29 {offsets = [0, 64], sizes = [16, 32], strides = [1, 1]} : vector<16x96xf32> to vector<16x32xf32>
    %35 = tpu.iota {dimensions = array<i32: 0>} : vector<8x8xi32>
    %36 = tpu.iota {dimensions = array<i32: 1>} : vector<8x8xi32>
    %37 = arith.cmpi sle, %36, %35 : vector<8x8xi32>
    %38 = vector.shape_cast %37 : vector<8x8xi1> to vector<1x8x8xi1>
    %39 = vector.extract_strided_slice %32 {offsets = [0, 0], sizes = [16, 8], strides = [1, 1]} : vector<16x32xf32> to vector<16x8xf32>
    %40 = vector.shape_cast %39 : vector<16x8xf32> to vector<2x8x8xf32>
    %41 = arith.truncf %40 : vector<2x8x8xf32> to vector<2x8x8xbf16>
    %42 = vector.extract_strided_slice %33 {offsets = [0, 0], sizes = [16, 8], strides = [1, 1]} : vector<16x32xf32> to vector<16x8xf32>
    %43 = vector.shape_cast %42 : vector<16x8xf32> to vector<2x8x8xf32>
    %44 = arith.truncf %43 : vector<2x8x8xf32> to vector<2x8x8xbf16>
    %45 = vector.extract_strided_slice %34 {offsets = [0, 0], sizes = [16, 8], strides = [1, 1]} : vector<16x32xf32> to vector<16x8xf32>
    %46 = vector.shape_cast %45 : vector<16x8xf32> to vector<2x8x8xf32>
    %47 = arith.truncf %46 : vector<2x8x8xf32> to vector<2x8x8xbf16>
    "tpu.trace_start"() <{level = 10 : i32, message = "bqd,bkd->bqk"}> : () -> ()
    %cst_16 = arith.constant dense<0.000000e+00> : vector<2x8x8xf32>
    %48 = tpu.matmul %41, %44, %cst_16 {dimension_numbers = #tpu.dot_dimension_numbers<[2], [2], [1], [1], [0, 0, 0, 1, 1, 1], [0], [0]>} : vector<2x8x8xbf16>, vector<2x8x8xbf16>, vector<2x8x8xf32> -> vector<2x8x8xf32>
    %cst_17 = arith.constant 0xFF800000 : f32
    "tpu.trace_stop"() : () -> ()
    %49 = vector.shape_cast %38 : vector<1x8x8xi1> to vector<1x8x8xi1>
    %50 = vector.broadcast %49 : vector<1x8x8xi1> to vector<2x8x8xi1>
    %51 = vector.broadcast %cst_17 : f32 to vector<2x8x8xf32>
    %52 = arith.select %50, %48, %51 : vector<2x8x8xi1>, vector<2x8x8xf32>
    %cst_18 = arith.constant dense<0xFF800000> : vector<2x8xf32>
    %53 = vector.multi_reduction <maximumf>, %52, %cst_18 [2] : vector<2x8x8xf32> to vector<2x8xf32>
    %54 = vector.shape_cast %53 : vector<2x8xf32> to vector<2x8x1xf32>
    %55 = vector.broadcast %54 : vector<2x8x1xf32> to vector<2x8x8xf32>
    %56 = arith.subf %52, %55 : vector<2x8x8xf32>
    %57 = math.exp %56 : vector<2x8x8xf32>
    %cst_19 = arith.constant dense<0.000000e+00> : vector<2x8xf32>
    %58 = vector.multi_reduction <add>, %57, %cst_19 [2] : vector<2x8x8xf32> to vector<2x8xf32>
    %59 = vector.shape_cast %58 : vector<2x8xf32> to vector<2x8x1xf32>
    %60 = vector.broadcast %59 : vector<2x8x1xf32> to vector<2x8x8xf32>
    %61 = arith.divf %57, %60 : vector<2x8x8xf32>
    %62 = arith.truncf %61 : vector<2x8x8xf32> to vector<2x8x8xbf16>
    "tpu.trace_start"() <{level = 10 : i32, message = "bqk,bkd->bqd"}> : () -> ()
    %cst_20 = arith.constant dense<0.000000e+00> : vector<2x8x8xf32>
    %63 = tpu.matmul %62, %47, %cst_20 {dimension_numbers = #tpu.dot_dimension_numbers<[2], [1], [1], [2], [0, 0, 0, 1, 1, 2], [0], [0]>} : vector<2x8x8xbf16>, vector<2x8x8xbf16>, vector<2x8x8xf32> -> vector<2x8x8xf32>
    "tpu.trace_stop"() : () -> ()
    %64 = vector.shape_cast %63 : vector<2x8x8xf32> to vector<16x8xf32>
    %65 = vector.extract_strided_slice %32 {offsets = [0, 8], sizes = [16, 8], strides = [1, 1]} : vector<16x32xf32> to vector<16x8xf32>
    %66 = vector.shape_cast %65 : vector<16x8xf32> to vector<2x8x8xf32>
    %67 = arith.truncf %66 : vector<2x8x8xf32> to vector<2x8x8xbf16>
    %68 = vector.extract_strided_slice %33 {offsets = [0, 8], sizes = [16, 8], strides = [1, 1]} : vector<16x32xf32> to vector<16x8xf32>
    %69 = vector.shape_cast %68 : vector<16x8xf32> to vector<2x8x8xf32>
    %70 = arith.truncf %69 : vector<2x8x8xf32> to vector<2x8x8xbf16>
    %71 = vector.extract_strided_slice %34 {offsets = [0, 8], sizes = [16, 8], strides = [1, 1]} : vector<16x32xf32> to vector<16x8xf32>
    %72 = vector.shape_cast %71 : vector<16x8xf32> to vector<2x8x8xf32>
    %73 = arith.truncf %72 : vector<2x8x8xf32> to vector<2x8x8xbf16>
    "tpu.trace_start"() <{level = 10 : i32, message = "bqd,bkd->bqk"}> : () -> ()
    %cst_21 = arith.constant dense<0.000000e+00> : vector<2x8x8xf32>
    %74 = tpu.matmul %67, %70, %cst_21 {dimension_numbers = #tpu.dot_dimension_numbers<[2], [2], [1], [1], [0, 0, 0, 1, 1, 1], [0], [0]>} : vector<2x8x8xbf16>, vector<2x8x8xbf16>, vector<2x8x8xf32> -> vector<2x8x8xf32>
    %cst_22 = arith.constant 0xFF800000 : f32
    "tpu.trace_stop"() : () -> ()
    %75 = vector.shape_cast %38 : vector<1x8x8xi1> to vector<1x8x8xi1>
    %76 = vector.broadcast %75 : vector<1x8x8xi1> to vector<2x8x8xi1>
    %77 = vector.broadcast %cst_22 : f32 to vector<2x8x8xf32>
    %78 = arith.select %76, %74, %77 : vector<2x8x8xi1>, vector<2x8x8xf32>
    %cst_23 = arith.constant dense<0xFF800000> : vector<2x8xf32>
    %79 = vector.multi_reduction <maximumf>, %78, %cst_23 [2] : vector<2x8x8xf32> to vector<2x8xf32>
    %80 = vector.shape_cast %79 : vector<2x8xf32> to vector<2x8x1xf32>
    %81 = vector.broadcast %80 : vector<2x8x1xf32> to vector<2x8x8xf32>
    %82 = arith.subf %78, %81 : vector<2x8x8xf32>
    %83 = math.exp %82 : vector<2x8x8xf32>
    %cst_24 = arith.constant dense<0.000000e+00> : vector<2x8xf32>
    %84 = vector.multi_reduction <add>, %83, %cst_24 [2] : vector<2x8x8xf32> to vector<2x8xf32>
    %85 = vector.shape_cast %84 : vector<2x8xf32> to vector<2x8x1xf32>
    %86 = vector.broadcast %85 : vector<2x8x1xf32> to vector<2x8x8xf32>
    %87 = arith.divf %83, %86 : vector<2x8x8xf32>
    %88 = arith.truncf %87 : vector<2x8x8xf32> to vector<2x8x8xbf16>
    "tpu.trace_start"() <{level = 10 : i32, message = "bqk,bkd->bqd"}> : () -> ()
    %cst_25 = arith.constant dense<0.000000e+00> : vector<2x8x8xf32>
    %89 = tpu.matmul %88, %73, %cst_25 {dimension_numbers = #tpu.dot_dimension_numbers<[2], [1], [1], [2], [0, 0, 0, 1, 1, 2], [0], [0]>} : vector<2x8x8xbf16>, vector<2x8x8xbf16>, vector<2x8x8xf32> -> vector<2x8x8xf32>
    "tpu.trace_stop"() : () -> ()
    %90 = vector.shape_cast %89 : vector<2x8x8xf32> to vector<16x8xf32>
    %91 = vector.extract_strided_slice %32 {offsets = [0, 16], sizes = [16, 8], strides = [1, 1]} : vector<16x32xf32> to vector<16x8xf32>
    %92 = vector.shape_cast %91 : vector<16x8xf32> to vector<2x8x8xf32>
    %93 = arith.truncf %92 : vector<2x8x8xf32> to vector<2x8x8xbf16>
    %94 = vector.extract_strided_slice %33 {offsets = [0, 16], sizes = [16, 8], strides = [1, 1]} : vector<16x32xf32> to vector<16x8xf32>
    %95 = vector.shape_cast %94 : vector<16x8xf32> to vector<2x8x8xf32>
    %96 = arith.truncf %95 : vector<2x8x8xf32> to vector<2x8x8xbf16>
    %97 = vector.extract_strided_slice %34 {offsets = [0, 16], sizes = [16, 8], strides = [1, 1]} : vector<16x32xf32> to vector<16x8xf32>
    %98 = vector.shape_cast %97 : vector<16x8xf32> to vector<2x8x8xf32>
    %99 = arith.truncf %98 : vector<2x8x8xf32> to vector<2x8x8xbf16>
    "tpu.trace_start"() <{level = 10 : i32, message = "bqd,bkd->bqk"}> : () -> ()
    %cst_26 = arith.constant dense<0.000000e+00> : vector<2x8x8xf32>
    %100 = tpu.matmul %93, %96, %cst_26 {dimension_numbers = #tpu.dot_dimension_numbers<[2], [2], [1], [1], [0, 0, 0, 1, 1, 1], [0], [0]>} : vector<2x8x8xbf16>, vector<2x8x8xbf16>, vector<2x8x8xf32> -> vector<2x8x8xf32>
    %cst_27 = arith.constant 0xFF800000 : f32
    "tpu.trace_stop"() : () -> ()
    %101 = vector.shape_cast %38 : vector<1x8x8xi1> to vector<1x8x8xi1>
    %102 = vector.broadcast %101 : vector<1x8x8xi1> to vector<2x8x8xi1>
    %103 = vector.broadcast %cst_27 : f32 to vector<2x8x8xf32>
    %104 = arith.select %102, %100, %103 : vector<2x8x8xi1>, vector<2x8x8xf32>
    %cst_28 = arith.constant dense<0xFF800000> : vector<2x8xf32>
    %105 = vector.multi_reduction <maximumf>, %104, %cst_28 [2] : vector<2x8x8xf32> to vector<2x8xf32>
    %106 = vector.shape_cast %105 : vector<2x8xf32> to vector<2x8x1xf32>
    %107 = vector.broadcast %106 : vector<2x8x1xf32> to vector<2x8x8xf32>
    %108 = arith.subf %104, %107 : vector<2x8x8xf32>
    %109 = math.exp %108 : vector<2x8x8xf32>
    %cst_29 = arith.constant dense<0.000000e+00> : vector<2x8xf32>
    %110 = vector.multi_reduction <add>, %109, %cst_29 [2] : vector<2x8x8xf32> to vector<2x8xf32>
    %111 = vector.shape_cast %110 : vector<2x8xf32> to vector<2x8x1xf32>
    %112 = vector.broadcast %111 : vector<2x8x1xf32> to vector<2x8x8xf32>
    %113 = arith.divf %109, %112 : vector<2x8x8xf32>
    %114 = arith.truncf %113 : vector<2x8x8xf32> to vector<2x8x8xbf16>
    "tpu.trace_start"() <{level = 10 : i32, message = "bqk,bkd->bqd"}> : () -> ()
    %cst_30 = arith.constant dense<0.000000e+00> : vector<2x8x8xf32>
    %115 = tpu.matmul %114, %99, %cst_30 {dimension_numbers = #tpu.dot_dimension_numbers<[2], [1], [1], [2], [0, 0, 0, 1, 1, 2], [0], [0]>} : vector<2x8x8xbf16>, vector<2x8x8xbf16>, vector<2x8x8xf32> -> vector<2x8x8xf32>
    "tpu.trace_stop"() : () -> ()
    %116 = vector.shape_cast %115 : vector<2x8x8xf32> to vector<16x8xf32>
    %117 = vector.extract_strided_slice %32 {offsets = [0, 24], sizes = [16, 8], strides = [1, 1]} : vector<16x32xf32> to vector<16x8xf32>
    %118 = vector.shape_cast %117 : vector<16x8xf32> to vector<2x8x8xf32>
    %119 = arith.truncf %118 : vector<2x8x8xf32> to vector<2x8x8xbf16>
    %120 = vector.extract_strided_slice %33 {offsets = [0, 24], sizes = [16, 8], strides = [1, 1]} : vector<16x32xf32> to vector<16x8xf32>
    %121 = vector.shape_cast %120 : vector<16x8xf32> to vector<2x8x8xf32>
    %122 = arith.truncf %121 : vector<2x8x8xf32> to vector<2x8x8xbf16>
    %123 = vector.extract_strided_slice %34 {offsets = [0, 24], sizes = [16, 8], strides = [1, 1]} : vector<16x32xf32> to vector<16x8xf32>
    %124 = vector.shape_cast %123 : vector<16x8xf32> to vector<2x8x8xf32>
    %125 = arith.truncf %124 : vector<2x8x8xf32> to vector<2x8x8xbf16>
    "tpu.trace_start"() <{level = 10 : i32, message = "bqd,bkd->bqk"}> : () -> ()
    %cst_31 = arith.constant dense<0.000000e+00> : vector<2x8x8xf32>
    %126 = tpu.matmul %119, %122, %cst_31 {dimension_numbers = #tpu.dot_dimension_numbers<[2], [2], [1], [1], [0, 0, 0, 1, 1, 1], [0], [0]>} : vector<2x8x8xbf16>, vector<2x8x8xbf16>, vector<2x8x8xf32> -> vector<2x8x8xf32>
    %cst_32 = arith.constant 0xFF800000 : f32
    "tpu.trace_stop"() : () -> ()
    %127 = vector.shape_cast %38 : vector<1x8x8xi1> to vector<1x8x8xi1>
    %128 = vector.broadcast %127 : vector<1x8x8xi1> to vector<2x8x8xi1>
    %129 = vector.broadcast %cst_32 : f32 to vector<2x8x8xf32>
    %130 = arith.select %128, %126, %129 : vector<2x8x8xi1>, vector<2x8x8xf32>
    %cst_33 = arith.constant dense<0xFF800000> : vector<2x8xf32>
    %131 = vector.multi_reduction <maximumf>, %130, %cst_33 [2] : vector<2x8x8xf32> to vector<2x8xf32>
    %132 = vector.shape_cast %131 : vector<2x8xf32> to vector<2x8x1xf32>
    %133 = vector.broadcast %132 : vector<2x8x1xf32> to vector<2x8x8xf32>
    %134 = arith.subf %130, %133 : vector<2x8x8xf32>
    %135 = math.exp %134 : vector<2x8x8xf32>
    %cst_34 = arith.constant dense<0.000000e+00> : vector<2x8xf32>
    %136 = vector.multi_reduction <add>, %135, %cst_34 [2] : vector<2x8x8xf32> to vector<2x8xf32>
    %137 = vector.shape_cast %136 : vector<2x8xf32> to vector<2x8x1xf32>
    %138 = vector.broadcast %137 : vector<2x8x1xf32> to vector<2x8x8xf32>
    %139 = arith.divf %135, %138 : vector<2x8x8xf32>
    %140 = arith.truncf %139 : vector<2x8x8xf32> to vector<2x8x8xbf16>
    "tpu.trace_start"() <{level = 10 : i32, message = "bqk,bkd->bqd"}> : () -> ()
    %cst_35 = arith.constant dense<0.000000e+00> : vector<2x8x8xf32>
    %141 = tpu.matmul %140, %125, %cst_35 {dimension_numbers = #tpu.dot_dimension_numbers<[2], [1], [1], [2], [0, 0, 0, 1, 1, 2], [0], [0]>} : vector<2x8x8xbf16>, vector<2x8x8xbf16>, vector<2x8x8xf32> -> vector<2x8x8xf32>
    "tpu.trace_stop"() : () -> ()
    %142 = vector.shape_cast %141 : vector<2x8x8xf32> to vector<16x8xf32>
    %143 = tpu.concatenate %64, %90, %116, %142 in 1 : vector<16x8xf32>, vector<16x8xf32>, vector<16x8xf32>, vector<16x8xf32> -> vector<16x32xf32>
    %c0_36 = arith.constant 0 : index
    %c0_37 = arith.constant 0 : index
    %144 = vector.load %arg6[%c0_36, %c0_37] : memref<32x32xbf16, #tpu.memory_space<vmem>>, vector<32x32xbf16>
    %145 = arith.truncf %143 : vector<16x32xf32> to vector<16x32xbf16>
    %cst_38 = arith.constant dense<0.000000e+00> : vector<16x32xf32>
    %146 = tpu.matmul %145, %144, %cst_38 {dimension_numbers = #tpu.dot_dimension_numbers<[1], [0], [0], [1], [0, 0, 1, 1], [], []>} : vector<16x32xbf16>, vector<32x32xbf16>, vector<16x32xf32> -> vector<16x32xf32>
    %c0_39 = arith.constant 0 : index
    %c0_40 = arith.constant 0 : index
    %147 = vector.load %arg7[%c0_39, %c0_40] : memref<1x32xf32, #tpu.memory_space<vmem>>, vector<1x32xf32>
    %148 = vector.broadcast %147 : vector<1x32xf32> to vector<16x32xf32>
    %149 = arith.addf %146, %148 : vector<16x32xf32>
    %150 = arith.addf %1, %149 : vector<16x32xf32>
    %151 = tpu.weird %150 : vector<16x32xf32> -> vector<16x32xi1>
    %cst_41 = arith.constant dense<true> : vector<16x32xi1>
    %152 = arith.xori %151, %cst_41 : vector<16x32xi1>
    %cst_42 = arith.constant 0.000000e+00 : f32
    %153 = vector.broadcast %cst_42 : f32 to vector<16x32xf32>
    %154 = arith.select %152, %150, %153 : vector<16x32xi1>, vector<16x32xf32>
    %155 = vector.shape_cast %154 : vector<16x32xf32> to vector<2x8x32xf32>
    %c0_43 = arith.constant 0 : index
    %c0_44 = arith.constant 0 : index
    %c0_45 = arith.constant 0 : index
    %156 = vector.load %arg8[%c0_43, %c0_44, %c0_45] : memref<2x8x32xf32, #tpu.memory_space<vmem>>, vector<2x8x32xf32>
    tpu.vector_store %arg8[%c0_43, %c0_44, %c0_45], %155 {strides = array<i32>} : memref<2x8x32xf32, #tpu.memory_space<vmem>>, vector<2x8x32xf32>,
    return
  }
  func.func @transform_0(%arg0: i32) -> (i32, i32, i32) {
    %c0_i32 = arith.constant 0 : i32
    %c0_i32_0 = arith.constant 0 : i32
    %c0_i32_1 = arith.constant 0 : i32
    return %arg0, %c0_i32, %c0_i32_0 : i32, i32, i32
  }
  func.func @transform_1(%arg0: i32) -> (i32, i32) {
    %c0_i32 = arith.constant 0 : i32
    %c0_i32_0 = arith.constant 0 : i32
    %c0_i32_1 = arith.constant 0 : i32
    return %c0_i32, %c0_i32_0 : i32, i32
  }
  func.func @transform_2(%arg0: i32) -> (i32, i32) {
    %c0_i32 = arith.constant 0 : i32
    %c0_i32_0 = arith.constant 0 : i32
    %c0_i32_1 = arith.constant 0 : i32
    return %c0_i32, %c0_i32_0 : i32, i32
  }
  func.func @transform_3(%arg0: i32) -> (i32, i32) {
    %c0_i32 = arith.constant 0 : i32
    %c0_i32_0 = arith.constant 0 : i32
    %c0_i32_1 = arith.constant 0 : i32
    return %c0_i32, %c0_i32_0 : i32, i32
  }
  func.func @transform_4(%arg0: i32) -> (i32, i32) {
    %c0_i32 = arith.constant 0 : i32
    %c0_i32_0 = arith.constant 0 : i32
    %c0_i32_1 = arith.constant 0 : i32
    return %c0_i32, %c0_i32_0 : i32, i32
  }
  func.func @transform_5(%arg0: i32) -> (i32, i32) {
    %c0_i32 = arith.constant 0 : i32
    %c0_i32_0 = arith.constant 0 : i32
    %c0_i32_1 = arith.constant 0 : i32
    return %c0_i32, %c0_i32_0 : i32, i32
  }
  func.func @transform_6(%arg0: i32) -> (i32, i32) {
    %c0_i32 = arith.constant 0 : i32
    %c0_i32_0 = arith.constant 0 : i32
    %c0_i32_1 = arith.constant 0 : i32
    return %c0_i32, %c0_i32_0 : i32, i32
  }
  func.func @transform_7(%arg0: i32) -> (i32, i32, i32) {
    %c0_i32 = arith.constant 0 : i32
    %c0_i32_0 = arith.constant 0 : i32
    %c0_i32_1 = arith.constant 0 : i32
    return %arg0, %c0_i32, %c0_i32_0 : i32, i32, i32
  }
}

</mosaic_0001>

<llo_original>
// kernel: gpt_forward.7
$region0: #{gpt_forward.7}
  #allocation0 [shape = 'u32[]', space=smem, size = 0x4, offset = 0x4, fixed_abs, tag = 'smem constant byte address 0x4 - core index']
  #allocation1 [shape = 'u32[72,128]{1,0:T(1,128)}', space=vmem, size = 0x9000, scoped, tag = 'internal scratch']
  %s0 = inlined_call_operand.vmem [shape: f32[4,8,32], index: 0, kind: input, shape index: {}, may-alias: {0,7}]
  %s1 = inlined_call_operand.vmem [shape: f32[1,32], index: 1, kind: input, shape index: {}]
  %s2 = inlined_call_operand.vmem [shape: f32[1,32], index: 2, kind: input, shape index: {}]
  %s3 = inlined_call_operand.vmem [shape: bf16[32,128], index: 3, kind: input, shape index: {}]
  %s4 = inlined_call_operand.vmem [shape: f32[1,128], index: 4, kind: input, shape index: {}]
  %s5 = inlined_call_operand.vmem [shape: bf16[128,32], index: 5, kind: input, shape index: {}]
  %s6 = inlined_call_operand.vmem [shape: f32[1,32], index: 6, kind: input, shape index: {}]
  %s7 = inlined_call_operand.vmem [shape: f32[4,8,32], index: 7, kind: output, shape index: {}, may-alias: {0,7}]
  %s8 = sld [smem:[#allocation0]]
  $region61: #{gpt_forward.7} parent=0
    _
  %s10 = ssub.s32 1, %s8
  %s11 = scalar_select 0, %s10, %s8
  loop: start=0, step=1, limit=4
  $region2: #{gpt_forward.7} parent=0 // loop_pre_header
    _
  $region3: #{gpt_forward.7} parent=0 // loop_header
    %s13 = sphi 0, %s17
    %p14 = scmp.ge.s32.totalorder %s13, 4
    %s23 = sphi 0, %s25
    %s26 = sphi 0, %s23
    %s27 = sphi 0, %s26
    %s43 = sphi 0, %s27
    %s47 = sphi 0, %s47
    %s49 = sphi 0, %s47
    %s50 = sphi 0, %s49
    %s64 = sphi 0, %s50
    %s68 = sphi 0, %s68
    %s70 = sphi 0, %s68
    %s71 = sphi 0, %s70
    %s85 = sphi 0, %s71
    %s89 = sphi 0, %s89
    %s91 = sphi 0, %s89
    %s92 = sphi 0, %s91
    %s106 = sphi 0, %s92
    %s110 = sphi 0, %s110
    %s112 = sphi 0, %s110
    %s113 = sphi 0, %s112
    %s127 = sphi 0, %s113
    %s131 = sphi 0, %s131
    %s133 = sphi 0, %s131
    %s134 = sphi 0, %s133
    %s148 = sphi 0, %s134
    %s152 = sphi 0, %s152
    %s154 = sphi 0, %s152
    %s155 = sphi 0, %s154
    %s169 = sphi 0, %s155
    %s175 = sphi 0, %s177
    %s178 = sphi 0, %s175
    %s179 = sphi 0, %s178
    %s195 = sphi 0, %s179
  $region4: #{gpt_forward.7} parent=0 // loop_header_branch
    %16 = sbr.rel (%p14) target = $region8
  $region5: #{gpt_forward.7} parent=0 // loop_body
    %s18 = ssub.s32 %s13, 1
    %s19 = ssub.s32 %s13, 2
    %s20 = sadd.s32 %s13, 1
    %s21 = ssub.s32 %s13, %s20
    %p22 = scmp.eq.s32.totalorder %s21, 0
    %s24 = sadd.s32 %s23, 1
    %s25 = scalar_select %p22, %s23, %s24
    %p28 = pneg %p22
    %p29 = scmp.eq.s32.totalorder %s13, 1
    %p30 = por %p28, %p29
    %p31 = scmp.ne.s32.totalorder %s23, %s26
    %p32 = scmp.eq.s32.totalorder %s13, 0
    %p33 = por %p31, %p32
    %p34 = scmp.ne.s32.totalorder %s23, %s26
    %p35 = scmp.eq.s32.totalorder %s18, 1
    %p36 = por %p34, %p35
    %p37 = scmp.ne.s32.totalorder %s26, %s27
    %p38 = scmp.eq.s32.totalorder %s18, 0
    %p39 = por %p37, %p38
    %p40 = scmp.ne.s32.totalorder %s26, %s27
    %p41 = scmp.eq.s32.totalorder %s19, 1
    %p42 = por %p40, %p41
    %p44 = scmp.ne.s32.totalorder %s27, %s43
    %p45 = scmp.eq.s32.totalorder %s19, 0
    %p46 = por %p44, %p45
    %s48 = sadd.s32 %s47, 1
    %p51 = scmp.eq.s32.totalorder %s13, 1
    %p52 = scmp.ne.s32.totalorder %s47, %s49
    %p53 = scmp.eq.s32.totalorder %s13, 0
    %p54 = por %p52, %p53
    %p55 = scmp.ne.s32.totalorder %s47, %s49
    %p56 = scmp.eq.s32.totalorder %s18, 1
    %p57 = por %p55, %p56
    %p58 = scmp.ne.s32.totalorder %s49, %s50
    %p59 = scmp.eq.s32.totalorder %s18, 0
    %p60 = por %p58, %p59
    %p61 = scmp.ne.s32.totalorder %s49, %s50
    %p62 = scmp.eq.s32.totalorder %s19, 1
    %p63 = por %p61, %p62
    %p65 = scmp.ne.s32.totalorder %s50, %s64
    %p66 = scmp.eq.s32.totalorder %s19, 0
    %p67 = por %p65, %p66
    %s69 = sadd.s32 %s68, 1
    %p72 = scmp.eq.s32.totalorder %s13, 1
    %p73 = scmp.ne.s32.totalorder %s68, %s70
    %p74 = scmp.eq.s32.totalorder %s13, 0
    %p75 = por %p73, %p74
    %p76 = scmp.ne.s32.totalorder %s68, %s70
    %p77 = scmp.eq.s32.totalorder %s18, 1
    %p78 = por %p76, %p77
    %p79 = scmp.ne.s32.totalorder %s70, %s71
    %p80 = scmp.eq.s32.totalorder %s18, 0
    %p81 = por %p79, %p80
    %p82 = scmp.ne.s32.totalorder %s70, %s71
    %p83 = scmp.eq.s32.totalorder %s19, 1
    %p84 = por %p82, %p83
    %p86 = scmp.ne.s32.totalorder %s71, %s85
    %p87 = scmp.eq.s32.totalorder %s19, 0
    %p88 = por %p86, %p87
    %s90 = sadd.s32 %s89, 1
    %p93 = scmp.eq.s32.totalorder %s13, 1
    %p94 = scmp.ne.s32.totalorder %s89, %s91
    %p95 = scmp.eq.s32.totalorder %s13, 0
    %p96 = por %p94, %p95
    %p97 = scmp.ne.s32.totalorder %s89, %s91
    %p98 = scmp.eq.s32.totalorder %s18, 1
    %p99 = por %p97, %p98
    %p100 = scmp.ne.s32.totalorder %s91, %s92
    %p101 = scmp.eq.s32.totalorder %s18, 0
    %p102 = por %p100, %p101
    %p103 = scmp.ne.s32.totalorder %s91, %s92
    %p104 = scmp.eq.s32.totalorder %s19, 1
    %p105 = por %p103, %p104
    %p107 = scmp.ne.s32.totalorder %s92, %s106
    %p108 = scmp.eq.s32.totalorder %s19, 0
    %p109 = por %p107, %p108
    %s111 = sadd.s32 %s110, 1
    %p114 = scmp.eq.s32.totalorder %s13, 1
    %p115 = scmp.ne.s32.totalorder %s110, %s112
    %p116 = scmp.eq.s32.totalorder %s13, 0
    %p117 = por %p115, %p116
    %p118 = scmp.ne.s32.totalorder %s110, %s112
    %p119 = scmp.eq.s32.totalorder %s18, 1
    %p120 = por %p118, %p119
    %p121 = scmp.ne.s32.totalorder %s112, %s113
    %p122 = scmp.eq.s32.totalorder %s18, 0
    %p123 = por %p121, %p122
    %p124 = scmp.ne.s32.totalorder %s112, %s113
    %p125 = scmp.eq.s32.totalorder %s19, 1
    %p126 = por %p124, %p125
    %p128 = scmp.ne.s32.totalorder %s113, %s127
    %p129 = scmp.eq.s32.totalorder %s19, 0
    %p130 = por %p128, %p129
    %s132 = sadd.s32 %s131, 1
    %p135 = scmp.eq.s32.totalorder %s13, 1
    %p136 = scmp.ne.s32.totalorder %s131, %s133
    %p137 = scmp.eq.s32.totalorder %s13, 0
    %p138 = por %p136, %p137
    %p139 = scmp.ne.s32.totalorder %s131, %s133
    %p140 = scmp.eq.s32.totalorder %s18, 1
    %p141 = por %p139, %p140
    %p142 = scmp.ne.s32.totalorder %s133, %s134
    %p143 = scmp.eq.s32.totalorder %s18, 0
    %p144 = por %p142, %p143
    %p145 = scmp.ne.s32.totalorder %s133, %s134
    %p146 = scmp.eq.s32.totalorder %s19, 1
    %p147 = por %p145, %p146
    %p149 = scmp.ne.s32.totalorder %s134, %s148
    %p150 = scmp.eq.s32.totalorder %s19, 0
    %p151 = por %p149, %p150
    %s153 = sadd.s32 %s152, 1
    %p156 = scmp.eq.s32.totalorder %s13, 1
    %p157 = scmp.ne.s32.totalorder %s152, %s154
    %p158 = scmp.eq.s32.totalorder %s13, 0
    %p159 = por %p157, %p158
    %p160 = scmp.ne.s32.totalorder %s152, %s154
    %p161 = scmp.eq.s32.totalorder %s18, 1
    %p162 = por %p160, %p161
    %p163 = scmp.ne.s32.totalorder %s154, %s155
    %p164 = scmp.eq.s32.totalorder %s18, 0
    %p165 = por %p163, %p164
    %p166 = scmp.ne.s32.totalorder %s154, %s155
    %p167 = scmp.eq.s32.totalorder %s19, 1
    %p168 = por %p166, %p167
    %p170 = scmp.ne.s32.totalorder %s155, %s169
    %p171 = scmp.eq.s32.totalorder %s19, 0
    %p172 = por %p170, %p171
    %s173 = ssub.s32 %s13, %s20
    %p174 = scmp.eq.s32.totalorder %s173, 0
    %s176 = sadd.s32 %s175, 1
    %s177 = scalar_select %p174, %s175, %s176
    %p180 = pneg %p174
    %p181 = scmp.eq.s32.totalorder %s13, 1
    %p182 = por %p180, %p181
    %p183 = scmp.ne.s32.totalorder %s175, %s178
    %p184 = scmp.eq.s32.totalorder %s13, 0
    %p185 = por %p183, %p184
    %p186 = scmp.ne.s32.totalorder %s175, %s178
    %p187 = scmp.eq.s32.totalorder %s18, 1
    %p188 = por %p186, %p187
    %p189 = scmp.ne.s32.totalorder %s178, %s179
    %p190 = scmp.eq.s32.totalorder %s18, 0
    %p191 = por %p189, %p190
    %p192 = scmp.ne.s32.totalorder %s178, %s179
    %p193 = scmp.eq.s32.totalorder %s19, 1
    %p194 = por %p192, %p193
    %p196 = scmp.ne.s32.totalorder %s179, %s195
    %p197 = scmp.eq.s32.totalorder %s19, 0
    %p198 = por %p196, %p197
    %p199 = scmp.le.s32.totalorder 1, %s13
    %p200 = scmp.lt.s32.totalorder %s13, 3
    %p201 = pnand %p199, %p200
    %p202 = pneg %p201
    // Predicated region
    $region9: #{gpt_forward.7} parent=5 // pred_check
      _
    $region10: #{gpt_forward.7} parent=5 // pred_check_branch
      %204 = sbr.rel (%p201) target = $region12
    $region11: #{gpt_forward.7} parent=5 // pred_region
      %s205 = ssub.s32 %s13, 1
      // Predicated region
      $region13: #{gpt_forward.7} parent=11 // pred_check
        %p206 = pneg %p60
      $region14: #{gpt_forward.7} parent=11 // pred_check_branch
        %208 = sbr.rel (%p206) target = $region16
      $region15: #{gpt_forward.7} parent=11 // pred_region
        _
      $region16: #{gpt_forward.7} parent=11 // pred_fallthru
        _
      // Predicated region
      $region17: #{gpt_forward.7} parent=11 // pred_check
        %p209 = pneg %p81
      $region18: #{gpt_forward.7} parent=11 // pred_check_branch
        %211 = sbr.rel (%p209) target = $region20
      $region19: #{gpt_forward.7} parent=11 // pred_region
        _
      $region20: #{gpt_forward.7} parent=11 // pred_fallthru
        _
      // Predicated region
      $region21: #{gpt_forward.7} parent=11 // pred_check
        %p212 = pneg %p102
      $region22: #{gpt_forward.7} parent=11 // pred_check_branch
        %214 = sbr.rel (%p212) target = $region24
      $region23: #{gpt_forward.7} parent=11 // pred_region
        _
      $region24: #{gpt_forward.7} parent=11 // pred_fallthru
        _
      // Predicated region
      $region25: #{gpt_forward.7} parent=11 // pred_check
        %p215 = pneg %p123
      $region26: #{gpt_forward.7} parent=11 // pred_check_branch
        %217 = sbr.rel (%p215) target = $region28
      $region27: #{gpt_forward.7} parent=11 // pred_region
        _
      $region28: #{gpt_forward.7} parent=11 // pred_fallthru
        _
      // Predicated region
      $region29: #{gpt_forward.7} parent=11 // pred_check
        %p218 = pneg %p144
      $region30: #{gpt_forward.7} parent=11 // pred_check_branch
        %220 = sbr.rel (%p218) target = $region32
      $region31: #{gpt_forward.7} parent=11 // pred_region
        _
      $region32: #{gpt_forward.7} parent=11 // pred_fallthru
        _
      // Predicated region
      $region33: #{gpt_forward.7} parent=11 // pred_check
        %p221 = pneg %p165
      $region34: #{gpt_forward.7} parent=11 // pred_check_branch
        %223 = sbr.rel (%p221) target = $region36
      $region35: #{gpt_forward.7} parent=11 // pred_region
        _
      $region36: #{gpt_forward.7} parent=11 // pred_fallthru
        _
    $region12: #{gpt_forward.7} parent=5 // pred_fallthru
      _
    %p224 = scmp.lt.s32.totalorder %s13, 2
    // Predicated region
    $region37: #{gpt_forward.7} parent=5 // pred_check
      %p225 = pneg %p224
    $region38: #{gpt_forward.7} parent=5 // pred_check_branch
      %227 = sbr.rel (%p225) target = $region40
    $region39: #{gpt_forward.7} parent=5 // pred_region
      // Predicated region
      $region41: #{gpt_forward.7} parent=39 // pred_check
        %p228 = pneg %p33
      $region42: #{gpt_forward.7} parent=39 // pred_check_branch
        %230 = sbr.rel (%p228) target = $region44
      $region43: #{gpt_forward.7} parent=39 // pred_region
        %s231 = smul.u32 2, %s13
        %p232 = scmp.lt.s32.totalorder %s231, 3
        %s233 = scalar_select %p232, %s231, 3
        %s234 = smul.addr %s233, 8
        %s235 = scalar_lea.vmem %s0, %s234
        %s236 = smul.u32 2, %s13
      $region44: #{gpt_forward.7} parent=39 // pred_fallthru
        _
    $region40: #{gpt_forward.7} parent=5 // pred_fallthru
      _
    %p237 = scmp.le.s32.totalorder 1, %s13
    %p238 = scmp.lt.s32.totalorder %s13, 3
    %p239 = pnand %p237, %p238
    %p240 = pneg %p239
    // Predicated region
    $region45: #{gpt_forward.7} parent=5 // pred_check
      _
    $region46: #{gpt_forward.7} parent=5 // pred_check_branch
      %242 = sbr.rel (%p239) target = $region48
    $region47: #{gpt_forward.7} parent=5 // pred_region
      %s243 = ssub.s32 %s13, 1
      %s244 = smul.u32 2, %s18
      %p245 = scmp.lt.s32.totalorder %s244, 3
      %s246 = scalar_select %p245, %s244, 3
      %s247 = smul.addr %s246, 8
      %s248 = scalar_lea.vmem %s0, %s247
      %p249 = pneg %p39
      %p250 = pneg %p36
      %p251 = pneg %p60
      %p252 = pneg %p57
      %p253 = pneg %p81
      %p254 = pneg %p78
      %p255 = pneg %p102
      %p256 = pneg %p99
      %p257 = pneg %p123
      %p258 = pneg %p120
      %p259 = pneg %p144
      %p260 = pneg %p141
      %p261 = pneg %p165
      %p262 = pneg %p162
      %p263 = pneg %p191
      %p264 = pneg %p188
      %s265 = smul.u32 2, %s18
      %p266 = scmp.lt.s32.totalorder %s265, 3
      %s267 = scalar_select %p266, %s265, 3
      %s268 = smul.addr %s267, 8
      %s269 = scalar_lea.vmem %s7, %s268
      %s270 = smul.u32 2, %s18
      %p271 = scmp.lt.s32.totalorder %s270, 3
      %s272 = scalar_select %p271, %s270, 3
      %s273 = smul.addr %s272, 8
      %s274 = scalar_lea.vmem %s0, %s273
      %s275 = smul.u32 2, %s18
      %s276 = smul.u32 2, %s18
      %p277 = scmp.lt.s32.totalorder %s276, 3
      %s278 = scalar_select %p277, %s276, 3
      %s279 = smul.addr %s278, 8
      %s280 = scalar_lea.vmem %s7, %s279
      %s281 = smul.u32 2, %s18
      %v283 = vld [vmem:[%s274] sm:$0xff]
      %v284 = vld [vmem:[%s274 + $0x8] sm:$0xff]
      %v285 = vld [vmem:[%s1] sm:$0x1]
      %v286 = vld [vmem:[%s2] sm:$0x1]
      %vm287 = vcmask 261120
      %v288 = vsel %vm287, %v283, 0.0
      %289 = vadd.xlane.f32.xlu0 %v288
      %v290 = vpop.xlane.xlu0 %289
      %v291 = vsel %vm287, %v284, 0.0
      %292 = vadd.xlane.f32.xlu0 %v291
      %v293 = vpop.xlane.xlu0 %292
      %v294 = vrcp.pop 32.0
      %v295 = vmul.f32 32.0, %v294
      %v296 = vsub.f32 1.0, %v295
      %v297 = vmul.f32 %v294, %v296
      %v298 = vadd.f32 %v294, %v297
      %vm299 = vweird.f32 %v294
      %v300 = vsel %vm299, %v294, %v298
      %v301 = vmul.f32 %v290, %v300
      %v302 = vmul.f32 %v293, %v300
      %v303 = vsub.f32 %v283, %v301
      %v304 = vsub.f32 %v284, %v302
      %v305 = vmul.f32 %v303, %v303
      %v306 = vmul.f32 %v304, %v304
      %v307 = vsel %vm287, %v305, 0.0
      %308 = vadd.xlane.f32.xlu0 %v307
      %v309 = vpop.xlane.xlu0 %308
      %v310 = vsel %vm287, %v306, 0.0
      %311 = vadd.xlane.f32.xlu0 %v310
      %v312 = vpop.xlane.xlu0 %311
      %v313 = vmul.f32 %v309, %v300
      %v314 = vmul.f32 %v312, %v300
      %v315 = vadd.f32 %v313, 1e-05
      %v316 = vadd.f32 %v314, 1e-05
      %v317 = vrsqrt.pop %v315
      %v318 = vmul.f32 %v317, %v315
      %v319 = vmul.f32 %v318, %v317
      %v320 = vmul.f32 0.5, %v319
      %v321 = vsub.f32 1.5, %v320
      %v322 = vmul.f32 %v317, %v321
      %vm323 = vweird.f32 %v315
      %vm324 = vweird.f32 %v317
      %vm325 = vmor %vm323, %vm324
      %v326 = vsel %vm325, %v317, %v322
      %v327 = vrsqrt.pop %v316
      %v328 = vmul.f32 %v327, %v316
      %v329 = vmul.f32 %v328, %v327
      %v330 = vmul.f32 0.5, %v329
      %v331 = vsub.f32 1.5, %v330
      %v332 = vmul.f32 %v327, %v331
      %vm333 = vweird.f32 %v316
      %vm334 = vweird.f32 %v327
      %vm335 = vmor %vm333, %vm334
      %v336 = vsel %vm335, %v327, %v332
      %v337 = vmul.f32 %v303, %v326
      %v338 = vmul.f32 %v304, %v336
      %v340 = vperm.slane %v285, 0
      %v342 = vmul.f32 %v337, %v340
      %v343 = vmul.f32 %v338, %v340
      %v345 = vperm.slane %v286, 0
      %v347 = vadd.f32 %v342, %v345
      %v348 = vadd.f32 %v343, %v345
      %v349 = vld [vmem:[%s3] sm:$0xf]
      %v350 = vld [vmem:[%s3 + $0x4] sm:$0xf]
      %v351 = vld [vmem:[%s3 + $0x8] sm:$0xf]
      %v352 = vld [vmem:[%s3 + $0xc] sm:$0xf]
      %v353 = vpack.c.bf16 %v348, %v347
      %v354 = vld [vmem:[%s4] sm:$0x1]
      %v356 = vperm.slane %v354, 0
      %v362 = vunpack.c.l.b16 %v349
      %v363 = vunpack.c.l.b16 %v350
      %v364 = vunpack.c.l.b16 %v351
      %v365 = vunpack.c.l.b16 %v352
      %v366 = vpack.c.b16 %v363, %v362
      %v367 = vpack.c.b16 %v365, %v364
      %v371 = vsel %vm287, %v353, 0
      %373 = vmatpush.bf16.msra.mxu0 0
      %374 = vmatpush.bf16.msra.mxu0 0
      %375 = vmatpush.bf16.msra.mxu0 0
      %376 = vmatpush.bf16.msra.mxu0 0
      %377 = vmatpush.bf16.msra.mxu0 0
      %378 = vmatpush.bf16.msra.mxu0 0
      %379 = vmatpush.bf16.msra.mxu0 %v367
      %380 = vmatpush.bf16.msra.mxu0 %v366
      %381 = vmatmul.bf16.gmra.mxu0 %v371
      %v382 = vpop.f32.mrf.mxu0
      %v383 = vadd.f32 %v356, %v382
      %v384 = vpop.f32.mrf.mxu0
      %v385 = vadd.f32 %v356, %v384
      %386 = vdwg.mxu0
      %v387 = vmul.f32 %v383, 0.5
      %v388 = vmul.f32 %v385, 0.5
      %v389 = vmul.f32 %v383, 0.044715
      %v390 = vmul.f32 %v385, 0.044715
      %v391 = vmul.f32 %v389, %v383
      %v392 = vmul.f32 %v390, %v385
      %v393 = vmul.f32 %v391, %v383
      %v394 = vmul.f32 %v392, %v385
      %v395 = vadd.f32 %v383, %v393
      %v396 = vadd.f32 %v385, %v394
      %v397 = vmul.f32 %v395, 0.7978846
      %v398 = vmul.f32 %v396, 0.7978846
      %v399 = vtanh.pop %v397
      %v400 = vtanh.pop %v398
      %v401 = vadd.f32 %v399, 1.0
      %v402 = vadd.f32 %v400, 1.0
      %v403 = vmul.f32 %v387, %v401
      %v404 = vmul.f32 %v388, %v402
      %v405 = vld [vmem:[%s5] sm:$0xf]
      %v406 = vld [vmem:[%s5 + $0x4] sm:$0xf]
      %v407 = vld [vmem:[%s5 + $0x8] sm:$0xf]
      %v408 = vld [vmem:[%s5 + $0xc] sm:$0xf]
      %v409 = vld [vmem:[%s5 + $0x10] sm:$0xf]
      %v410 = vld [vmem:[%s5 + $0x14] sm:$0xf]
      %v411 = vld [vmem:[%s5 + $0x18] sm:$0xf]
      %v412 = vld [vmem:[%s5 + $0x1c] sm:$0xf]
      %v413 = vld [vmem:[%s5 + $0x20] sm:$0xf]
      %v414 = vld [vmem:[%s5 + $0x24] sm:$0xf]
      %v415 = vld [vmem:[%s5 + $0x28] sm:$0xf]
      %v416 = vld [vmem:[%s5 + $0x2c] sm:$0xf]
      %v417 = vld [vmem:[%s5 + $0x30] sm:$0xf]
      %v418 = vld [vmem:[%s5 + $0x34] sm:$0xf]
      %v419 = vld [vmem:[%s5 + $0x38] sm:$0xf]
      %v420 = vld [vmem:[%s5 + $0x3c] sm:$0xf]
      %v421 = vpack.c.bf16 %v404, %v403
      %v422 = vld [vmem:[%s6] sm:$0x1]
      %v424 = vperm.slane %v422, 0
      %v442 = vunpack.c.l.b16 %v405
      %v443 = vunpack.c.l.b16 %v406
      %v444 = vunpack.c.l.b16 %v407
      %v445 = vunpack.c.l.b16 %v408
      %v446 = vunpack.c.l.b16 %v409
      %v447 = vunpack.c.l.b16 %v410
      %v448 = vunpack.c.l.b16 %v411
      %v449 = vunpack.c.l.b16 %v412
      %v450 = vunpack.c.l.b16 %v413
      %v451 = vunpack.c.l.b16 %v414
      %v452 = vunpack.c.l.b16 %v415
      %v453 = vunpack.c.l.b16 %v416
      %v454 = vunpack.c.l.b16 %v417
      %v455 = vunpack.c.l.b16 %v418
      %v456 = vunpack.c.l.b16 %v419
      %v457 = vunpack.c.l.b16 %v420
      %v458 = vpack.c.b16 %v443, %v442
      %v459 = vpack.c.b16 %v445, %v444
      %v460 = vpack.c.b16 %v447, %v446
      %v461 = vpack.c.b16 %v449, %v448
      %v462 = vpack.c.b16 %v451, %v450
      %v463 = vpack.c.b16 %v453, %v452
      %v464 = vpack.c.b16 %v455, %v454
      %v465 = vpack.c.b16 %v457, %v456
      %474 = vmatpush.bf16.msra.mxu0 %v465
      %475 = vmatpush.bf16.msra.mxu0 %v464
      %476 = vmatpush.bf16.msra.mxu0 %v463
      %477 = vmatpush.bf16.msra.mxu0 %v462
      %478 = vmatpush.bf16.msra.mxu0 %v461
      %479 = vmatpush.bf16.msra.mxu0 %v460
      %480 = vmatpush.bf16.msra.mxu0 %v459
      %481 = vmatpush.bf16.msra.mxu0 %v458
      %482 = vmatmul.bf16.gmra.mxu0 %v421
      %v483 = vpop.f32.mrf.mxu0
      %v484 = vadd.f32 %v424, %v483
      %v485 = vpop.f32.mrf.mxu0
      %v486 = vadd.f32 %v424, %v485
      %487 = vdwg.mxu0
      %v488 = vadd.f32 %v283, %v484
      %v489 = vadd.f32 %v284, %v486
      %vm490 = vweird.f32 %v488
      %vm491 = vweird.f32 %v489
      %vm492 = vmxor %vm490, 1
      %vm493 = vmxor %vm491, 1
      %v494 = vsel %vm492, %v488, 0.0
      %v495 = vsel %vm493, %v489, 0.0
      %496 = vst.msk [vmem:[%s280] sm:$0xff] %vm287, %v494
      %497 = vst.msk [vmem:[%s280 + $0x8] sm:$0xff] %vm287, %v495
      %s498 = smul.u32 2, %s18
      %p499 = scmp.lt.s32.totalorder %s498, 3
      %s500 = scalar_select %p499, %s498, 3
      %s501 = smul.addr %s500, 8
      %s502 = scalar_lea.vmem %s7, %s501
      // Predicated region
      $region49: #{gpt_forward.7} parent=47 // pred_check
        %p503 = pneg %p188
      $region50: #{gpt_forward.7} parent=47 // pred_check_branch
        %505 = sbr.rel (%p503) target = $region52
      $region51: #{gpt_forward.7} parent=47 // pred_region
        %s506 = smul.u32 2, %s18
      $region52: #{gpt_forward.7} parent=47 // pred_fallthru
        _
    $region48: #{gpt_forward.7} parent=5 // pred_fallthru
      _
    %p507 = scmp.le.s32.totalorder 2, %s13
    // Predicated region
    $region53: #{gpt_forward.7} parent=5 // pred_check
      %p508 = pneg %p507
    $region54: #{gpt_forward.7} parent=5 // pred_check_branch
      %510 = sbr.rel (%p508) target = $region56
    $region55: #{gpt_forward.7} parent=5 // pred_region
      %s511 = ssub.s32 %s13, 2
      // Predicated region
      $region57: #{gpt_forward.7} parent=55 // pred_check
        %p512 = pneg %p194
      $region58: #{gpt_forward.7} parent=55 // pred_check_branch
        %514 = sbr.rel (%p512) target = $region60
      $region59: #{gpt_forward.7} parent=55 // pred_region
        %s515 = smul.u32 2, %s19
        %p516 = scmp.lt.s32.totalorder %s515, 3
        %s517 = scalar_select %p516, %s515, 3
        %s518 = smul.addr %s517, 8
        %s519 = scalar_lea.vmem %s7, %s518
      $region60: #{gpt_forward.7} parent=55 // pred_fallthru
        _
    $region56: #{gpt_forward.7} parent=5 // pred_fallthru
      _
  $region6: #{gpt_forward.7} parent=0 // loop_footer
    %s17 = sadd.s32 1, %s13
  $region7: #{gpt_forward.7} parent=0 // loop_footer_branch
    %12 = sbr.rel target = $region3
  $region8: #{gpt_forward.7} parent=0 // loop_exit
    _

// kernel: gpt_forward.10
$region0: #{gpt_forward.10}
  #allocation0 [shape = 'u32[]', space=smem, size = 0x4, offset = 0x4, fixed_abs, tag = 'smem constant byte address 0x4 - core index']
  #allocation1 [shape = 'u32[72,128]{1,0:T(1,128)}', space=vmem, size = 0x9000, scoped, tag = 'internal scratch']
  #allocation2 [shape = 'f32[32,32]{1,0:T(8,128)}', space=vmem, size = 0x4000, scoped, tag = 'scratch operand']
  #allocation3 [shape = 'f32[32,1]{1,0:T(8,128)}', space=vmem, size = 0x4000, scoped, tag = 'scratch operand']
  %s0 = inlined_call_operand.vmem [shape: f32[32,32], index: 0, kind: input, shape index: {}]
  %s1 = inlined_call_operand.vmem [shape: f32[1,32], index: 1, kind: input, shape index: {}]
  %s2 = inlined_call_operand.vmem [shape: f32[1,32], index: 2, kind: input, shape index: {}]
  %s3 = inlined_call_operand.vmem [shape: f32[512,32], index: 3, kind: input, shape index: {}]
  %s4 = inlined_call_operand.vmem [shape: f32[1,512], index: 4, kind: input, shape index: {}]
  %s5 = inlined_call_operand.vmem [shape: f32[32,1], index: 5, kind: output, shape index: {0}]
  %s6 = inlined_call_operand.vmem [shape: f32[32,1], index: 6, kind: output, shape index: {1}]
  %7 = xla_tuple %s5, %s6
  %s8 = sld [smem:[#allocation0]]
  $region42: #{gpt_forward.10} parent=0
    _
  %s10 = ssub.s32 1, %s8
  %s11 = scalar_select 0, %s10, %s8
  // Predicated region
  $region2: #{gpt_forward.10} parent=0 // pred_check
    _
  $region3: #{gpt_forward.10} parent=0 // pred_check_branch
    %13 = sbr.rel (0) target = $region5
  $region4: #{gpt_forward.10} parent=0 // pred_region
    _
  $region5: #{gpt_forward.10} parent=0 // pred_fallthru
    _
  // Predicated region
  $region6: #{gpt_forward.10} parent=0 // pred_check
    _
  $region7: #{gpt_forward.10} parent=0 // pred_check_branch
    %15 = sbr.rel (0) target = $region9
  $region8: #{gpt_forward.10} parent=0 // pred_region
    _
  $region9: #{gpt_forward.10} parent=0 // pred_fallthru
    _
  // Predicated region
  $region10: #{gpt_forward.10} parent=0 // pred_check
    _
  $region11: #{gpt_forward.10} parent=0 // pred_check_branch
    %17 = sbr.rel (0) target = $region13
  $region12: #{gpt_forward.10} parent=0 // pred_region
    _
  $region13: #{gpt_forward.10} parent=0 // pred_fallthru
    _
  // Predicated region
  $region14: #{gpt_forward.10} parent=0 // pred_check
    _
  $region15: #{gpt_forward.10} parent=0 // pred_check_branch
    %19 = sbr.rel (0) target = $region17
  $region16: #{gpt_forward.10} parent=0 // pred_region
    _
  $region17: #{gpt_forward.10} parent=0 // pred_fallthru
    _
  // Predicated region
  $region18: #{gpt_forward.10} parent=0 // pred_check
    _
  $region19: #{gpt_forward.10} parent=0 // pred_check_branch
    %21 = sbr.rel (0) target = $region21
  $region20: #{gpt_forward.10} parent=0 // pred_region
    _
  $region21: #{gpt_forward.10} parent=0 // pred_fallthru
    _
  %p22 = scmp.eq.s32.totalorder 0, 0
  // Predicated region
  $region22: #{gpt_forward.10} parent=0 // pred_check
    %p23 = pneg %p22
  $region23: #{gpt_forward.10} parent=0 // pred_check_branch
    %25 = sbr.rel (%p23) target = $region25
  $region24: #{gpt_forward.10} parent=0 // pred_region
    %v26 = vld [vmem:[%s0] sm:$0xff]
    %v27 = vld [vmem:[%s0 + $0x8] sm:$0xff]
    %v28 = vld [vmem:[%s0 + $0x10] sm:$0xff]
    %v29 = vld [vmem:[%s0 + $0x18] sm:$0xff]
    %v30 = vld [vmem:[%s1] sm:$0x1]
    %v31 = vld [vmem:[%s2] sm:$0x1]
    %vm32 = vcmask 261120
    %v33 = vsel %vm32, %v26, 0.0
    %34 = vadd.xlane.f32.xlu0 %v33
    %v35 = vpop.xlane.xlu0 %34
    %v36 = vsel %vm32, %v27, 0.0
    %37 = vadd.xlane.f32.xlu0 %v36
    %v38 = vpop.xlane.xlu0 %37
    %v39 = vsel %vm32, %v28, 0.0
    %40 = vadd.xlane.f32.xlu0 %v39
    %v41 = vpop.xlane.xlu0 %40
    %v42 = vsel %vm32, %v29, 0.0
    %43 = vadd.xlane.f32.xlu0 %v42
    %v44 = vpop.xlane.xlu0 %43
    %v45 = vrcp.pop 32.0
    %v46 = vmul.f32 32.0, %v45
    %v47 = vsub.f32 1.0, %v46
    %v48 = vmul.f32 %v45, %v47
    %v49 = vadd.f32 %v45, %v48
    %vm50 = vweird.f32 %v45
    %v51 = vsel %vm50, %v45, %v49
    %v52 = vmul.f32 %v35, %v51
    %v53 = vmul.f32 %v38, %v51
    %v54 = vmul.f32 %v41, %v51
    %v55 = vmul.f32 %v44, %v51
    %v56 = vsub.f32 %v26, %v52
    %v57 = vsub.f32 %v27, %v53
    %v58 = vsub.f32 %v28, %v54
    %v59 = vsub.f32 %v29, %v55
    %v60 = vmul.f32 %v56, %v56
    %v61 = vmul.f32 %v57, %v57
    %v62 = vmul.f32 %v58, %v58
    %v63 = vmul.f32 %v59, %v59
    %v64 = vsel %vm32, %v60, 0.0
    %65 = vadd.xlane.f32.xlu0 %v64
    %v66 = vpop.xlane.xlu0 %65
    %v67 = vsel %vm32, %v61, 0.0
    %68 = vadd.xlane.f32.xlu0 %v67
    %v69 = vpop.xlane.xlu0 %68
    %v70 = vsel %vm32, %v62, 0.0
    %71 = vadd.xlane.f32.xlu0 %v70
    %v72 = vpop.xlane.xlu0 %71
    %v73 = vsel %vm32, %v63, 0.0
    %74 = vadd.xlane.f32.xlu0 %v73
    %v75 = vpop.xlane.xlu0 %74
    %v76 = vmul.f32 %v66, %v51
    %v77 = vmul.f32 %v69, %v51
    %v78 = vmul.f32 %v72, %v51
    %v79 = vmul.f32 %v75, %v51
    %v80 = vadd.f32 %v76, 1e-05
    %v81 = vadd.f32 %v77, 1e-05
    %v82 = vadd.f32 %v78, 1e-05
    %v83 = vadd.f32 %v79, 1e-05
    %v84 = vrsqrt.pop %v80
    %v85 = vmul.f32 %v84, %v80
    %v86 = vmul.f32 %v85, %v84
    %v87 = vmul.f32 0.5, %v86
    %v88 = vsub.f32 1.5, %v87
    %v89 = vmul.f32 %v84, %v88
    %vm90 = vweird.f32 %v80
    %vm91 = vweird.f32 %v84
    %vm92 = vmor %vm90, %vm91
    %v93 = vsel %vm92, %v84, %v89
    %v94 = vrsqrt.pop %v81
    %v95 = vmul.f32 %v94, %v81
    %v96 = vmul.f32 %v95, %v94
    %v97 = vmul.f32 0.5, %v96
    %v98 = vsub.f32 1.5, %v97
    %v99 = vmul.f32 %v94, %v98
    %vm100 = vweird.f32 %v81
    %vm101 = vweird.f32 %v94
    %vm102 = vmor %vm100, %vm101
    %v103 = vsel %vm102, %v94, %v99
    %v104 = vrsqrt.pop %v82
    %v105 = vmul.f32 %v104, %v82
    %v106 = vmul.f32 %v105, %v104
    %v107 = vmul.f32 0.5, %v106
    %v108 = vsub.f32 1.5, %v107
    %v109 = vmul.f32 %v104, %v108
    %vm110 = vweird.f32 %v82
    %vm111 = vweird.f32 %v104
    %vm112 = vmor %vm110, %vm111
    %v113 = vsel %vm112, %v104, %v109
    %v114 = vrsqrt.pop %v83
    %v115 = vmul.f32 %v114, %v83
    %v116 = vmul.f32 %v115, %v114
    %v117 = vmul.f32 0.5, %v116
    %v118 = vsub.f32 1.5, %v117
    %v119 = vmul.f32 %v114, %v118
    %vm120 = vweird.f32 %v83
    %vm121 = vweird.f32 %v114
    %vm122 = vmor %vm120, %vm121
    %v123 = vsel %vm122, %v114, %v119
    %v124 = vmul.f32 %v56, %v93
    %v125 = vmul.f32 %v57, %v103
    %v126 = vmul.f32 %v58, %v113
    %v127 = vmul.f32 %v59, %v123
    %v129 = vperm.slane %v30, 0
    %v131 = vmul.f32 %v124, %v129
    %v132 = vmul.f32 %v125, %v129
    %v133 = vmul.f32 %v126, %v129
    %v134 = vmul.f32 %v127, %v129
    %v136 = vperm.slane %v31, 0
    %v138 = vadd.f32 %v131, %v136
    %v139 = vadd.f32 %v132, %v136
    %v140 = vadd.f32 %v133, %v136
    %v141 = vadd.f32 %v134, %v136
    %142 = vst.msk [vmem:[#allocation2] sm:$0xff] %vm32, %v138
    %143 = vst.msk [vmem:[#allocation2 + $0x8] sm:$0xff] %vm32, %v139
    %144 = vst.msk [vmem:[#allocation2 + $0x10] sm:$0xff] %vm32, %v140
    %145 = vst.msk [vmem:[#allocation2 + $0x18] sm:$0xff] %vm32, %v141
    %v146 = vmul.f32 %v138, %v138
    %v147 = vmul.f32 %v139, %v139
    %v148 = vmul.f32 %v140, %v140
    %v149 = vmul.f32 %v141, %v141
    %v150 = vsel %vm32, %v146, 0.0
    %151 = vadd.xlane.f32.xlu0 %v150
    %v152 = vpop.xlane.xlu0 %151
    %v153 = vsel %vm32, %v147, 0.0
    %154 = vadd.xlane.f32.xlu0 %v153
    %v155 = vpop.xlane.xlu0 %154
    %v156 = vsel %vm32, %v148, 0.0
    %157 = vadd.xlane.f32.xlu0 %v156
    %v158 = vpop.xlane.xlu0 %157
    %v159 = vsel %vm32, %v149, 0.0
    %160 = vadd.xlane.f32.xlu0 %v159
    %v161 = vpop.xlane.xlu0 %160
    %vm162 = vweird.f32 %v152
    %vm163 = vweird.f32 %v155
    %vm164 = vweird.f32 %v158
    %vm165 = vweird.f32 %v161
    %vm166 = vmxor %vm162, 1
    %vm167 = vmxor %vm163, 1
    %vm168 = vmxor %vm164, 1
    %vm169 = vmxor %vm165, 1
    %v170 = vsel %vm166, %v152, 1.0
    %v171 = vsel %vm167, %v155, 1.0
    %v172 = vsel %vm168, %v158, 1.0
    %v173 = vsel %vm169, %v161, 1.0
    %vm174 = vcmask 7168
    %175 = vst.msk [vmem:[#allocation3] sm:$0xff] %vm174, %v170
    %176 = vst.msk [vmem:[#allocation3 + $0x8] sm:$0xff] %vm174, %v171
    %177 = vst.msk [vmem:[#allocation3 + $0x10] sm:$0xff] %vm174, %v172
    %178 = vst.msk [vmem:[#allocation3 + $0x18] sm:$0xff] %vm174, %v173
  $region25: #{gpt_forward.10} parent=0 // pred_fallthru
    _
  %v179 = vld [vmem:[#allocation2] sm:$0xff]
  %v180 = vld [vmem:[#allocation2 + $0x8] sm:$0xff]
  %v181 = vld [vmem:[#allocation2 + $0x10] sm:$0xff]
  %v182 = vld [vmem:[#allocation2 + $0x18] sm:$0xff]
  %v183 = vld [vmem:[#allocation3] sm:$0xff]
  %v184 = vld [vmem:[#allocation3 + $0x8] sm:$0xff]
  %v185 = vld [vmem:[#allocation3 + $0x10] sm:$0xff]
  %v186 = vld [vmem:[#allocation3 + $0x18] sm:$0xff]
  %v187 = vld [vmem:[%s3] sm:$0xff]
  %v188 = vld [vmem:[%s3 + $0x8] sm:$0xff]
  %v189 = vld [vmem:[%s3 + $0x10] sm:$0xff]
  %v190 = vld [vmem:[%s3 + $0x18] sm:$0xff]
  %v191 = vld [vmem:[%s3 + $0x20] sm:$0xff]
  %v192 = vld [vmem:[%s3 + $0x28] sm:$0xff]
  %v193 = vld [vmem:[%s3 + $0x30] sm:$0xff]
  %v194 = vld [vmem:[%s3 + $0x38] sm:$0xff]
  %v195 = vld [vmem:[%s3 + $0x40] sm:$0xff]
  %v196 = vld [vmem:[%s3 + $0x48] sm:$0xff]
  %v197 = vld [vmem:[%s3 + $0x50] sm:$0xff]
  %v198 = vld [vmem:[%s3 + $0x58] sm:$0xff]
  %v199 = vld [vmem:[%s3 + $0x60] sm:$0xff]
  %v200 = vld [vmem:[%s3 + $0x68] sm:$0xff]
  %v201 = vld [vmem:[%s3 + $0x70] sm:$0xff]
  %v202 = vld [vmem:[%s3 + $0x78] sm:$0xff]
  %v203 = vld [vmem:[%s3 + $0x80] sm:$0xff]
  %v204 = vld [vmem:[%s3 + $0x88] sm:$0xff]
  %v205 = vld [vmem:[%s3 + $0x90] sm:$0xff]
  %v206 = vld [vmem:[%s3 + $0x98] sm:$0xff]
  %v207 = vld [vmem:[%s3 + $0xa0] sm:$0xff]
  %v208 = vld [vmem:[%s3 + $0xa8] sm:$0xff]
  %v209 = vld [vmem:[%s3 + $0xb0] sm:$0xff]
  %v210 = vld [vmem:[%s3 + $0xb8] sm:$0xff]
  %v211 = vld [vmem:[%s3 + $0xc0] sm:$0xff]
  %v212 = vld [vmem:[%s3 + $0xc8] sm:$0xff]
  %v213 = vld [vmem:[%s3 + $0xd0] sm:$0xff]
  %v214 = vld [vmem:[%s3 + $0xd8] sm:$0xff]
  %v215 = vld [vmem:[%s3 + $0xe0] sm:$0xff]
  %v216 = vld [vmem:[%s3 + $0xe8] sm:$0xff]
  %v217 = vld [vmem:[%s3 + $0xf0] sm:$0xff]
  %v218 = vld [vmem:[%s3 + $0xf8] sm:$0xff]
  %v219 = vld [vmem:[%s3 + $0x100] sm:$0xff]
  %v220 = vld [vmem:[%s3 + $0x108] sm:$0xff]
  %v221 = vld [vmem:[%s3 + $0x110] sm:$0xff]
  %v222 = vld [vmem:[%s3 + $0x118] sm:$0xff]
  %v223 = vld [vmem:[%s3 + $0x120] sm:$0xff]
  %v224 = vld [vmem:[%s3 + $0x128] sm:$0xff]
  %v225 = vld [vmem:[%s3 + $0x130] sm:$0xff]
  %v226 = vld [vmem:[%s3 + $0x138] sm:$0xff]
  %v227 = vld [vmem:[%s3 + $0x140] sm:$0xff]
  %v228 = vld [vmem:[%s3 + $0x148] sm:$0xff]
  %v229 = vld [vmem:[%s3 + $0x150] sm:$0xff]
  %v230 = vld [vmem:[%s3 + $0x158] sm:$0xff]
  %v231 = vld [vmem:[%s3 + $0x160] sm:$0xff]
  %v232 = vld [vmem:[%s3 + $0x168] sm:$0xff]
  %v233 = vld [vmem:[%s3 + $0x170] sm:$0xff]
  %v234 = vld [vmem:[%s3 + $0x178] sm:$0xff]
  %v235 = vld [vmem:[%s3 + $0x180] sm:$0xff]
  %v236 = vld [vmem:[%s3 + $0x188] sm:$0xff]
  %v237 = vld [vmem:[%s3 + $0x190] sm:$0xff]
  %v238 = vld [vmem:[%s3 + $0x198] sm:$0xff]
  %v239 = vld [vmem:[%s3 + $0x1a0] sm:$0xff]
  %v240 = vld [vmem:[%s3 + $0x1a8] sm:$0xff]
  %v241 = vld [vmem:[%s3 + $0x1b0] sm:$0xff]
  %v242 = vld [vmem:[%s3 + $0x1b8] sm:$0xff]
  %v243 = vld [vmem:[%s3 + $0x1c0] sm:$0xff]
  %v244 = vld [vmem:[%s3 + $0x1c8] sm:$0xff]
  %v245 = vld [vmem:[%s3 + $0x1d0] sm:$0xff]
  %v246 = vld [vmem:[%s3 + $0x1d8] sm:$0xff]
  %v247 = vld [vmem:[%s3 + $0x1e0] sm:$0xff]
  %v248 = vld [vmem:[%s3 + $0x1e8] sm:$0xff]
  %v249 = vld [vmem:[%s3 + $0x1f0] sm:$0xff]
  %v250 = vld [vmem:[%s3 + $0x1f8] sm:$0xff]
  %v251 = vld [vmem:[%s4] sm:$0xf]
  %vm252 = vcmask 261120
  %v254 = vsel %vm252, %v179, 0
  %v257 = vsel %vm252, %v180, 0
  %v260 = vsel %vm252, %v181, 0
  %v263 = vsel %vm252, %v182, 0
  %v266 = vsel %vm252, %v187, 0
  %v269 = vsel %vm252, %v188, 0
  %v272 = vsel %vm252, %v189, 0
  %v275 = vsel %vm252, %v190, 0
  %v278 = vsel %vm252, %v191, 0
  %v281 = vsel %vm252, %v192, 0
  %v284 = vsel %vm252, %v193, 0
  %v287 = vsel %vm252, %v194, 0
  %v290 = vsel %vm252, %v195, 0
  %v293 = vsel %vm252, %v196, 0
  %v296 = vsel %vm252, %v197, 0
  %v299 = vsel %vm252, %v198, 0
  %v302 = vsel %vm252, %v199, 0
  %v305 = vsel %vm252, %v200, 0
  %v308 = vsel %vm252, %v201, 0
  %v311 = vsel %vm252, %v202, 0
  %v314 = vsel %vm252, %v203, 0
  %v317 = vsel %vm252, %v204, 0
  %v320 = vsel %vm252, %v205, 0
  %v323 = vsel %vm252, %v206, 0
  %v326 = vsel %vm252, %v207, 0
  %v329 = vsel %vm252, %v208, 0
  %v332 = vsel %vm252, %v209, 0
  %v335 = vsel %vm252, %v210, 0
  %v338 = vsel %vm252, %v211, 0
  %v341 = vsel %vm252, %v212, 0
  %v344 = vsel %vm252, %v213, 0
  %v347 = vsel %vm252, %v214, 0
  %v350 = vsel %vm252, %v215, 0
  %v353 = vsel %vm252, %v216, 0
  %v356 = vsel %vm252, %v217, 0
  %v359 = vsel %vm252, %v218, 0
  %v362 = vsel %vm252, %v219, 0
  %v365 = vsel %vm252, %v220, 0
  %v368 = vsel %vm252, %v221, 0
  %v371 = vsel %vm252, %v222, 0
  %v374 = vsel %vm252, %v223, 0
  %v377 = vsel %vm252, %v224, 0
  %v380 = vsel %vm252, %v225, 0
  %v383 = vsel %vm252, %v226, 0
  %v386 = vsel %vm252, %v227, 0
  %v389 = vsel %vm252, %v228, 0
  %v392 = vsel %vm252, %v229, 0
  %v395 = vsel %vm252, %v230, 0
  %v398 = vsel %vm252, %v231, 0
  %v401 = vsel %vm252, %v232, 0
  %v404 = vsel %vm252, %v233, 0
  %v407 = vsel %vm252, %v234, 0
  %v410 = vsel %vm252, %v235, 0
  %v413 = vsel %vm252, %v236, 0
  %v416 = vsel %vm252, %v237, 0
  %v419 = vsel %vm252, %v238, 0
  %v422 = vsel %vm252, %v239, 0
  %v425 = vsel %vm252, %v240, 0
  %v428 = vsel %vm252, %v241, 0
  %v431 = vsel %vm252, %v242, 0
  %v434 = vsel %vm252, %v243, 0
  %v437 = vsel %vm252, %v244, 0
  %v440 = vsel %vm252, %v245, 0
  %v443 = vsel %vm252, %v246, 0
  %v446 = vsel %vm252, %v247, 0
  %v449 = vsel %vm252, %v248, 0
  %v452 = vsel %vm252, %v249, 0
  %v455 = vsel %vm252, %v250, 0
  %457 = vmatpush.xpose.msra.mxu0 %v311
  %458 = vmatpush.xpose.msra.mxu0 %v308
  %459 = vmatpush.xpose.msra.mxu0 %v305
  %460 = vmatpush.xpose.msra.mxu0 %v302
  %461 = vmatpush.xpose.msra.mxu0 %v299
  %462 = vmatpush.xpose.msra.mxu0 %v296
  %463 = vmatpush.xpose.msra.mxu0 %v293
  %464 = vmatpush.xpose.msra.mxu0 %v290
  %465 = vmatpush.xpose.msra.mxu0 %v287
  %466 = vmatpush.xpose.msra.mxu0 %v284
  %467 = vmatpush.xpose.msra.mxu0 %v281
  %468 = vmatpush.xpose.msra.mxu0 %v278
  %469 = vmatpush.xpose.msra.mxu0 %v275
  %470 = vmatpush.xpose.msra.mxu0 %v272
  %471 = vmatpush.xpose.msra.mxu0 %v269
  %472 = vmatpush.xpose.msra.mxu0 %v266
  %473 = vmatmul.f32.gmra.mxu0 %v254
  %v474 = vpop.f32.mrf.mxu0
  %v475 = vadd.f32 0.0, %v474
  %476 = vmatmul.f32.gmra.mxu0 %v257
  %v477 = vpop.f32.mrf.mxu0
  %v478 = vadd.f32 0.0, %v477
  %479 = vmatmul.f32.gmra.mxu0 %v260
  %v480 = vpop.f32.mrf.mxu0
  %v481 = vadd.f32 0.0, %v480
  %482 = vmatmul.f32.gmra.mxu0 %v263
  %v483 = vpop.f32.mrf.mxu0
  %v484 = vadd.f32 0.0, %v483
  %485 = vdwg.mxu0
  %486 = vmatpush.xpose.msra.mxu0 %v359
  %487 = vmatpush.xpose.msra.mxu0 %v356
  %488 = vmatpush.xpose.msra.mxu0 %v353
  %489 = vmatpush.xpose.msra.mxu0 %v350
  %490 = vmatpush.xpose.msra.mxu0 %v347
  %491 = vmatpush.xpose.msra.mxu0 %v344
  %492 = vmatpush.xpose.msra.mxu0 %v341
  %493 = vmatpush.xpose.msra.mxu0 %v338
  %494 = vmatpush.xpose.msra.mxu0 %v335
  %495 = vmatpush.xpose.msra.mxu0 %v332
  %496 = vmatpush.xpose.msra.mxu0 %v329
  %497 = vmatpush.xpose.msra.mxu0 %v326
  %498 = vmatpush.xpose.msra.mxu0 %v323
  %499 = vmatpush.xpose.msra.mxu0 %v320
  %500 = vmatpush.xpose.msra.mxu0 %v317
  %501 = vmatpush.xpose.msra.mxu0 %v314
  %502 = vmatmul.f32.gmra.mxu0 %v254
  %v503 = vpop.f32.mrf.mxu0
  %v504 = vadd.f32 0.0, %v503
  %505 = vmatmul.f32.gmra.mxu0 %v257
  %v506 = vpop.f32.mrf.mxu0
  %v507 = vadd.f32 0.0, %v506
  %508 = vmatmul.f32.gmra.mxu0 %v260
  %v509 = vpop.f32.mrf.mxu0
  %v510 = vadd.f32 0.0, %v509
  %511 = vmatmul.f32.gmra.mxu0 %v263
  %v512 = vpop.f32.mrf.mxu0
  %v513 = vadd.f32 0.0, %v512
  %514 = vdwg.mxu0
  %515 = vmatpush.xpose.msra.mxu0 %v407
  %516 = vmatpush.xpose.msra.mxu0 %v404
  %517 = vmatpush.xpose.msra.mxu0 %v401
  %518 = vmatpush.xpose.msra.mxu0 %v398
  %519 = vmatpush.xpose.msra.mxu0 %v395
  %520 = vmatpush.xpose.msra.mxu0 %v392
  %521 = vmatpush.xpose.msra.mxu0 %v389
  %522 = vmatpush.xpose.msra.mxu0 %v386
  %523 = vmatpush.xpose.msra.mxu0 %v383
  %524 = vmatpush.xpose.msra.mxu0 %v380
  %525 = vmatpush.xpose.msra.mxu0 %v377
  %526 = vmatpush.xpose.msra.mxu0 %v374
  %527 = vmatpush.xpose.msra.mxu0 %v371
  %528 = vmatpush.xpose.msra.mxu0 %v368
  %529 = vmatpush.xpose.msra.mxu0 %v365
  %530 = vmatpush.xpose.msra.mxu0 %v362
  %531 = vmatmul.f32.gmra.mxu0 %v254
  %v532 = vpop.f32.mrf.mxu0
  %v533 = vadd.f32 0.0, %v532
  %534 = vmatmul.f32.gmra.mxu0 %v257
  %v535 = vpop.f32.mrf.mxu0
  %v536 = vadd.f32 0.0, %v535
  %537 = vmatmul.f32.gmra.mxu0 %v260
  %v538 = vpop.f32.mrf.mxu0
  %v539 = vadd.f32 0.0, %v538
  %540 = vmatmul.f32.gmra.mxu0 %v263
  %v541 = vpop.f32.mrf.mxu0
  %v542 = vadd.f32 0.0, %v541
  %543 = vdwg.mxu0
  %544 = vmatpush.xpose.msra.mxu0 %v455
  %545 = vmatpush.xpose.msra.mxu0 %v452
  %546 = vmatpush.xpose.msra.mxu0 %v449
  %547 = vmatpush.xpose.msra.mxu0 %v446
  %548 = vmatpush.xpose.msra.mxu0 %v443
  %549 = vmatpush.xpose.msra.mxu0 %v440
  %550 = vmatpush.xpose.msra.mxu0 %v437
  %551 = vmatpush.xpose.msra.mxu0 %v434
  %552 = vmatpush.xpose.msra.mxu0 %v431
  %553 = vmatpush.xpose.msra.mxu0 %v428
  %554 = vmatpush.xpose.msra.mxu0 %v425
  %555 = vmatpush.xpose.msra.mxu0 %v422
  %556 = vmatpush.xpose.msra.mxu0 %v419
  %557 = vmatpush.xpose.msra.mxu0 %v416
  %558 = vmatpush.xpose.msra.mxu0 %v413
  %559 = vmatpush.xpose.msra.mxu0 %v410
  %560 = vmatmul.f32.gmra.mxu0 %v254
  %v561 = vpop.f32.mrf.mxu0
  %v562 = vadd.f32 0.0, %v561
  %563 = vmatmul.f32.gmra.mxu0 %v257
  %v564 = vpop.f32.mrf.mxu0
  %v565 = vadd.f32 0.0, %v564
  %566 = vmatmul.f32.gmra.mxu0 %v260
  %v567 = vpop.f32.mrf.mxu0
  %v568 = vadd.f32 0.0, %v567
  %569 = vmatmul.f32.gmra.mxu0 %v263
  %v570 = vpop.f32.mrf.mxu0
  %v571 = vadd.f32 0.0, %v570
  %572 = vdwg.mxu0
  %vm573 = vweird.f32 %v475
  %vm574 = vweird.f32 %v504
  %vm575 = vweird.f32 %v533
  %vm576 = vweird.f32 %v562
  %vm577 = vweird.f32 %v478
  %vm578 = vweird.f32 %v507
  %vm579 = vweird.f32 %v536
  %vm580 = vweird.f32 %v565
  %vm581 = vweird.f32 %v481
  %vm582 = vweird.f32 %v510
  %vm583 = vweird.f32 %v539
  %vm584 = vweird.f32 %v568
  %vm585 = vweird.f32 %v484
  %vm586 = vweird.f32 %v513
  %vm587 = vweird.f32 %v542
  %vm588 = vweird.f32 %v571
  %vm589 = vmxor %vm573, 1
  %vm590 = vmxor %vm574, 1
  %vm591 = vmxor %vm575, 1
  %vm592 = vmxor %vm576, 1
  %vm593 = vmxor %vm577, 1
  %vm594 = vmxor %vm578, 1
  %vm595 = vmxor %vm579, 1
  %vm596 = vmxor %vm580, 1
  %vm597 = vmxor %vm581, 1
  %vm598 = vmxor %vm582, 1
  %vm599 = vmxor %vm583, 1
  %vm600 = vmxor %vm584, 1
  %vm601 = vmxor %vm585, 1
  %vm602 = vmxor %vm586, 1
  %vm603 = vmxor %vm587, 1
  %vm604 = vmxor %vm588, 1
  %v605 = vsel %vm589, %v475, 0.0
  %v606 = vsel %vm590, %v504, 0.0
  %v607 = vsel %vm591, %v533, 0.0
  %v608 = vsel %vm592, %v562, 0.0
  %v609 = vsel %vm593, %v478, 0.0
  %v610 = vsel %vm594, %v507, 0.0
  %v611 = vsel %vm595, %v536, 0.0
  %v612 = vsel %vm596, %v565, 0.0
  %v613 = vsel %vm597, %v481, 0.0
  %v614 = vsel %vm598, %v510, 0.0
  %v615 = vsel %vm599, %v539, 0.0
  %v616 = vsel %vm600, %v568, 0.0
  %v617 = vsel %vm601, %v484, 0.0
  %v618 = vsel %vm602, %v513, 0.0
  %v619 = vsel %vm603, %v542, 0.0
  %v620 = vsel %vm604, %v571, 0.0
  %v622 = vperm.slane %v251, 0
  %v623 = vperm.slane %v251, 1
  %v624 = vperm.slane %v251, 2
  %v625 = vperm.slane %v251, 3
  %631 = vset.pattern.permute.xlu0 0
  %632 = vperm.xlu0 %631, %v183
  %v633 = vpop.permute.xlu0 %632
  %636 = vset.pattern.permute.xlu0 0
  %637 = vperm.xlu0 %636, %v184
  %v638 = vpop.permute.xlu0 %637
  %641 = vset.pattern.permute.xlu0 0
  %642 = vperm.xlu0 %641, %v185
  %v643 = vpop.permute.xlu0 %642
  %646 = vset.pattern.permute.xlu0 0
  %647 = vperm.xlu0 %646, %v186
  %v648 = vpop.permute.xlu0 %647
  %v650 = vadd.f32 %v622, %v633
  %v651 = vadd.f32 %v623, %v633
  %v652 = vadd.f32 %v624, %v633
  %v653 = vadd.f32 %v625, %v633
  %v654 = vadd.f32 %v622, %v638
  %v655 = vadd.f32 %v623, %v638
  %v656 = vadd.f32 %v624, %v638
  %v657 = vadd.f32 %v625, %v638
  %v658 = vadd.f32 %v622, %v643
  %v659 = vadd.f32 %v623, %v643
  %v660 = vadd.f32 %v624, %v643
  %v661 = vadd.f32 %v625, %v643
  %v662 = vadd.f32 %v622, %v648
  %v663 = vadd.f32 %v623, %v648
  %v664 = vadd.f32 %v624, %v648
  %v665 = vadd.f32 %v625, %v648
  %v666 = vmul.f32 %v605, 2.0
  %v667 = vmul.f32 %v606, 2.0
  %v668 = vmul.f32 %v607, 2.0
  %v669 = vmul.f32 %v608, 2.0
  %v670 = vmul.f32 %v609, 2.0
  %v671 = vmul.f32 %v610, 2.0
  %v672 = vmul.f32 %v611, 2.0
  %v673 = vmul.f32 %v612, 2.0
  %v674 = vmul.f32 %v613, 2.0
  %v675 = vmul.f32 %v614, 2.0
  %v676 = vmul.f32 %v615, 2.0
  %v677 = vmul.f32 %v616, 2.0
  %v678 = vmul.f32 %v617, 2.0
  %v679 = vmul.f32 %v618, 2.0
  %v680 = vmul.f32 %v619, 2.0
  %v681 = vmul.f32 %v620, 2.0
  %v682 = vsub.f32 %v650, %v666
  %v683 = vsub.f32 %v651, %v667
  %v684 = vsub.f32 %v652, %v668
  %v685 = vsub.f32 %v653, %v669
  %v686 = vsub.f32 %v654, %v670
  %v687 = vsub.f32 %v655, %v671
  %v688 = vsub.f32 %v656, %v672
  %v689 = vsub.f32 %v657, %v673
  %v690 = vsub.f32 %v658, %v674
  %v691 = vsub.f32 %v659, %v675
  %v692 = vsub.f32 %v660, %v676
  %v693 = vsub.f32 %v661, %v677
  %v694 = vsub.f32 %v662, %v678
  %v695 = vsub.f32 %v663, %v679
  %v696 = vsub.f32 %v664, %v680
  %v697 = vsub.f32 %v665, %v681
  %vm698 = vweird.f32 %v682
  %vm699 = vweird.f32 %v683
  %vm700 = vweird.f32 %v684
  %vm701 = vweird.f32 %v685
  %vm702 = vweird.f32 %v686
  %vm703 = vweird.f32 %v687
  %vm704 = vweird.f32 %v688
  %vm705 = vweird.f32 %v689
  %vm706 = vweird.f32 %v690
  %vm707 = vweird.f32 %v691
  %vm708 = vweird.f32 %v692
  %vm709 = vweird.f32 %v693
  %vm710 = vweird.f32 %v694
  %vm711 = vweird.f32 %v695
  %vm712 = vweird.f32 %v696
  %vm713 = vweird.f32 %v697
  %vm714 = vmxor %vm698, 1
  %vm715 = vmxor %vm699, 1
  %vm716 = vmxor %vm700, 1
  %vm717 = vmxor %vm701, 1
  %vm718 = vmxor %vm702, 1
  %vm719 = vmxor %vm703, 1
  %vm720 = vmxor %vm704, 1
  %vm721 = vmxor %vm705, 1
  %vm722 = vmxor %vm706, 1
  %vm723 = vmxor %vm707, 1
  %vm724 = vmxor %vm708, 1
  %vm725 = vmxor %vm709, 1
  %vm726 = vmxor %vm710, 1
  %vm727 = vmxor %vm711, 1
  %vm728 = vmxor %vm712, 1
  %vm729 = vmxor %vm713, 1
  %v730 = vsel %vm714, %v682, 768.0
  %v731 = vsel %vm715, %v683, 768.0
  %v732 = vsel %vm716, %v684, 768.0
  %v733 = vsel %vm717, %v685, 768.0
  %v734 = vsel %vm718, %v686, 768.0
  %v735 = vsel %vm719, %v687, 768.0
  %v736 = vsel %vm720, %v688, 768.0
  %v737 = vsel %vm721, %v689, 768.0
  %v738 = vsel %vm722, %v690, 768.0
  %v739 = vsel %vm723, %v691, 768.0
  %v740 = vsel %vm724, %v692, 768.0
  %v741 = vsel %vm725, %v693, 768.0
  %v742 = vsel %vm726, %v694, 768.0
  %v743 = vsel %vm727, %v695, 768.0
  %v744 = vsel %vm728, %v696, 768.0
  %v745 = vsel %vm729, %v697, 768.0
  %v746 = vrcp.pop 32.0
  %v747 = vmul.f32 32.0, %v746
  %v748 = vsub.f32 1.0, %v747
  %v749 = vmul.f32 %v746, %v748
  %v750 = vadd.f32 %v746, %v749
  %vm751 = vweird.f32 %v746
  %v752 = vsel %vm751, %v746, %v750
  %v753 = vmul.f32 %v730, %v752
  %v754 = vmul.f32 %v731, %v752
  %v755 = vmul.f32 %v732, %v752
  %v756 = vmul.f32 %v733, %v752
  %v757 = vmul.f32 %v734, %v752
  %v758 = vmul.f32 %v735, %v752
  %v759 = vmul.f32 %v736, %v752
  %v760 = vmul.f32 %v737, %v752
  %v761 = vmul.f32 %v738, %v752
  %v762 = vmul.f32 %v739, %v752
  %v763 = vmul.f32 %v740, %v752
  %v764 = vmul.f32 %v741, %v752
  %v765 = vmul.f32 %v742, %v752
  %v766 = vmul.f32 %v743, %v752
  %v767 = vmul.f32 %v744, %v752
  %v768 = vmul.f32 %v745, %v752
  %vm769 = vweird.f32 %v753
  %vm770 = vweird.f32 %v754
  %vm771 = vweird.f32 %v755
  %vm772 = vweird.f32 %v756
  %vm773 = vweird.f32 %v757
  %vm774 = vweird.f32 %v758
  %vm775 = vweird.f32 %v759
  %vm776 = vweird.f32 %v760
  %vm777 = vweird.f32 %v761
  %vm778 = vweird.f32 %v762
  %vm779 = vweird.f32 %v763
  %vm780 = vweird.f32 %v764
  %vm781 = vweird.f32 %v765
  %vm782 = vweird.f32 %v766
  %vm783 = vweird.f32 %v767
  %vm784 = vweird.f32 %v768
  %vm785 = vmxor %vm769, 1
  %vm786 = vmxor %vm770, 1
  %vm787 = vmxor %vm771, 1
  %vm788 = vmxor %vm772, 1
  %vm789 = vmxor %vm773, 1
  %vm790 = vmxor %vm774, 1
  %vm791 = vmxor %vm775, 1
  %vm792 = vmxor %vm776, 1
  %vm793 = vmxor %vm777, 1
  %vm794 = vmxor %vm778, 1
  %vm795 = vmxor %vm779, 1
  %vm796 = vmxor %vm780, 1
  %vm797 = vmxor %vm781, 1
  %vm798 = vmxor %vm782, 1
  %vm799 = vmxor %vm783, 1
  %vm800 = vmxor %vm784, 1
  %v801 = vsel %vm785, %v753, 1.0
  %v802 = vsel %vm786, %v754, 1.0
  %v803 = vsel %vm787, %v755, 1.0
  %v804 = vsel %vm788, %v756, 1.0
  %v805 = vsel %vm789, %v757, 1.0
  %v806 = vsel %vm790, %v758, 1.0
  %v807 = vsel %vm791, %v759, 1.0
  %v808 = vsel %vm792, %v760, 1.0
  %v809 = vsel %vm793, %v761, 1.0
  %v810 = vsel %vm794, %v762, 1.0
  %v811 = vsel %vm795, %v763, 1.0
  %v812 = vsel %vm796, %v764, 1.0
  %v813 = vsel %vm797, %v765, 1.0
  %v814 = vsel %vm798, %v766, 1.0
  %v815 = vsel %vm799, %v767, 1.0
  %v816 = vsel %vm800, %v768, 1.0
  %v817 = vmin.f32 %v801, %v802
  %v818 = vmin.f32 %v817, %v803
  %v819 = vmin.f32 %v818, %v804
  %820 = vmin.xlane.f32.xlu0 %v819
  %v821 = vpop.xlane.xlu0 %820
  %v822 = vmin.f32 %v805, %v806
  %v823 = vmin.f32 %v822, %v807
  %v824 = vmin.f32 %v823, %v808
  %825 = vmin.xlane.f32.xlu0 %v824
  %v826 = vpop.xlane.xlu0 %825
  %v827 = vmin.f32 %v809, %v810
  %v828 = vmin.f32 %v827, %v811
  %v829 = vmin.f32 %v828, %v812
  %830 = vmin.xlane.f32.xlu0 %v829
  %v831 = vpop.xlane.xlu0 %830
  %v832 = vmin.f32 %v813, %v814
  %v833 = vmin.f32 %v832, %v815
  %v834 = vmin.f32 %v833, %v816
  %835 = vmin.xlane.f32.xlu0 %v834
  %v836 = vpop.xlane.xlu0 %835
  %v837 = vld [vmem:[%s5] sm:$0xff]
  %v838 = vld [vmem:[%s5 + $0x8] sm:$0xff]
  %v839 = vld [vmem:[%s5 + $0x10] sm:$0xff]
  %v840 = vld [vmem:[%s5 + $0x18] sm:$0xff]
  %s841 = scalar_select %p22, 1, 0
  %v842 = vstv %s841
  %vm843 = vcmp.eq.s32.totalorder %v842, 1
  %v844 = vsel %vm843, %v821, %v837
  %v845 = vsel %vm843, %v826, %v838
  %v846 = vsel %vm843, %v831, %v839
  %v847 = vsel %vm843, %v836, %v840
  %v848 = vmin.f32 %v844, %v821
  %v849 = vmin.f32 %v845, %v826
  %v850 = vmin.f32 %v846, %v831
  %v851 = vmin.f32 %v847, %v836
  %v852 = vld [vmem:[%s6] sm:$0xff]
  %v853 = vld [vmem:[%s6 + $0x8] sm:$0xff]
  %v854 = vld [vmem:[%s6 + $0x10] sm:$0xff]
  %v855 = vld [vmem:[%s6 + $0x18] sm:$0xff]
  %v856 = vrcp.pop %v844
  %v857 = vmul.f32 %v844, %v856
  %v858 = vsub.f32 1.0, %v857
  %v859 = vmul.f32 %v856, %v858
  %v860 = vadd.f32 %v856, %v859
  %vm861 = vweird.f32 %v844
  %vm862 = vweird.f32 %v856
  %vm863 = vmor %vm861, %vm862
  %v864 = vsel %vm863, %v856, %v860
  %v865 = vand.u32 2147483647, %v844
  %vm866 = vcmp.eq.f32.partialorder %v865, 8.507059e+37
  %v867 = vand.u32 %v844, 2147483648
  %v868 = vor.u32 1.1754944e-38, %v867
  %v869 = vsel %vm866, %v868, %v864
  %v870 = vmul.f32 %v848, %v869
  %v871 = vrcp.pop %v845
  %v872 = vmul.f32 %v845, %v871
  %v873 = vsub.f32 1.0, %v872
  %v874 = vmul.f32 %v871, %v873
  %v875 = vadd.f32 %v871, %v874
  %vm876 = vweird.f32 %v845
  %vm877 = vweird.f32 %v871
  %vm878 = vmor %vm876, %vm877
  %v879 = vsel %vm878, %v871, %v875
  %v880 = vand.u32 2147483647, %v845
  %vm881 = vcmp.eq.f32.partialorder %v880, 8.507059e+37
  %v882 = vand.u32 %v845, 2147483648
  %v883 = vor.u32 1.1754944e-38, %v882
  %v884 = vsel %vm881, %v883, %v879
  %v885 = vmul.f32 %v849, %v884
  %v886 = vrcp.pop %v846
  %v887 = vmul.f32 %v846, %v886
  %v888 = vsub.f32 1.0, %v887
  %v889 = vmul.f32 %v886, %v888
  %v890 = vadd.f32 %v886, %v889
  %vm891 = vweird.f32 %v846
  %vm892 = vweird.f32 %v886
  %vm893 = vmor %vm891, %vm892
  %v894 = vsel %vm893, %v886, %v890
  %v895 = vand.u32 2147483647, %v846
  %vm896 = vcmp.eq.f32.partialorder %v895, 8.507059e+37
  %v897 = vand.u32 %v846, 2147483648
  %v898 = vor.u32 1.1754944e-38, %v897
  %v899 = vsel %vm896, %v898, %v894
  %v900 = vmul.f32 %v850, %v899
  %v901 = vrcp.pop %v847
  %v902 = vmul.f32 %v847, %v901
  %v903 = vsub.f32 1.0, %v902
  %v904 = vmul.f32 %v901, %v903
  %v905 = vadd.f32 %v901, %v904
  %vm906 = vweird.f32 %v847
  %vm907 = vweird.f32 %v901
  %vm908 = vmor %vm906, %vm907
  %v909 = vsel %vm908, %v901, %v905
  %v910 = vand.u32 2147483647, %v847
  %vm911 = vcmp.eq.f32.partialorder %v910, 8.507059e+37
  %v912 = vand.u32 %v847, 2147483648
  %v913 = vor.u32 1.1754944e-38, %v912
  %v914 = vsel %vm911, %v913, %v909
  %v915 = vmul.f32 %v851, %v914
  %v916 = vmul.f32 %v870, %v870
  %v917 = vmul.f32 %v885, %v885
  %v918 = vmul.f32 %v900, %v900
  %v919 = vmul.f32 %v915, %v915
  %v920 = vmul.f32 %v916, %v916
  %v921 = vmul.f32 %v917, %v917
  %v922 = vmul.f32 %v918, %v918
  %v923 = vmul.f32 %v919, %v919
  %v924 = vmul.f32 %v920, %v920
  %v925 = vmul.f32 %v921, %v921
  %v926 = vmul.f32 %v922, %v922
  %v927 = vmul.f32 %v923, %v923
  %v928 = vmul.f32 %v924, %v924
  %v929 = vmul.f32 %v925, %v925
  %v930 = vmul.f32 %v926, %v926
  %v931 = vmul.f32 %v927, %v927
  %v932 = vmul.f32 %v928, %v928
  %v933 = vmul.f32 %v929, %v929
  %v934 = vmul.f32 %v930, %v930
  %v935 = vmul.f32 %v931, %v931
  %v936 = vmul.f32 %v852, %v932
  %v937 = vmul.f32 %v853, %v933
  %v938 = vmul.f32 %v854, %v934
  %v939 = vmul.f32 %v855, %v935
  %v940 = vsel %vm843, 0.0, %v936
  %v941 = vsel %vm843, 0.0, %v937
  %v942 = vsel %vm843, 0.0, %v938
  %v943 = vsel %vm843, 0.0, %v939
  %945 = vset.pattern.permute.xlu0 0
  %946 = vperm.xlu0 %945, %v848
  %v947 = vpop.permute.xlu0 %946
  %950 = vset.pattern.permute.xlu0 0
  %951 = vperm.xlu0 %950, %v849
  %v952 = vpop.permute.xlu0 %951
  %955 = vset.pattern.permute.xlu0 0
  %956 = vperm.xlu0 %955, %v850
  %v957 = vpop.permute.xlu0 %956
  %960 = vset.pattern.permute.xlu0 0
  %961 = vperm.xlu0 %960, %v851
  %v962 = vpop.permute.xlu0 %961
  %v964 = vrcp.pop %v947
  %v965 = vmul.f32 %v947, %v964
  %v966 = vsub.f32 1.0, %v965
  %v967 = vmul.f32 %v964, %v966
  %v968 = vadd.f32 %v964, %v967
  %vm969 = vweird.f32 %v947
  %vm970 = vweird.f32 %v964
  %vm971 = vmor %vm969, %vm970
  %v972 = vsel %vm971, %v964, %v968
  %v973 = vand.u32 2147483647, %v947
  %vm974 = vcmp.eq.f32.partialorder %v973, 8.507059e+37
  %v975 = vand.u32 %v947, 2147483648
  %v976 = vor.u32 1.1754944e-38, %v975
  %v977 = vsel %vm974, %v976, %v972
  %v978 = vmul.f32 %v801, %v977
  %v979 = vmul.f32 %v802, %v977
  %v980 = vmul.f32 %v803, %v977
  %v981 = vmul.f32 %v804, %v977
  %v982 = vrcp.pop %v952
  %v983 = vmul.f32 %v952, %v982
  %v984 = vsub.f32 1.0, %v983
  %v985 = vmul.f32 %v982, %v984
  %v986 = vadd.f32 %v982, %v985
  %vm987 = vweird.f32 %v952
  %vm988 = vweird.f32 %v982
  %vm989 = vmor %vm987, %vm988
  %v990 = vsel %vm989, %v982, %v986
  %v991 = vand.u32 2147483647, %v952
  %vm992 = vcmp.eq.f32.partialorder %v991, 8.507059e+37
  %v993 = vand.u32 %v952, 2147483648
  %v994 = vor.u32 1.1754944e-38, %v993
  %v995 = vsel %vm992, %v994, %v990
  %v996 = vmul.f32 %v805, %v995
  %v997 = vmul.f32 %v806, %v995
  %v998 = vmul.f32 %v807, %v995
  %v999 = vmul.f32 %v808, %v995
  %v1000 = vrcp.pop %v957
  %v1001 = vmul.f32 %v957, %v1000
  %v1002 = vsub.f32 1.0, %v1001
  %v1003 = vmul.f32 %v1000, %v1002
  %v1004 = vadd.f32 %v1000, %v1003
  %vm1005 = vweird.f32 %v957
  %vm1006 = vweird.f32 %v1000
  %vm1007 = vmor %vm1005, %vm1006
  %v1008 = vsel %vm1007, %v1000, %v1004
  %v1009 = vand.u32 2147483647, %v957
  %vm1010 = vcmp.eq.f32.partialorder %v1009, 8.507059e+37
  %v1011 = vand.u32 %v957, 2147483648
  %v1012 = vor.u32 1.1754944e-38, %v1011
  %v1013 = vsel %vm1010, %v1012, %v1008
  %v1014 = vmul.f32 %v809, %v1013
  %v1015 = vmul.f32 %v810, %v1013
  %v1016 = vmul.f32 %v811, %v1013
  %v1017 = vmul.f32 %v812, %v1013
  %v1018 = vrcp.pop %v962
  %v1019 = vmul.f32 %v962, %v1018
  %v1020 = vsub.f32 1.0, %v1019
  %v1021 = vmul.f32 %v1018, %v1020
  %v1022 = vadd.f32 %v1018, %v1021
  %vm1023 = vweird.f32 %v962
  %vm1024 = vweird.f32 %v1018
  %vm1025 = vmor %vm1023, %vm1024
  %v1026 = vsel %vm1025, %v1018, %v1022
  %v1027 = vand.u32 2147483647, %v962
  %vm1028 = vcmp.eq.f32.partialorder %v1027, 8.507059e+37
  %v1029 = vand.u32 %v962, 2147483648
  %v1030 = vor.u32 1.1754944e-38, %v1029
  %v1031 = vsel %vm1028, %v1030, %v1026
  %v1032 = vmul.f32 %v813, %v1031
  %v1033 = vmul.f32 %v814, %v1031
  %v1034 = vmul.f32 %v815, %v1031
  %v1035 = vmul.f32 %v816, %v1031
  %vm1036 = vweird.f32 %v978
  %vm1037 = vweird.f32 %v979
  %vm1038 = vweird.f32 %v980
  %vm1039 = vweird.f32 %v981
  %vm1040 = vweird.f32 %v996
  %vm1041 = vweird.f32 %v997
  %vm1042 = vweird.f32 %v998
  %vm1043 = vweird.f32 %v999
  %vm1044 = vweird.f32 %v1014
  %vm1045 = vweird.f32 %v1015
  %vm1046 = vweird.f32 %v1016
  %vm1047 = vweird.f32 %v1017
  %vm1048 = vweird.f32 %v1032
  %vm1049 = vweird.f32 %v1033
  %vm1050 = vweird.f32 %v1034
  %vm1051 = vweird.f32 %v1035
  %vm1052 = vmxor %vm1036, 1
  %vm1053 = vmxor %vm1037, 1
  %vm1054 = vmxor %vm1038, 1
  %vm1055 = vmxor %vm1039, 1
  %vm1056 = vmxor %vm1040, 1
  %vm1057 = vmxor %vm1041, 1
  %vm1058 = vmxor %vm1042, 1
  %vm1059 = vmxor %vm1043, 1
  %vm1060 = vmxor %vm1044, 1
  %vm1061 = vmxor %vm1045, 1
  %vm1062 = vmxor %vm1046, 1
  %vm1063 = vmxor %vm1047, 1
  %vm1064 = vmxor %vm1048, 1
  %vm1065 = vmxor %vm1049, 1
  %vm1066 = vmxor %vm1050, 1
  %vm1067 = vmxor %vm1051, 1
  %v1068 = vsel %vm1052, %v978, 1.0
  %v1069 = vsel %vm1053, %v979, 1.0
  %v1070 = vsel %vm1054, %v980, 1.0
  %v1071 = vsel %vm1055, %v981, 1.0
  %v1072 = vsel %vm1056, %v996, 1.0
  %v1073 = vsel %vm1057, %v997, 1.0
  %v1074 = vsel %vm1058, %v998, 1.0
  %v1075 = vsel %vm1059, %v999, 1.0
  %v1076 = vsel %vm1060, %v1014, 1.0
  %v1077 = vsel %vm1061, %v1015, 1.0
  %v1078 = vsel %vm1062, %v1016, 1.0
  %v1079 = vsel %vm1063, %v1017, 1.0
  %v1080 = vsel %vm1064, %v1032, 1.0
  %v1081 = vsel %vm1065, %v1033, 1.0
  %v1082 = vsel %vm1066, %v1034, 1.0
  %v1083 = vsel %vm1067, %v1035, 1.0
  %v1084 = vmul.f32 %v1068, %v1068
  %v1085 = vmul.f32 %v1069, %v1069
  %v1086 = vmul.f32 %v1070, %v1070
  %v1087 = vmul.f32 %v1071, %v1071
  %v1088 = vmul.f32 %v1072, %v1072
  %v1089 = vmul.f32 %v1073, %v1073
  %v1090 = vmul.f32 %v1074, %v1074
  %v1091 = vmul.f32 %v1075, %v1075
  %v1092 = vmul.f32 %v1076, %v1076
  %v1093 = vmul.f32 %v1077, %v1077
  %v1094 = vmul.f32 %v1078, %v1078
  %v1095 = vmul.f32 %v1079, %v1079
  %v1096 = vmul.f32 %v1080, %v1080
  %v1097 = vmul.f32 %v1081, %v1081
  %v1098 = vmul.f32 %v1082, %v1082
  %v1099 = vmul.f32 %v1083, %v1083
  %v1100 = vmul.f32 %v1084, %v1084
  %v1101 = vmul.f32 %v1085, %v1085
  %v1102 = vmul.f32 %v1086, %v1086
  %v1103 = vmul.f32 %v1087, %v1087
  %v1104 = vmul.f32 %v1088, %v1088
  %v1105 = vmul.f32 %v1089, %v1089
  %v1106 = vmul.f32 %v1090, %v1090
  %v1107 = vmul.f32 %v1091, %v1091
  %v1108 = vmul.f32 %v1092, %v1092
  %v1109 = vmul.f32 %v1093, %v1093
  %v1110 = vmul.f32 %v1094, %v1094
  %v1111 = vmul.f32 %v1095, %v1095
  %v1112 = vmul.f32 %v1096, %v1096
  %v1113 = vmul.f32 %v1097, %v1097
  %v1114 = vmul.f32 %v1098, %v1098
  %v1115 = vmul.f32 %v1099, %v1099
  %v1116 = vmul.f32 %v1100, %v1100
  %v1117 = vmul.f32 %v1101, %v1101
  %v1118 = vmul.f32 %v1102, %v1102
  %v1119 = vmul.f32 %v1103, %v1103
  %v1120 = vmul.f32 %v1104, %v1104
  %v1121 = vmul.f32 %v1105, %v1105
  %v1122 = vmul.f32 %v1106, %v1106
  %v1123 = vmul.f32 %v1107, %v1107
  %v1124 = vmul.f32 %v1108, %v1108
  %v1125 = vmul.f32 %v1109, %v1109
  %v1126 = vmul.f32 %v1110, %v1110
  %v1127 = vmul.f32 %v1111, %v1111
  %v1128 = vmul.f32 %v1112, %v1112
  %v1129 = vmul.f32 %v1113, %v1113
  %v1130 = vmul.f32 %v1114, %v1114
  %v1131 = vmul.f32 %v1115, %v1115
  %v1132 = vmul.f32 %v1116, %v1116
  %v1133 = vmul.f32 %v1117, %v1117
  %v1134 = vmul.f32 %v1118, %v1118
  %v1135 = vmul.f32 %v1119, %v1119
  %v1136 = vmul.f32 %v1120, %v1120
  %v1137 = vmul.f32 %v1121, %v1121
  %v1138 = vmul.f32 %v1122, %v1122
  %v1139 = vmul.f32 %v1123, %v1123
  %v1140 = vmul.f32 %v1124, %v1124
  %v1141 = vmul.f32 %v1125, %v1125
  %v1142 = vmul.f32 %v1126, %v1126
  %v1143 = vmul.f32 %v1127, %v1127
  %v1144 = vmul.f32 %v1128, %v1128
  %v1145 = vmul.f32 %v1129, %v1129
  %v1146 = vmul.f32 %v1130, %v1130
  %v1147 = vmul.f32 %v1131, %v1131
  %v1148 = vmul.f32 %v1132, %v1132
  %v1149 = vmul.f32 %v1133, %v1133
  %v1150 = vmul.f32 %v1134, %v1134
  %v1151 = vmul.f32 %v1135, %v1135
  %v1152 = vmul.f32 %v1136, %v1136
  %v1153 = vmul.f32 %v1137, %v1137
  %v1154 = vmul.f32 %v1138, %v1138
  %v1155 = vmul.f32 %v1139, %v1139
  %v1156 = vmul.f32 %v1140, %v1140
  %v1157 = vmul.f32 %v1141, %v1141
  %v1158 = vmul.f32 %v1142, %v1142
  %v1159 = vmul.f32 %v1143, %v1143
  %v1160 = vmul.f32 %v1144, %v1144
  %v1161 = vmul.f32 %v1145, %v1145
  %v1162 = vmul.f32 %v1146, %v1146
  %v1163 = vmul.f32 %v1147, %v1147
  %v1164 = vrcp.pop %v1148
  %v1165 = vmul.f32 %v1148, %v1164
  %v1166 = vsub.f32 1.0, %v1165
  %v1167 = vmul.f32 %v1164, %v1166
  %v1168 = vadd.f32 %v1164, %v1167
  %vm1169 = vweird.f32 %v1148
  %vm1170 = vweird.f32 %v1164
  %vm1171 = vmor %vm1169, %vm1170
  %v1172 = vsel %vm1171, %v1164, %v1168
  %v1173 = vand.u32 2147483647, %v1148
  %vm1174 = vcmp.eq.f32.partialorder %v1173, 8.507059e+37
  %v1175 = vand.u32 %v1148, 2147483648
  %v1176 = vor.u32 1.1754944e-38, %v1175
  %v1177 = vsel %vm1174, %v1176, %v1172
  %v1178 = vmul.f32 1.0, %v1177
  %v1179 = vrcp.pop %v1149
  %v1180 = vmul.f32 %v1149, %v1179
  %v1181 = vsub.f32 1.0, %v1180
  %v1182 = vmul.f32 %v1179, %v1181
  %v1183 = vadd.f32 %v1179, %v1182
  %vm1184 = vweird.f32 %v1149
  %vm1185 = vweird.f32 %v1179
  %vm1186 = vmor %vm1184, %vm1185
  %v1187 = vsel %vm1186, %v1179, %v1183
  %v1188 = vand.u32 2147483647, %v1149
  %vm1189 = vcmp.eq.f32.partialorder %v1188, 8.507059e+37
  %v1190 = vand.u32 %v1149, 2147483648
  %v1191 = vor.u32 1.1754944e-38, %v1190
  %v1192 = vsel %vm1189, %v1191, %v1187
  %v1193 = vmul.f32 1.0, %v1192
  %v1194 = vrcp.pop %v1150
  %v1195 = vmul.f32 %v1150, %v1194
  %v1196 = vsub.f32 1.0, %v1195
  %v1197 = vmul.f32 %v1194, %v1196
  %v1198 = vadd.f32 %v1194, %v1197
  %vm1199 = vweird.f32 %v1150
  %vm1200 = vweird.f32 %v1194
  %vm1201 = vmor %vm1199, %vm1200
  %v1202 = vsel %vm1201, %v1194, %v1198
  %v1203 = vand.u32 2147483647, %v1150
  %vm1204 = vcmp.eq.f32.partialorder %v1203, 8.507059e+37
  %v1205 = vand.u32 %v1150, 2147483648
  %v1206 = vor.u32 1.1754944e-38, %v1205
  %v1207 = vsel %vm1204, %v1206, %v1202
  %v1208 = vmul.f32 1.0, %v1207
  %v1209 = vrcp.pop %v1151
  %v1210 = vmul.f32 %v1151, %v1209
  %v1211 = vsub.f32 1.0, %v1210
  %v1212 = vmul.f32 %v1209, %v1211
  %v1213 = vadd.f32 %v1209, %v1212
  %vm1214 = vweird.f32 %v1151
  %vm1215 = vweird.f32 %v1209
  %vm1216 = vmor %vm1214, %vm1215
  %v1217 = vsel %vm1216, %v1209, %v1213
  %v1218 = vand.u32 2147483647, %v1151
  %vm1219 = vcmp.eq.f32.partialorder %v1218, 8.507059e+37
  %v1220 = vand.u32 %v1151, 2147483648
  %v1221 = vor.u32 1.1754944e-38, %v1220
  %v1222 = vsel %vm1219, %v1221, %v1217
  %v1223 = vmul.f32 1.0, %v1222
  %v1224 = vrcp.pop %v1152
  %v1225 = vmul.f32 %v1152, %v1224
  %v1226 = vsub.f32 1.0, %v1225
  %v1227 = vmul.f32 %v1224, %v1226
  %v1228 = vadd.f32 %v1224, %v1227
  %vm1229 = vweird.f32 %v1152
  %vm1230 = vweird.f32 %v1224
  %vm1231 = vmor %vm1229, %vm1230
  %v1232 = vsel %vm1231, %v1224, %v1228
  %v1233 = vand.u32 2147483647, %v1152
  %vm1234 = vcmp.eq.f32.partialorder %v1233, 8.507059e+37
  %v1235 = vand.u32 %v1152, 2147483648
  %v1236 = vor.u32 1.1754944e-38, %v1235
  %v1237 = vsel %vm1234, %v1236, %v1232
  %v1238 = vmul.f32 1.0, %v1237
  %v1239 = vrcp.pop %v1153
  %v1240 = vmul.f32 %v1153, %v1239
  %v1241 = vsub.f32 1.0, %v1240
  %v1242 = vmul.f32 %v1239, %v1241
  %v1243 = vadd.f32 %v1239, %v1242
  %vm1244 = vweird.f32 %v1153
  %vm1245 = vweird.f32 %v1239
  %vm1246 = vmor %vm1244, %vm1245
  %v1247 = vsel %vm1246, %v1239, %v1243
  %v1248 = vand.u32 2147483647, %v1153
  %vm1249 = vcmp.eq.f32.partialorder %v1248, 8.507059e+37
  %v1250 = vand.u32 %v1153, 2147483648
  %v1251 = vor.u32 1.1754944e-38, %v1250
  %v1252 = vsel %vm1249, %v1251, %v1247
  %v1253 = vmul.f32 1.0, %v1252
  %v1254 = vrcp.pop %v1154
  %v1255 = vmul.f32 %v1154, %v1254
  %v1256 = vsub.f32 1.0, %v1255
  %v1257 = vmul.f32 %v1254, %v1256
  %v1258 = vadd.f32 %v1254, %v1257
  %vm1259 = vweird.f32 %v1154
  %vm1260 = vweird.f32 %v1254
  %vm1261 = vmor %vm1259, %vm1260
  %v1262 = vsel %vm1261, %v1254, %v1258
  %v1263 = vand.u32 2147483647, %v1154
  %vm1264 = vcmp.eq.f32.partialorder %v1263, 8.507059e+37
  %v1265 = vand.u32 %v1154, 2147483648
  %v1266 = vor.u32 1.1754944e-38, %v1265
  %v1267 = vsel %vm1264, %v1266, %v1262
  %v1268 = vmul.f32 1.0, %v1267
  %v1269 = vrcp.pop %v1155
  %v1270 = vmul.f32 %v1155, %v1269
  %v1271 = vsub.f32 1.0, %v1270
  %v1272 = vmul.f32 %v1269, %v1271
  %v1273 = vadd.f32 %v1269, %v1272
  %vm1274 = vweird.f32 %v1155
  %vm1275 = vweird.f32 %v1269
  %vm1276 = vmor %vm1274, %vm1275
  %v1277 = vsel %vm1276, %v1269, %v1273
  %v1278 = vand.u32 2147483647, %v1155
  %vm1279 = vcmp.eq.f32.partialorder %v1278, 8.507059e+37
  %v1280 = vand.u32 %v1155, 2147483648
  %v1281 = vor.u32 1.1754944e-38, %v1280
  %v1282 = vsel %vm1279, %v1281, %v1277
  %v1283 = vmul.f32 1.0, %v1282
  %v1284 = vrcp.pop %v1156
  %v1285 = vmul.f32 %v1156, %v1284
  %v1286 = vsub.f32 1.0, %v1285
  %v1287 = vmul.f32 %v1284, %v1286
  %v1288 = vadd.f32 %v1284, %v1287
  %vm1289 = vweird.f32 %v1156
  %vm1290 = vweird.f32 %v1284
  %vm1291 = vmor %vm1289, %vm1290
  %v1292 = vsel %vm1291, %v1284, %v1288
  %v1293 = vand.u32 2147483647, %v1156
  %vm1294 = vcmp.eq.f32.partialorder %v1293, 8.507059e+37
  %v1295 = vand.u32 %v1156, 2147483648
  %v1296 = vor.u32 1.1754944e-38, %v1295
  %v1297 = vsel %vm1294, %v1296, %v1292
  %v1298 = vmul.f32 1.0, %v1297
  %v1299 = vrcp.pop %v1157
  %v1300 = vmul.f32 %v1157, %v1299
  %v1301 = vsub.f32 1.0, %v1300
  %v1302 = vmul.f32 %v1299, %v1301
  %v1303 = vadd.f32 %v1299, %v1302
  %vm1304 = vweird.f32 %v1157
  %vm1305 = vweird.f32 %v1299
  %vm1306 = vmor %vm1304, %vm1305
  %v1307 = vsel %vm1306, %v1299, %v1303
  %v1308 = vand.u32 2147483647, %v1157
  %vm1309 = vcmp.eq.f32.partialorder %v1308, 8.507059e+37
  %v1310 = vand.u32 %v1157, 2147483648
  %v1311 = vor.u32 1.1754944e-38, %v1310
  %v1312 = vsel %vm1309, %v1311, %v1307
  %v1313 = vmul.f32 1.0, %v1312
  %v1314 = vrcp.pop %v1158
  %v1315 = vmul.f32 %v1158, %v1314
  %v1316 = vsub.f32 1.0, %v1315
  %v1317 = vmul.f32 %v1314, %v1316
  %v1318 = vadd.f32 %v1314, %v1317
  %vm1319 = vweird.f32 %v1158
  %vm1320 = vweird.f32 %v1314
  %vm1321 = vmor %vm1319, %vm1320
  %v1322 = vsel %vm1321, %v1314, %v1318
  %v1323 = vand.u32 2147483647, %v1158
  %vm1324 = vcmp.eq.f32.partialorder %v1323, 8.507059e+37
  %v1325 = vand.u32 %v1158, 2147483648
  %v1326 = vor.u32 1.1754944e-38, %v1325
  %v1327 = vsel %vm1324, %v1326, %v1322
  %v1328 = vmul.f32 1.0, %v1327
  %v1329 = vrcp.pop %v1159
  %v1330 = vmul.f32 %v1159, %v1329
  %v1331 = vsub.f32 1.0, %v1330
  %v1332 = vmul.f32 %v1329, %v1331
  %v1333 = vadd.f32 %v1329, %v1332
  %vm1334 = vweird.f32 %v1159
  %vm1335 = vweird.f32 %v1329
  %vm1336 = vmor %vm1334, %vm1335
  %v1337 = vsel %vm1336, %v1329, %v1333
  %v1338 = vand.u32 2147483647, %v1159
  %vm1339 = vcmp.eq.f32.partialorder %v1338, 8.507059e+37
  %v1340 = vand.u32 %v1159, 2147483648
  %v1341 = vor.u32 1.1754944e-38, %v1340
  %v1342 = vsel %vm1339, %v1341, %v1337
  %v1343 = vmul.f32 1.0, %v1342
  %v1344 = vrcp.pop %v1160
  %v1345 = vmul.f32 %v1160, %v1344
  %v1346 = vsub.f32 1.0, %v1345
  %v1347 = vmul.f32 %v1344, %v1346
  %v1348 = vadd.f32 %v1344, %v1347
  %vm1349 = vweird.f32 %v1160
  %vm1350 = vweird.f32 %v1344
  %vm1351 = vmor %vm1349, %vm1350
  %v1352 = vsel %vm1351, %v1344, %v1348
  %v1353 = vand.u32 2147483647, %v1160
  %vm1354 = vcmp.eq.f32.partialorder %v1353, 8.507059e+37
  %v1355 = vand.u32 %v1160, 2147483648
  %v1356 = vor.u32 1.1754944e-38, %v1355
  %v1357 = vsel %vm1354, %v1356, %v1352
  %v1358 = vmul.f32 1.0, %v1357
  %v1359 = vrcp.pop %v1161
  %v1360 = vmul.f32 %v1161, %v1359
  %v1361 = vsub.f32 1.0, %v1360
  %v1362 = vmul.f32 %v1359, %v1361
  %v1363 = vadd.f32 %v1359, %v1362
  %vm1364 = vweird.f32 %v1161
  %vm1365 = vweird.f32 %v1359
  %vm1366 = vmor %vm1364, %vm1365
  %v1367 = vsel %vm1366, %v1359, %v1363
  %v1368 = vand.u32 2147483647, %v1161
  %vm1369 = vcmp.eq.f32.partialorder %v1368, 8.507059e+37
  %v1370 = vand.u32 %v1161, 2147483648
  %v1371 = vor.u32 1.1754944e-38, %v1370
  %v1372 = vsel %vm1369, %v1371, %v1367
  %v1373 = vmul.f32 1.0, %v1372
  %v1374 = vrcp.pop %v1162
  %v1375 = vmul.f32 %v1162, %v1374
  %v1376 = vsub.f32 1.0, %v1375
  %v1377 = vmul.f32 %v1374, %v1376
  %v1378 = vadd.f32 %v1374, %v1377
  %vm1379 = vweird.f32 %v1162
  %vm1380 = vweird.f32 %v1374
  %vm1381 = vmor %vm1379, %vm1380
  %v1382 = vsel %vm1381, %v1374, %v1378
  %v1383 = vand.u32 2147483647, %v1162
  %vm1384 = vcmp.eq.f32.partialorder %v1383, 8.507059e+37
  %v1385 = vand.u32 %v1162, 2147483648
  %v1386 = vor.u32 1.1754944e-38, %v1385
  %v1387 = vsel %vm1384, %v1386, %v1382
  %v1388 = vmul.f32 1.0, %v1387
  %v1389 = vrcp.pop %v1163
  %v1390 = vmul.f32 %v1163, %v1389
  %v1391 = vsub.f32 1.0, %v1390
  %v1392 = vmul.f32 %v1389, %v1391
  %v1393 = vadd.f32 %v1389, %v1392
  %vm1394 = vweird.f32 %v1163
  %vm1395 = vweird.f32 %v1389
  %vm1396 = vmor %vm1394, %vm1395
  %v1397 = vsel %vm1396, %v1389, %v1393
  %v1398 = vand.u32 2147483647, %v1163
  %vm1399 = vcmp.eq.f32.partialorder %v1398, 8.507059e+37
  %v1400 = vand.u32 %v1163, 2147483648
  %v1401 = vor.u32 1.1754944e-38, %v1400
  %v1402 = vsel %vm1399, %v1401, %v1397
  %v1403 = vmul.f32 1.0, %v1402
  %vm1404 = vweird.f32 %v1178
  %vm1405 = vweird.f32 %v1193
  %vm1406 = vweird.f32 %v1208
  %vm1407 = vweird.f32 %v1223
  %vm1408 = vweird.f32 %v1238
  %vm1409 = vweird.f32 %v1253
  %vm1410 = vweird.f32 %v1268
  %vm1411 = vweird.f32 %v1283
  %vm1412 = vweird.f32 %v1298
  %vm1413 = vweird.f32 %v1313
  %vm1414 = vweird.f32 %v1328
  %vm1415 = vweird.f32 %v1343
  %vm1416 = vweird.f32 %v1358
  %vm1417 = vweird.f32 %v1373
  %vm1418 = vweird.f32 %v1388
  %vm1419 = vweird.f32 %v1403
  %vm1420 = vmxor %vm1404, 1
  %vm1421 = vmxor %vm1405, 1
  %vm1422 = vmxor %vm1406, 1
  %vm1423 = vmxor %vm1407, 1
  %vm1424 = vmxor %vm1408, 1
  %vm1425 = vmxor %vm1409, 1
  %vm1426 = vmxor %vm1410, 1
  %vm1427 = vmxor %vm1411, 1
  %vm1428 = vmxor %vm1412, 1
  %vm1429 = vmxor %vm1413, 1
  %vm1430 = vmxor %vm1414, 1
  %vm1431 = vmxor %vm1415, 1
  %vm1432 = vmxor %vm1416, 1
  %vm1433 = vmxor %vm1417, 1
  %vm1434 = vmxor %vm1418, 1
  %vm1435 = vmxor %vm1419, 1
  %v1436 = vsel %vm1420, %v1178, 1.0
  %v1437 = vsel %vm1421, %v1193, 1.0
  %v1438 = vsel %vm1422, %v1208, 1.0
  %v1439 = vsel %vm1423, %v1223, 1.0
  %v1440 = vsel %vm1424, %v1238, 1.0
  %v1441 = vsel %vm1425, %v1253, 1.0
  %v1442 = vsel %vm1426, %v1268, 1.0
  %v1443 = vsel %vm1427, %v1283, 1.0
  %v1444 = vsel %vm1428, %v1298, 1.0
  %v1445 = vsel %vm1429, %v1313, 1.0
  %v1446 = vsel %vm1430, %v1328, 1.0
  %v1447 = vsel %vm1431, %v1343, 1.0
  %v1448 = vsel %vm1432, %v1358, 1.0
  %v1449 = vsel %vm1433, %v1373, 1.0
  %v1450 = vsel %vm1434, %v1388, 1.0
  %v1451 = vsel %vm1435, %v1403, 1.0
  %v1452 = vadd.f32 %v1436, %v1437
  %v1453 = vadd.f32 %v1452, %v1438
  %v1454 = vadd.f32 %v1453, %v1439
  %1455 = vadd.xlane.f32.xlu0 %v1454
  %v1456 = vpop.xlane.xlu0 %1455
  %v1457 = vadd.f32 %v1440, %v1441
  %v1458 = vadd.f32 %v1457, %v1442
  %v1459 = vadd.f32 %v1458, %v1443
  %1460 = vadd.xlane.f32.xlu0 %v1459
  %v1461 = vpop.xlane.xlu0 %1460
  %v1462 = vadd.f32 %v1444, %v1445
  %v1463 = vadd.f32 %v1462, %v1446
  %v1464 = vadd.f32 %v1463, %v1447
  %1465 = vadd.xlane.f32.xlu0 %v1464
  %v1466 = vpop.xlane.xlu0 %1465
  %v1467 = vadd.f32 %v1448, %v1449
  %v1468 = vadd.f32 %v1467, %v1450
  %v1469 = vadd.f32 %v1468, %v1451
  %1470 = vadd.xlane.f32.xlu0 %v1469
  %v1471 = vpop.xlane.xlu0 %1470
  %v1472 = vadd.f32 %v940, %v1456
  %v1473 = vadd.f32 %v941, %v1461
  %v1474 = vadd.f32 %v942, %v1466
  %v1475 = vadd.f32 %v943, %v1471
  %vm1476 = vcmask 7168
  %1477 = vst.msk [vmem:[%s6] sm:$0xff] %vm1476, %v1472
  %1478 = vst.msk [vmem:[%s6 + $0x8] sm:$0xff] %vm1476, %v1473
  %1479 = vst.msk [vmem:[%s6 + $0x10] sm:$0xff] %vm1476, %v1474
  %1480 = vst.msk [vmem:[%s6 + $0x18] sm:$0xff] %vm1476, %v1475
  %1481 = vst.msk [vmem:[%s5] sm:$0xff] %vm1476, %v848
  %1482 = vst.msk [vmem:[%s5 + $0x8] sm:$0xff] %vm1476, %v849
  %1483 = vst.msk [vmem:[%s5 + $0x10] sm:$0xff] %vm1476, %v850
  %1484 = vst.msk [vmem:[%s5 + $0x18] sm:$0xff] %vm1476, %v851
  // Predicated region
  $region26: #{gpt_forward.10} parent=0 // pred_check
    _
  $region27: #{gpt_forward.10} parent=0 // pred_check_branch
    %1486 = sbr.rel (0) target = $region29
  $region28: #{gpt_forward.10} parent=0 // pred_region
    _
  $region29: #{gpt_forward.10} parent=0 // pred_fallthru
    _
  // Predicated region
  $region30: #{gpt_forward.10} parent=0 // pred_check
    _
  $region31: #{gpt_forward.10} parent=0 // pred_check_branch
    %1488 = sbr.rel (0) target = $region33
  $region32: #{gpt_forward.10} parent=0 // pred_region
    _
  $region33: #{gpt_forward.10} parent=0 // pred_fallthru
    _
  // Predicated region
  $region34: #{gpt_forward.10} parent=0 // pred_check
    _
  $region35: #{gpt_forward.10} parent=0 // pred_check_branch
    %1490 = sbr.rel (0) target = $region37
  $region36: #{gpt_forward.10} parent=0 // pred_region
    _
  $region37: #{gpt_forward.10} parent=0 // pred_fallthru
    _
  // Predicated region
  $region38: #{gpt_forward.10} parent=0 // pred_check
    _
  $region39: #{gpt_forward.10} parent=0 // pred_check_branch
    %1492 = sbr.rel (0) target = $region41
  $region40: #{gpt_forward.10} parent=0 // pred_region
    _
  $region41: #{gpt_forward.10} parent=0 // pred_fallthru
    _

// kernel: gpt_forward.6
$region0: #{gpt_forward.6}
  #allocation0 [shape = 'u32[]', space=smem, size = 0x4, offset = 0x4, fixed_abs, tag = 'smem constant byte address 0x4 - core index']
  #allocation1 [shape = 'u32[72,128]{1,0:T(1,128)}', space=vmem, size = 0x9000, scoped, tag = 'internal scratch']
  %s0 = inlined_call_operand.vmem [shape: f32[4,8,32], index: 0, kind: input, shape index: {}, may-alias: {0,7}]
  %s1 = inlined_call_operand.vmem [shape: f32[1,32], index: 1, kind: input, shape index: {}]
  %s2 = inlined_call_operand.vmem [shape: f32[1,32], index: 2, kind: input, shape index: {}]
  %s3 = inlined_call_operand.vmem [shape: bf16[32,96], index: 3, kind: input, shape index: {}]
  %s4 = inlined_call_operand.vmem [shape: f32[1,96], index: 4, kind: input, shape index: {}]
  %s5 = inlined_call_operand.vmem [shape: bf16[32,32], index: 5, kind: input, shape index: {}]
  %s6 = inlined_call_operand.vmem [shape: f32[1,32], index: 6, kind: input, shape index: {}]
  %s7 = inlined_call_operand.vmem [shape: f32[4,8,32], index: 7, kind: output, shape index: {}, may-alias: {0,7}]
  %s8 = sld [smem:[#allocation0]]
  $region61: #{gpt_forward.6} parent=0
    _
  %s10 = ssub.s32 1, %s8
  %s11 = scalar_select 0, %s10, %s8
  loop: start=0, step=1, limit=4
  $region2: #{gpt_forward.6} parent=0 // loop_pre_header
    _
  $region3: #{gpt_forward.6} parent=0 // loop_header
    %s13 = sphi 0, %s17
    %p14 = scmp.ge.s32.totalorder %s13, 4
    %s23 = sphi 0, %s25
    %s26 = sphi 0, %s23
    %s27 = sphi 0, %s26
    %s43 = sphi 0, %s27
    %s47 = sphi 0, %s47
    %s49 = sphi 0, %s47
    %s50 = sphi 0, %s49
    %s64 = sphi 0, %s50
    %s68 = sphi 0, %s68
    %s70 = sphi 0, %s68
    %s71 = sphi 0, %s70
    %s85 = sphi 0, %s71
    %s89 = sphi 0, %s89
    %s91 = sphi 0, %s89
    %s92 = sphi 0, %s91
    %s106 = sphi 0, %s92
    %s110 = sphi 0, %s110
    %s112 = sphi 0, %s110
    %s113 = sphi 0, %s112
    %s127 = sphi 0, %s113
    %s131 = sphi 0, %s131
    %s133 = sphi 0, %s131
    %s134 = sphi 0, %s133
    %s148 = sphi 0, %s134
    %s152 = sphi 0, %s152
    %s154 = sphi 0, %s152
    %s155 = sphi 0, %s154
    %s169 = sphi 0, %s155
    %s175 = sphi 0, %s177
    %s178 = sphi 0, %s175
    %s179 = sphi 0, %s178
    %s195 = sphi 0, %s179
  $region4: #{gpt_forward.6} parent=0 // loop_header_branch
    %16 = sbr.rel (%p14) target = $region8
  $region5: #{gpt_forward.6} parent=0 // loop_body
    %s18 = ssub.s32 %s13, 1
    %s19 = ssub.s32 %s13, 2
    %s20 = sadd.s32 %s13, 1
    %s21 = ssub.s32 %s13, %s20
    %p22 = scmp.eq.s32.totalorder %s21, 0
    %s24 = sadd.s32 %s23, 1
    %s25 = scalar_select %p22, %s23, %s24
    %p28 = pneg %p22
    %p29 = scmp.eq.s32.totalorder %s13, 1
    %p30 = por %p28, %p29
    %p31 = scmp.ne.s32.totalorder %s23, %s26
    %p32 = scmp.eq.s32.totalorder %s13, 0
    %p33 = por %p31, %p32
    %p34 = scmp.ne.s32.totalorder %s23, %s26
    %p35 = scmp.eq.s32.totalorder %s18, 1
    %p36 = por %p34, %p35
    %p37 = scmp.ne.s32.totalorder %s26, %s27
    %p38 = scmp.eq.s32.totalorder %s18, 0
    %p39 = por %p37, %p38
    %p40 = scmp.ne.s32.totalorder %s26, %s27
    %p41 = scmp.eq.s32.totalorder %s19, 1
    %p42 = por %p40, %p41
    %p44 = scmp.ne.s32.totalorder %s27, %s43
    %p45 = scmp.eq.s32.totalorder %s19, 0
    %p46 = por %p44, %p45
    %s48 = sadd.s32 %s47, 1
    %p51 = scmp.eq.s32.totalorder %s13, 1
    %p52 = scmp.ne.s32.totalorder %s47, %s49
    %p53 = scmp.eq.s32.totalorder %s13, 0
    %p54 = por %p52, %p53
    %p55 = scmp.ne.s32.totalorder %s47, %s49
    %p56 = scmp.eq.s32.totalorder %s18, 1
    %p57 = por %p55, %p56
    %p58 = scmp.ne.s32.totalorder %s49, %s50
    %p59 = scmp.eq.s32.totalorder %s18, 0
    %p60 = por %p58, %p59
    %p61 = scmp.ne.s32.totalorder %s49, %s50
    %p62 = scmp.eq.s32.totalorder %s19, 1
    %p63 = por %p61, %p62
    %p65 = scmp.ne.s32.totalorder %s50, %s64
    %p66 = scmp.eq.s32.totalorder %s19, 0
    %p67 = por %p65, %p66
    %s69 = sadd.s32 %s68, 1
    %p72 = scmp.eq.s32.totalorder %s13, 1
    %p73 = scmp.ne.s32.totalorder %s68, %s70
    %p74 = scmp.eq.s32.totalorder %s13, 0
    %p75 = por %p73, %p74
    %p76 = scmp.ne.s32.totalorder %s68, %s70
    %p77 = scmp.eq.s32.totalorder %s18, 1
    %p78 = por %p76, %p77
    %p79 = scmp.ne.s32.totalorder %s70, %s71
    %p80 = scmp.eq.s32.totalorder %s18, 0
    %p81 = por %p79, %p80
    %p82 = scmp.ne.s32.totalorder %s70, %s71
    %p83 = scmp.eq.s32.totalorder %s19, 1
    %p84 = por %p82, %p83
    %p86 = scmp.ne.s32.totalorder %s71, %s85
    %p87 = scmp.eq.s32.totalorder %s19, 0
    %p88 = por %p86, %p87
    %s90 = sadd.s32 %s89, 1
    %p93 = scmp.eq.s32.totalorder %s13, 1
    %p94 = scmp.ne.s32.totalorder %s89, %s91
    %p95 = scmp.eq.s32.totalorder %s13, 0
    %p96 = por %p94, %p95
    %p97 = scmp.ne.s32.totalorder %s89, %s91
    %p98 = scmp.eq.s32.totalorder %s18, 1
    %p99 = por %p97, %p98
    %p100 = scmp.ne.s32.totalorder %s91, %s92
    %p101 = scmp.eq.s32.totalorder %s18, 0
    %p102 = por %p100, %p101
    %p103 = scmp.ne.s32.totalorder %s91, %s92
    %p104 = scmp.eq.s32.totalorder %s19, 1
    %p105 = por %p103, %p104
    %p107 = scmp.ne.s32.totalorder %s92, %s106
    %p108 = scmp.eq.s32.totalorder %s19, 0
    %p109 = por %p107, %p108
    %s111 = sadd.s32 %s110, 1
    %p114 = scmp.eq.s32.totalorder %s13, 1
    %p115 = scmp.ne.s32.totalorder %s110, %s112
    %p116 = scmp.eq.s32.totalorder %s13, 0
    %p117 = por %p115, %p116
    %p118 = scmp.ne.s32.totalorder %s110, %s112
    %p119 = scmp.eq.s32.totalorder %s18, 1
    %p120 = por %p118, %p119
    %p121 = scmp.ne.s32.totalorder %s112, %s113
    %p122 = scmp.eq.s32.totalorder %s18, 0
    %p123 = por %p121, %p122
    %p124 = scmp.ne.s32.totalorder %s112, %s113
    %p125 = scmp.eq.s32.totalorder %s19, 1
    %p126 = por %p124, %p125
    %p128 = scmp.ne.s32.totalorder %s113, %s127
    %p129 = scmp.eq.s32.totalorder %s19, 0
    %p130 = por %p128, %p129
    %s132 = sadd.s32 %s131, 1
    %p135 = scmp.eq.s32.totalorder %s13, 1
    %p136 = scmp.ne.s32.totalorder %s131, %s133
    %p137 = scmp.eq.s32.totalorder %s13, 0
    %p138 = por %p136, %p137
    %p139 = scmp.ne.s32.totalorder %s131, %s133
    %p140 = scmp.eq.s32.totalorder %s18, 1
    %p141 = por %p139, %p140
    %p142 = scmp.ne.s32.totalorder %s133, %s134
    %p143 = scmp.eq.s32.totalorder %s18, 0
    %p144 = por %p142, %p143
    %p145 = scmp.ne.s32.totalorder %s133, %s134
    %p146 = scmp.eq.s32.totalorder %s19, 1
    %p147 = por %p145, %p146
    %p149 = scmp.ne.s32.totalorder %s134, %s148
    %p150 = scmp.eq.s32.totalorder %s19, 0
    %p151 = por %p149, %p150
    %s153 = sadd.s32 %s152, 1
    %p156 = scmp.eq.s32.totalorder %s13, 1
    %p157 = scmp.ne.s32.totalorder %s152, %s154
    %p158 = scmp.eq.s32.totalorder %s13, 0
    %p159 = por %p157, %p158
    %p160 = scmp.ne.s32.totalorder %s152, %s154
    %p161 = scmp.eq.s32.totalorder %s18, 1
    %p162 = por %p160, %p161
    %p163 = scmp.ne.s32.totalorder %s154, %s155
    %p164 = scmp.eq.s32.totalorder %s18, 0
    %p165 = por %p163, %p164
    %p166 = scmp.ne.s32.totalorder %s154, %s155
    %p167 = scmp.eq.s32.totalorder %s19, 1
    %p168 = por %p166, %p167
    %p170 = scmp.ne.s32.totalorder %s155, %s169
    %p171 = scmp.eq.s32.totalorder %s19, 0
    %p172 = por %p170, %p171
    %s173 = ssub.s32 %s13, %s20
    %p174 = scmp.eq.s32.totalorder %s173, 0
    %s176 = sadd.s32 %s175, 1
    %s177 = scalar_select %p174, %s175, %s176
    %p180 = pneg %p174
    %p181 = scmp.eq.s32.totalorder %s13, 1
    %p182 = por %p180, %p181
    %p183 = scmp.ne.s32.totalorder %s175, %s178
    %p184 = scmp.eq.s32.totalorder %s13, 0
    %p185 = por %p183, %p184
    %p186 = scmp.ne.s32.totalorder %s175, %s178
    %p187 = scmp.eq.s32.totalorder %s18, 1
    %p188 = por %p186, %p187
    %p189 = scmp.ne.s32.totalorder %s178, %s179
    %p190 = scmp.eq.s32.totalorder %s18, 0
    %p191 = por %p189, %p190
    %p192 = scmp.ne.s32.totalorder %s178, %s179
    %p193 = scmp.eq.s32.totalorder %s19, 1
    %p194 = por %p192, %p193
    %p196 = scmp.ne.s32.totalorder %s179, %s195
    %p197 = scmp.eq.s32.totalorder %s19, 0
    %p198 = por %p196, %p197
    %p199 = scmp.le.s32.totalorder 1, %s13
    %p200 = scmp.lt.s32.totalorder %s13, 3
    %p201 = pnand %p199, %p200
    %p202 = pneg %p201
    // Predicated region
    $region9: #{gpt_forward.6} parent=5 // pred_check
      _
    $region10: #{gpt_forward.6} parent=5 // pred_check_branch
      %204 = sbr.rel (%p201) target = $region12
    $region11: #{gpt_forward.6} parent=5 // pred_region
      %s205 = ssub.s32 %s13, 1
      // Predicated region
      $region13: #{gpt_forward.6} parent=11 // pred_check
        %p206 = pneg %p60
      $region14: #{gpt_forward.6} parent=11 // pred_check_branch
        %208 = sbr.rel (%p206) target = $region16
      $region15: #{gpt_forward.6} parent=11 // pred_region
        _
      $region16: #{gpt_forward.6} parent=11 // pred_fallthru
        _
      // Predicated region
      $region17: #{gpt_forward.6} parent=11 // pred_check
        %p209 = pneg %p81
      $region18: #{gpt_forward.6} parent=11 // pred_check_branch
        %211 = sbr.rel (%p209) target = $region20
      $region19: #{gpt_forward.6} parent=11 // pred_region
        _
      $region20: #{gpt_forward.6} parent=11 // pred_fallthru
        _
      // Predicated region
      $region21: #{gpt_forward.6} parent=11 // pred_check
        %p212 = pneg %p102
      $region22: #{gpt_forward.6} parent=11 // pred_check_branch
        %214 = sbr.rel (%p212) target = $region24
      $region23: #{gpt_forward.6} parent=11 // pred_region
        _
      $region24: #{gpt_forward.6} parent=11 // pred_fallthru
        _
      // Predicated region
      $region25: #{gpt_forward.6} parent=11 // pred_check
        %p215 = pneg %p123
      $region26: #{gpt_forward.6} parent=11 // pred_check_branch
        %217 = sbr.rel (%p215) target = $region28
      $region27: #{gpt_forward.6} parent=11 // pred_region
        _
      $region28: #{gpt_forward.6} parent=11 // pred_fallthru
        _
      // Predicated region
      $region29: #{gpt_forward.6} parent=11 // pred_check
        %p218 = pneg %p144
      $region30: #{gpt_forward.6} parent=11 // pred_check_branch
        %220 = sbr.rel (%p218) target = $region32
      $region31: #{gpt_forward.6} parent=11 // pred_region
        _
      $region32: #{gpt_forward.6} parent=11 // pred_fallthru
        _
      // Predicated region
      $region33: #{gpt_forward.6} parent=11 // pred_check
        %p221 = pneg %p165
      $region34: #{gpt_forward.6} parent=11 // pred_check_branch
        %223 = sbr.rel (%p221) target = $region36
      $region35: #{gpt_forward.6} parent=11 // pred_region
        _
      $region36: #{gpt_forward.6} parent=11 // pred_fallthru
        _
    $region12: #{gpt_forward.6} parent=5 // pred_fallthru
      _
    %p224 = scmp.lt.s32.totalorder %s13, 2
    // Predicated region
    $region37: #{gpt_forward.6} parent=5 // pred_check
      %p225 = pneg %p224
    $region38: #{gpt_forward.6} parent=5 // pred_check_branch
      %227 = sbr.rel (%p225) target = $region40
    $region39: #{gpt_forward.6} parent=5 // pred_region
      // Predicated region
      $region41: #{gpt_forward.6} parent=39 // pred_check
        %p228 = pneg %p33
      $region42: #{gpt_forward.6} parent=39 // pred_check_branch
        %230 = sbr.rel (%p228) target = $region44
      $region43: #{gpt_forward.6} parent=39 // pred_region
        %s231 = smul.u32 2, %s13
        %p232 = scmp.lt.s32.totalorder %s231, 3
        %s233 = scalar_select %p232, %s231, 3
        %s234 = smul.addr %s233, 8
        %s235 = scalar_lea.vmem %s0, %s234
        %s236 = smul.u32 2, %s13
      $region44: #{gpt_forward.6} parent=39 // pred_fallthru
        _
    $region40: #{gpt_forward.6} parent=5 // pred_fallthru
      _
    %p237 = scmp.le.s32.totalorder 1, %s13
    %p238 = scmp.lt.s32.totalorder %s13, 3
    %p239 = pnand %p237, %p238
    %p240 = pneg %p239
    // Predicated region
    $region45: #{gpt_forward.6} parent=5 // pred_check
      _
    $region46: #{gpt_forward.6} parent=5 // pred_check_branch
      %242 = sbr.rel (%p239) target = $region48
    $region47: #{gpt_forward.6} parent=5 // pred_region
      %s243 = ssub.s32 %s13, 1
      %s244 = smul.u32 2, %s18
      %p245 = scmp.lt.s32.totalorder %s244, 3
      %s246 = scalar_select %p245, %s244, 3
      %s247 = smul.addr %s246, 8
      %s248 = scalar_lea.vmem %s0, %s247
      %p249 = pneg %p39
      %p250 = pneg %p36
      %p251 = pneg %p60
      %p252 = pneg %p57
      %p253 = pneg %p81
      %p254 = pneg %p78
      %p255 = pneg %p102
      %p256 = pneg %p99
      %p257 = pneg %p123
      %p258 = pneg %p120
      %p259 = pneg %p144
      %p260 = pneg %p141
      %p261 = pneg %p165
      %p262 = pneg %p162
      %p263 = pneg %p191
      %p264 = pneg %p188
      %s265 = smul.u32 2, %s18
      %p266 = scmp.lt.s32.totalorder %s265, 3
      %s267 = scalar_select %p266, %s265, 3
      %s268 = smul.addr %s267, 8
      %s269 = scalar_lea.vmem %s7, %s268
      %s270 = smul.u32 2, %s18
      %p271 = scmp.lt.s32.totalorder %s270, 3
      %s272 = scalar_select %p271, %s270, 3
      %s273 = smul.addr %s272, 8
      %s274 = scalar_lea.vmem %s0, %s273
      %s275 = smul.u32 2, %s18
      %s276 = smul.u32 2, %s18
      %p277 = scmp.lt.s32.totalorder %s276, 3
      %s278 = scalar_select %p277, %s276, 3
      %s279 = smul.addr %s278, 8
      %s280 = scalar_lea.vmem %s7, %s279
      %s281 = smul.u32 2, %s18
      %v283 = vld [vmem:[%s274] sm:$0xff]
      %v284 = vld [vmem:[%s274 + $0x8] sm:$0xff]
      %v285 = vld [vmem:[%s1] sm:$0x1]
      %v286 = vld [vmem:[%s2] sm:$0x1]
      %vm287 = vcmask 261120
      %v288 = vsel %vm287, %v283, 0.0
      %289 = vadd.xlane.f32.xlu0 %v288
      %v290 = vpop.xlane.xlu0 %289
      %v291 = vsel %vm287, %v284, 0.0
      %292 = vadd.xlane.f32.xlu0 %v291
      %v293 = vpop.xlane.xlu0 %292
      %v294 = vrcp.pop 32.0
      %v295 = vmul.f32 32.0, %v294
      %v296 = vsub.f32 1.0, %v295
      %v297 = vmul.f32 %v294, %v296
      %v298 = vadd.f32 %v294, %v297
      %vm299 = vweird.f32 %v294
      %v300 = vsel %vm299, %v294, %v298
      %v301 = vmul.f32 %v290, %v300
      %v302 = vmul.f32 %v293, %v300
      %v303 = vsub.f32 %v283, %v301
      %v304 = vsub.f32 %v284, %v302
      %v305 = vmul.f32 %v303, %v303
      %v306 = vmul.f32 %v304, %v304
      %v307 = vsel %vm287, %v305, 0.0
      %308 = vadd.xlane.f32.xlu0 %v307
      %v309 = vpop.xlane.xlu0 %308
      %v310 = vsel %vm287, %v306, 0.0
      %311 = vadd.xlane.f32.xlu0 %v310
      %v312 = vpop.xlane.xlu0 %311
      %v313 = vmul.f32 %v309, %v300
      %v314 = vmul.f32 %v312, %v300
      %v315 = vadd.f32 %v313, 1e-05
      %v316 = vadd.f32 %v314, 1e-05
      %v317 = vrsqrt.pop %v315
      %v318 = vmul.f32 %v317, %v315
      %v319 = vmul.f32 %v318, %v317
      %v320 = vmul.f32 0.5, %v319
      %v321 = vsub.f32 1.5, %v320
      %v322 = vmul.f32 %v317, %v321
      %vm323 = vweird.f32 %v315
      %vm324 = vweird.f32 %v317
      %vm325 = vmor %vm323, %vm324
      %v326 = vsel %vm325, %v317, %v322
      %v327 = vrsqrt.pop %v316
      %v328 = vmul.f32 %v327, %v316
      %v329 = vmul.f32 %v328, %v327
      %v330 = vmul.f32 0.5, %v329
      %v331 = vsub.f32 1.5, %v330
      %v332 = vmul.f32 %v327, %v331
      %vm333 = vweird.f32 %v316
      %vm334 = vweird.f32 %v327
      %vm335 = vmor %vm333, %vm334
      %v336 = vsel %vm335, %v327, %v332
      %v337 = vmul.f32 %v303, %v326
      %v338 = vmul.f32 %v304, %v336
      %v340 = vperm.slane %v285, 0
      %v342 = vmul.f32 %v337, %v340
      %v343 = vmul.f32 %v338, %v340
      %v345 = vperm.slane %v286, 0
      %v347 = vadd.f32 %v342, %v345
      %v348 = vadd.f32 %v343, %v345
      %v349 = vld [vmem:[%s3] sm:$0xf]
      %v350 = vld [vmem:[%s3 + $0x4] sm:$0xf]
      %v351 = vld [vmem:[%s3 + $0x8] sm:$0xf]
      %v352 = vld [vmem:[%s3 + $0xc] sm:$0xf]
      %v353 = vpack.c.bf16 %v348, %v347
      %v354 = vld [vmem:[%s4] sm:$0x1]
      %v356 = vperm.slane %v354, 0
      %v362 = vunpack.c.l.b16 %v349
      %v363 = vunpack.c.l.b16 %v350
      %v364 = vunpack.c.l.b16 %v351
      %v365 = vunpack.c.l.b16 %v352
      %v366 = vpack.c.b16 %v363, %v362
      %v367 = vpack.c.b16 %v365, %v364
      %v371 = vsel %vm287, %v353, 0
      %373 = vmatpush.bf16.msra.mxu0 0
      %374 = vmatpush.bf16.msra.mxu0 0
      %375 = vmatpush.bf16.msra.mxu0 0
      %376 = vmatpush.bf16.msra.mxu0 0
      %377 = vmatpush.bf16.msra.mxu0 0
      %378 = vmatpush.bf16.msra.mxu0 0
      %379 = vmatpush.bf16.msra.mxu0 %v367
      %380 = vmatpush.bf16.msra.mxu0 %v366
      %381 = vmatmul.bf16.gmra.mxu0 %v371
      %v382 = vpop.f32.mrf.mxu0
      %v383 = vadd.f32 %v356, %v382
      %v384 = vpop.f32.mrf.mxu0
      %v385 = vadd.f32 %v356, %v384
      %386 = vdwg.mxu0
      %v387 = vmul.f32 %v383, 0.35355338
      %v388 = vmul.f32 %v385, 0.35355338
      %v389 = vlaneseq
      %v390 = vshrl.u32 %v389, 7
      %v391 = vlaneseq
      %v392 = vand.u32 %v391, 127
      %vm393 = vcmp.le.s32.totalorder %v392, %v390
      %v394 = vpack.c.bf16 %v387, %v387
      %v395 = vpack.c.bf16 %v388, %v388
      %v396 = vpack.c.bf16 %v383, %v383
      %v397 = vpack.c.bf16 %v385, %v385
      %v399 = vunpack.c.l.b16 %v396
      %v400 = vpack.c.b16 %v399, %v399
      %401 = vrot.lane.b32.xlu0 %v400, 96
      %v402 = vpop.permute.xlu0 %401
      %vm403 = vcmask 64512
      %v405 = vsel %vm403, %v394, 0
      %v408 = vsel %vm403, %v402, 0
      %410 = vmatpush.bf16.xpose.msra.mxu0 0
      %411 = vmatpush.bf16.xpose.msra.mxu0 0
      %412 = vmatpush.bf16.xpose.msra.mxu0 0
      %413 = vmatpush.bf16.xpose.msra.mxu0 0
      %414 = vmatpush.bf16.xpose.msra.mxu0 0
      %415 = vmatpush.bf16.xpose.msra.mxu0 0
      %416 = vmatpush.bf16.xpose.msra.mxu0 0
      %417 = vmatpush.bf16.xpose.msra.mxu0 %v408
      %418 = vmatmul.bf16.gmra.mxu0 %v405
      %v419 = vpop.f32.mrf.mxu0
      %v420 = vadd.f32 0.0, %v419
      %v421 = vpop.f32.mrf.mxu0
      %422 = vdwg.mxu0
      %v424 = vunpack.c.l.b16 %v397
      %v425 = vpack.c.b16 %v424, %v424
      %426 = vrot.lane.b32.xlu0 %v425, 96
      %v427 = vpop.permute.xlu0 %426
      %v429 = vsel %vm403, %v395, 0
      %v432 = vsel %vm403, %v427, 0
      %434 = vmatpush.bf16.xpose.msra.mxu0 0
      %435 = vmatpush.bf16.xpose.msra.mxu0 0
      %436 = vmatpush.bf16.xpose.msra.mxu0 0
      %437 = vmatpush.bf16.xpose.msra.mxu0 0
      %438 = vmatpush.bf16.xpose.msra.mxu0 0
      %439 = vmatpush.bf16.xpose.msra.mxu0 0
      %440 = vmatpush.bf16.xpose.msra.mxu0 0
      %441 = vmatpush.bf16.xpose.msra.mxu0 %v432
      %442 = vmatmul.bf16.gmra.mxu0 %v429
      %v443 = vpop.f32.mrf.mxu0
      %v444 = vadd.f32 0.0, %v443
      %v445 = vpop.f32.mrf.mxu0
      %446 = vdwg.mxu0
      %v447 = vsel %vm393, 1, 0
      %vm448 = vcmp.eq.s32.totalorder %v447, 1
      %v449 = vsel %vm448, %v420, -inf
      %v450 = vsel %vm448, %v444, -inf
      %v451 = vsel %vm403, %v449, -inf
      %452 = vmax.xlane.f32.xlu0 %v451
      %v453 = vpop.xlane.xlu0 %452
      %v454 = vsel %vm403, %v450, -inf
      %455 = vmax.xlane.f32.xlu0 %v454
      %v456 = vpop.xlane.xlu0 %455
      %v457 = vsub.f32 %v449, %v453
      %v458 = vsub.f32 %v450, %v456
      %v459 = vmul.f32 %v457, 1.442695
      %v460 = vpow.pop %v459
      %v461 = vmul.f32 %v458, 1.442695
      %v462 = vpow.pop %v461
      %v463 = vsel %vm403, %v460, 0.0
      %464 = vadd.xlane.f32.xlu0 %v463
      %v465 = vpop.xlane.xlu0 %464
      %v466 = vsel %vm403, %v462, 0.0
      %467 = vadd.xlane.f32.xlu0 %v466
      %v468 = vpop.xlane.xlu0 %467
      %v469 = vrcp.pop %v465
      %v470 = vmul.f32 %v465, %v469
      %v471 = vsub.f32 1.0, %v470
      %v472 = vmul.f32 %v469, %v471
      %v473 = vadd.f32 %v469, %v472
      %vm474 = vweird.f32 %v465
      %vm475 = vweird.f32 %v469
      %vm476 = vmor %vm474, %vm475
      %v477 = vsel %vm476, %v469, %v473
      %v478 = vand.u32 2147483647, %v465
      %vm479 = vcmp.eq.f32.partialorder %v478, 8.507059e+37
      %v480 = vand.u32 %v465, 2147483648
      %v481 = vor.u32 1.1754944e-38, %v480
      %v482 = vsel %vm479, %v481, %v477
      %v483 = vmul.f32 %v460, %v482
      %v484 = vrcp.pop %v468
      %v485 = vmul.f32 %v468, %v484
      %v486 = vsub.f32 1.0, %v485
      %v487 = vmul.f32 %v484, %v486
      %v488 = vadd.f32 %v484, %v487
      %vm489 = vweird.f32 %v468
      %vm490 = vweird.f32 %v484
      %vm491 = vmor %vm489, %vm490
      %v492 = vsel %vm491, %v484, %v488
      %v493 = vand.u32 2147483647, %v468
      %vm494 = vcmp.eq.f32.partialorder %v493, 8.507059e+37
      %v495 = vand.u32 %v468, 2147483648
      %v496 = vor.u32 1.1754944e-38, %v495
      %v497 = vsel %vm494, %v496, %v492
      %v498 = vmul.f32 %v462, %v497
      %v499 = vpack.c.bf16 %v483, %v483
      %v500 = vpack.c.bf16 %v498, %v498
      %501 = vrot.lane.b32.xlu0 %v400, 64
      %v502 = vpop.permute.xlu0 %501
      %v504 = vsel %vm403, %v499, 0
      %vm506 = vcmask 1043456
      %v508 = vsel %vm506, %v502, 0
      %510 = vmatpush.bf16.msra.mxu0 0
      %511 = vmatpush.bf16.msra.mxu0 0
      %512 = vmatpush.bf16.msra.mxu0 0
      %513 = vmatpush.bf16.msra.mxu0 0
      %514 = vmatpush.bf16.msra.mxu0 0
      %515 = vmatpush.bf16.msra.mxu0 0
      %516 = vmatpush.bf16.msra.mxu0 0
      %517 = vmatpush.bf16.msra.mxu0 %v508
      %518 = vmatmul.bf16.gmra.mxu0 %v504
      %v519 = vpop.f32.mrf.mxu0
      %v520 = vadd.f32 0.0, %v519
      %v521 = vpop.f32.mrf.mxu0
      %522 = vdwg.mxu0
      %523 = vrot.lane.b32.xlu0 %v425, 64
      %v524 = vpop.permute.xlu0 %523
      %v526 = vsel %vm403, %v500, 0
      %v529 = vsel %vm506, %v524, 0
      %531 = vmatpush.bf16.msra.mxu0 0
      %532 = vmatpush.bf16.msra.mxu0 0
      %533 = vmatpush.bf16.msra.mxu0 0
      %534 = vmatpush.bf16.msra.mxu0 0
      %535 = vmatpush.bf16.msra.mxu0 0
      %536 = vmatpush.bf16.msra.mxu0 0
      %537 = vmatpush.bf16.msra.mxu0 0
      %538 = vmatpush.bf16.msra.mxu0 %v529
      %539 = vmatmul.bf16.gmra.mxu0 %v526
      %v540 = vpop.f32.mrf.mxu0
      %v541 = vadd.f32 0.0, %v540
      %v542 = vpop.f32.mrf.mxu0
      %543 = vdwg.mxu0
      %v545 = vunpack.c.l.b16 %v394
      %v546 = vpack.c.b16 %v545, %v545
      %547 = vrot.lane.b32.xlu0 %v546, 120
      %v548 = vpop.permute.xlu0 %547
      %549 = vrot.lane.b32.xlu0 %v400, 88
      %v550 = vpop.permute.xlu0 %549
      %v552 = vsel %vm403, %v548, 0
      %v555 = vsel %vm403, %v550, 0
      %557 = vmatpush.bf16.xpose.msra.mxu0 0
      %558 = vmatpush.bf16.xpose.msra.mxu0 0
      %559 = vmatpush.bf16.xpose.msra.mxu0 0
      %560 = vmatpush.bf16.xpose.msra.mxu0 0
      %561 = vmatpush.bf16.xpose.msra.mxu0 0
      %562 = vmatpush.bf16.xpose.msra.mxu0 0
      %563 = vmatpush.bf16.xpose.msra.mxu0 0
      %564 = vmatpush.bf16.xpose.msra.mxu0 %v555
      %565 = vmatmul.bf16.gmra.mxu0 %v552
      %v566 = vpop.f32.mrf.mxu0
      %v567 = vadd.f32 0.0, %v566
      %v568 = vpop.f32.mrf.mxu0
      %569 = vdwg.mxu0
      %v571 = vunpack.c.l.b16 %v395
      %v572 = vpack.c.b16 %v571, %v571
      %573 = vrot.lane.b32.xlu0 %v572, 120
      %v574 = vpop.permute.xlu0 %573
      %575 = vrot.lane.b32.xlu0 %v425, 88
      %v576 = vpop.permute.xlu0 %575
      %v578 = vsel %vm403, %v574, 0
      %v581 = vsel %vm403, %v576, 0
      %583 = vmatpush.bf16.xpose.msra.mxu0 0
      %584 = vmatpush.bf16.xpose.msra.mxu0 0
      %585 = vmatpush.bf16.xpose.msra.mxu0 0
      %586 = vmatpush.bf16.xpose.msra.mxu0 0
      %587 = vmatpush.bf16.xpose.msra.mxu0 0
      %588 = vmatpush.bf16.xpose.msra.mxu0 0
      %589 = vmatpush.bf16.xpose.msra.mxu0 0
      %590 = vmatpush.bf16.xpose.msra.mxu0 %v581
      %591 = vmatmul.bf16.gmra.mxu0 %v578
      %v592 = vpop.f32.mrf.mxu0
      %v593 = vadd.f32 0.0, %v592
      %v594 = vpop.f32.mrf.mxu0
      %595 = vdwg.mxu0
      %v596 = vsel %vm448, %v567, -inf
      %v597 = vsel %vm448, %v593, -inf
      %v598 = vsel %vm403, %v596, -inf
      %599 = vmax.xlane.f32.xlu0 %v598
      %v600 = vpop.xlane.xlu0 %599
      %v601 = vsel %vm403, %v597, -inf
      %602 = vmax.xlane.f32.xlu0 %v601
      %v603 = vpop.xlane.xlu0 %602
      %v604 = vsub.f32 %v596, %v600
      %v605 = vsub.f32 %v597, %v603
      %v606 = vmul.f32 %v604, 1.442695
      %v607 = vpow.pop %v606
      %v608 = vmul.f32 %v605, 1.442695
      %v609 = vpow.pop %v608
      %v610 = vsel %vm403, %v607, 0.0
      %611 = vadd.xlane.f32.xlu0 %v610
      %v612 = vpop.xlane.xlu0 %611
      %v613 = vsel %vm403, %v609, 0.0
      %614 = vadd.xlane.f32.xlu0 %v613
      %v615 = vpop.xlane.xlu0 %614
      %v616 = vrcp.pop %v612
      %v617 = vmul.f32 %v612, %v616
      %v618 = vsub.f32 1.0, %v617
      %v619 = vmul.f32 %v616, %v618
      %v620 = vadd.f32 %v616, %v619
      %vm621 = vweird.f32 %v612
      %vm622 = vweird.f32 %v616
      %vm623 = vmor %vm621, %vm622
      %v624 = vsel %vm623, %v616, %v620
      %v625 = vand.u32 2147483647, %v612
      %vm626 = vcmp.eq.f32.partialorder %v625, 8.507059e+37
      %v627 = vand.u32 %v612, 2147483648
      %v628 = vor.u32 1.1754944e-38, %v627
      %v629 = vsel %vm626, %v628, %v624
      %v630 = vmul.f32 %v607, %v629
      %v631 = vrcp.pop %v615
      %v632 = vmul.f32 %v615, %v631
      %v633 = vsub.f32 1.0, %v632
      %v634 = vmul.f32 %v631, %v633
      %v635 = vadd.f32 %v631, %v634
      %vm636 = vweird.f32 %v615
      %vm637 = vweird.f32 %v631
      %vm638 = vmor %vm636, %vm637
      %v639 = vsel %vm638, %v631, %v635
      %v640 = vand.u32 2147483647, %v615
      %vm641 = vcmp.eq.f32.partialorder %v640, 8.507059e+37
      %v642 = vand.u32 %v615, 2147483648
      %v643 = vor.u32 1.1754944e-38, %v642
      %v644 = vsel %vm641, %v643, %v639
      %v645 = vmul.f32 %v609, %v644
      %v646 = vpack.c.bf16 %v630, %v630
      %v647 = vpack.c.bf16 %v645, %v645
      %648 = vrot.lane.b32.xlu0 %v400, 56
      %v649 = vpop.permute.xlu0 %648
      %v651 = vsel %vm403, %v646, 0
      %v654 = vsel %vm506, %v649, 0
      %656 = vmatpush.bf16.msra.mxu0 0
      %657 = vmatpush.bf16.msra.mxu0 0
      %658 = vmatpush.bf16.msra.mxu0 0
      %659 = vmatpush.bf16.msra.mxu0 0
      %660 = vmatpush.bf16.msra.mxu0 0
      %661 = vmatpush.bf16.msra.mxu0 0
      %662 = vmatpush.bf16.msra.mxu0 0
      %663 = vmatpush.bf16.msra.mxu0 %v654
      %664 = vmatmul.bf16.gmra.mxu0 %v651
      %v665 = vpop.f32.mrf.mxu0
      %v666 = vadd.f32 0.0, %v665
      %v667 = vpop.f32.mrf.mxu0
      %668 = vdwg.mxu0
      %669 = vrot.lane.b32.xlu0 %v425, 56
      %v670 = vpop.permute.xlu0 %669
      %v672 = vsel %vm403, %v647, 0
      %v675 = vsel %vm506, %v670, 0
      %677 = vmatpush.bf16.msra.mxu0 0
      %678 = vmatpush.bf16.msra.mxu0 0
      %679 = vmatpush.bf16.msra.mxu0 0
      %680 = vmatpush.bf16.msra.mxu0 0
      %681 = vmatpush.bf16.msra.mxu0 0
      %682 = vmatpush.bf16.msra.mxu0 0
      %683 = vmatpush.bf16.msra.mxu0 0
      %684 = vmatpush.bf16.msra.mxu0 %v675
      %685 = vmatmul.bf16.gmra.mxu0 %v672
      %v686 = vpop.f32.mrf.mxu0
      %v687 = vadd.f32 0.0, %v686
      %v688 = vpop.f32.mrf.mxu0
      %689 = vdwg.mxu0
      %690 = vrot.lane.b32.xlu0 %v546, 112
      %v691 = vpop.permute.xlu0 %690
      %692 = vrot.lane.b32.xlu0 %v400, 80
      %v693 = vpop.permute.xlu0 %692
      %v695 = vsel %vm403, %v691, 0
      %v698 = vsel %vm403, %v693, 0
      %700 = vmatpush.bf16.xpose.msra.mxu0 0
      %701 = vmatpush.bf16.xpose.msra.mxu0 0
      %702 = vmatpush.bf16.xpose.msra.mxu0 0
      %703 = vmatpush.bf16.xpose.msra.mxu0 0
      %704 = vmatpush.bf16.xpose.msra.mxu0 0
      %705 = vmatpush.bf16.xpose.msra.mxu0 0
      %706 = vmatpush.bf16.xpose.msra.mxu0 0
      %707 = vmatpush.bf16.xpose.msra.mxu0 %v698
      %708 = vmatmul.bf16.gmra.mxu0 %v695
      %v709 = vpop.f32.mrf.mxu0
      %v710 = vadd.f32 0.0, %v709
      %v711 = vpop.f32.mrf.mxu0
      %712 = vdwg.mxu0
      %713 = vrot.lane.b32.xlu0 %v572, 112
      %v714 = vpop.permute.xlu0 %713
      %715 = vrot.lane.b32.xlu0 %v425, 80
      %v716 = vpop.permute.xlu0 %715
      %v718 = vsel %vm403, %v714, 0
      %v721 = vsel %vm403, %v716, 0
      %723 = vmatpush.bf16.xpose.msra.mxu0 0
      %724 = vmatpush.bf16.xpose.msra.mxu0 0
      %725 = vmatpush.bf16.xpose.msra.mxu0 0
      %726 = vmatpush.bf16.xpose.msra.mxu0 0
      %727 = vmatpush.bf16.xpose.msra.mxu0 0
      %728 = vmatpush.bf16.xpose.msra.mxu0 0
      %729 = vmatpush.bf16.xpose.msra.mxu0 0
      %730 = vmatpush.bf16.xpose.msra.mxu0 %v721
      %731 = vmatmul.bf16.gmra.mxu0 %v718
      %v732 = vpop.f32.mrf.mxu0
      %v733 = vadd.f32 0.0, %v732
      %v734 = vpop.f32.mrf.mxu0
      %735 = vdwg.mxu0
      %v736 = vsel %vm448, %v710, -inf
      %v737 = vsel %vm448, %v733, -inf
      %v738 = vsel %vm403, %v736, -inf
      %739 = vmax.xlane.f32.xlu0 %v738
      %v740 = vpop.xlane.xlu0 %739
      %v741 = vsel %vm403, %v737, -inf
      %742 = vmax.xlane.f32.xlu0 %v741
      %v743 = vpop.xlane.xlu0 %742
      %v744 = vsub.f32 %v736, %v740
      %v745 = vsub.f32 %v737, %v743
      %v746 = vmul.f32 %v744, 1.442695
      %v747 = vpow.pop %v746
      %v748 = vmul.f32 %v745, 1.442695
      %v749 = vpow.pop %v748
      %v750 = vsel %vm403, %v747, 0.0
      %751 = vadd.xlane.f32.xlu0 %v750
      %v752 = vpop.xlane.xlu0 %751
      %v753 = vsel %vm403, %v749, 0.0
      %754 = vadd.xlane.f32.xlu0 %v753
      %v755 = vpop.xlane.xlu0 %754
      %v756 = vrcp.pop %v752
      %v757 = vmul.f32 %v752, %v756
      %v758 = vsub.f32 1.0, %v757
      %v759 = vmul.f32 %v756, %v758
      %v760 = vadd.f32 %v756, %v759
      %vm761 = vweird.f32 %v752
      %vm762 = vweird.f32 %v756
      %vm763 = vmor %vm761, %vm762
      %v764 = vsel %vm763, %v756, %v760
      %v765 = vand.u32 2147483647, %v752
      %vm766 = vcmp.eq.f32.partialorder %v765, 8.507059e+37
      %v767 = vand.u32 %v752, 2147483648
      %v768 = vor.u32 1.1754944e-38, %v767
      %v769 = vsel %vm766, %v768, %v764
      %v770 = vmul.f32 %v747, %v769
      %v771 = vrcp.pop %v755
      %v772 = vmul.f32 %v755, %v771
      %v773 = vsub.f32 1.0, %v772
      %v774 = vmul.f32 %v771, %v773
      %v775 = vadd.f32 %v771, %v774
      %vm776 = vweird.f32 %v755
      %vm777 = vweird.f32 %v771
      %vm778 = vmor %vm776, %vm777
      %v779 = vsel %vm778, %v771, %v775
      %v780 = vand.u32 2147483647, %v755
      %vm781 = vcmp.eq.f32.partialorder %v780, 8.507059e+37
      %v782 = vand.u32 %v755, 2147483648
      %v783 = vor.u32 1.1754944e-38, %v782
      %v784 = vsel %vm781, %v783, %v779
      %v785 = vmul.f32 %v749, %v784
      %v786 = vpack.c.bf16 %v770, %v770
      %v787 = vpack.c.bf16 %v785, %v785
      %788 = vrot.lane.b32.xlu0 %v400, 48
      %v789 = vpop.permute.xlu0 %788
      %v791 = vsel %vm403, %v786, 0
      %v794 = vsel %vm506, %v789, 0
      %796 = vmatpush.bf16.msra.mxu0 0
      %797 = vmatpush.bf16.msra.mxu0 0
      %798 = vmatpush.bf16.msra.mxu0 0
      %799 = vmatpush.bf16.msra.mxu0 0
      %800 = vmatpush.bf16.msra.mxu0 0
      %801 = vmatpush.bf16.msra.mxu0 0
      %802 = vmatpush.bf16.msra.mxu0 0
      %803 = vmatpush.bf16.msra.mxu0 %v794
      %804 = vmatmul.bf16.gmra.mxu0 %v791
      %v805 = vpop.f32.mrf.mxu0
      %v806 = vadd.f32 0.0, %v805
      %v807 = vpop.f32.mrf.mxu0
      %808 = vdwg.mxu0
      %809 = vrot.lane.b32.xlu0 %v425, 48
      %v810 = vpop.permute.xlu0 %809
      %v812 = vsel %vm403, %v787, 0
      %v815 = vsel %vm506, %v810, 0
      %817 = vmatpush.bf16.msra.mxu0 0
      %818 = vmatpush.bf16.msra.mxu0 0
      %819 = vmatpush.bf16.msra.mxu0 0
      %820 = vmatpush.bf16.msra.mxu0 0
      %821 = vmatpush.bf16.msra.mxu0 0
      %822 = vmatpush.bf16.msra.mxu0 0
      %823 = vmatpush.bf16.msra.mxu0 0
      %824 = vmatpush.bf16.msra.mxu0 %v815
      %825 = vmatmul.bf16.gmra.mxu0 %v812
      %v826 = vpop.f32.mrf.mxu0
      %v827 = vadd.f32 0.0, %v826
      %v828 = vpop.f32.mrf.mxu0
      %829 = vdwg.mxu0
      %830 = vrot.lane.b32.xlu0 %v546, 104
      %v831 = vpop.permute.xlu0 %830
      %832 = vrot.lane.b32.xlu0 %v400, 72
      %v833 = vpop.permute.xlu0 %832
      %v835 = vsel %vm403, %v831, 0
      %v838 = vsel %vm403, %v833, 0
      %840 = vmatpush.bf16.xpose.msra.mxu0 0
      %841 = vmatpush.bf16.xpose.msra.mxu0 0
      %842 = vmatpush.bf16.xpose.msra.mxu0 0
      %843 = vmatpush.bf16.xpose.msra.mxu0 0
      %844 = vmatpush.bf16.xpose.msra.mxu0 0
      %845 = vmatpush.bf16.xpose.msra.mxu0 0
      %846 = vmatpush.bf16.xpose.msra.mxu0 0
      %847 = vmatpush.bf16.xpose.msra.mxu0 %v838
      %848 = vmatmul.bf16.gmra.mxu0 %v835
      %v849 = vpop.f32.mrf.mxu0
      %v850 = vadd.f32 0.0, %v849
      %v851 = vpop.f32.mrf.mxu0
      %852 = vdwg.mxu0
      %853 = vrot.lane.b32.xlu0 %v572, 104
      %v854 = vpop.permute.xlu0 %853
      %855 = vrot.lane.b32.xlu0 %v425, 72
      %v856 = vpop.permute.xlu0 %855
      %v858 = vsel %vm403, %v854, 0
      %v861 = vsel %vm403, %v856, 0
      %863 = vmatpush.bf16.xpose.msra.mxu0 0
      %864 = vmatpush.bf16.xpose.msra.mxu0 0
      %865 = vmatpush.bf16.xpose.msra.mxu0 0
      %866 = vmatpush.bf16.xpose.msra.mxu0 0
      %867 = vmatpush.bf16.xpose.msra.mxu0 0
      %868 = vmatpush.bf16.xpose.msra.mxu0 0
      %869 = vmatpush.bf16.xpose.msra.mxu0 0
      %870 = vmatpush.bf16.xpose.msra.mxu0 %v861
      %871 = vmatmul.bf16.gmra.mxu0 %v858
      %v872 = vpop.f32.mrf.mxu0
      %v873 = vadd.f32 0.0, %v872
      %v874 = vpop.f32.mrf.mxu0
      %875 = vdwg.mxu0
      %v876 = vsel %vm448, %v850, -inf
      %v877 = vsel %vm448, %v873, -inf
      %v878 = vsel %vm403, %v876, -inf
      %879 = vmax.xlane.f32.xlu0 %v878
      %v880 = vpop.xlane.xlu0 %879
      %v881 = vsel %vm403, %v877, -inf
      %882 = vmax.xlane.f32.xlu0 %v881
      %v883 = vpop.xlane.xlu0 %882
      %v884 = vsub.f32 %v876, %v880
      %v885 = vsub.f32 %v877, %v883
      %v886 = vmul.f32 %v884, 1.442695
      %v887 = vpow.pop %v886
      %v888 = vmul.f32 %v885, 1.442695
      %v889 = vpow.pop %v888
      %v890 = vsel %vm403, %v887, 0.0
      %891 = vadd.xlane.f32.xlu0 %v890
      %v892 = vpop.xlane.xlu0 %891
      %v893 = vsel %vm403, %v889, 0.0
      %894 = vadd.xlane.f32.xlu0 %v893
      %v895 = vpop.xlane.xlu0 %894
      %v896 = vrcp.pop %v892
      %v897 = vmul.f32 %v892, %v896
      %v898 = vsub.f32 1.0, %v897
      %v899 = vmul.f32 %v896, %v898
      %v900 = vadd.f32 %v896, %v899
      %vm901 = vweird.f32 %v892
      %vm902 = vweird.f32 %v896
      %vm903 = vmor %vm901, %vm902
      %v904 = vsel %vm903, %v896, %v900
      %v905 = vand.u32 2147483647, %v892
      %vm906 = vcmp.eq.f32.partialorder %v905, 8.507059e+37
      %v907 = vand.u32 %v892, 2147483648
      %v908 = vor.u32 1.1754944e-38, %v907
      %v909 = vsel %vm906, %v908, %v904
      %v910 = vmul.f32 %v887, %v909
      %v911 = vrcp.pop %v895
      %v912 = vmul.f32 %v895, %v911
      %v913 = vsub.f32 1.0, %v912
      %v914 = vmul.f32 %v911, %v913
      %v915 = vadd.f32 %v911, %v914
      %vm916 = vweird.f32 %v895
      %vm917 = vweird.f32 %v911
      %vm918 = vmor %vm916, %vm917
      %v919 = vsel %vm918, %v911, %v915
      %v920 = vand.u32 2147483647, %v895
      %vm921 = vcmp.eq.f32.partialorder %v920, 8.507059e+37
      %v922 = vand.u32 %v895, 2147483648
      %v923 = vor.u32 1.1754944e-38, %v922
      %v924 = vsel %vm921, %v923, %v919
      %v925 = vmul.f32 %v889, %v924
      %v926 = vpack.c.bf16 %v910, %v910
      %v927 = vpack.c.bf16 %v925, %v925
      %928 = vrot.lane.b32.xlu0 %v400, 40
      %v929 = vpop.permute.xlu0 %928
      %v931 = vsel %vm403, %v926, 0
      %v934 = vsel %vm506, %v929, 0
      %936 = vmatpush.bf16.msra.mxu0 0
      %937 = vmatpush.bf16.msra.mxu0 0
      %938 = vmatpush.bf16.msra.mxu0 0
      %939 = vmatpush.bf16.msra.mxu0 0
      %940 = vmatpush.bf16.msra.mxu0 0
      %941 = vmatpush.bf16.msra.mxu0 0
      %942 = vmatpush.bf16.msra.mxu0 0
      %943 = vmatpush.bf16.msra.mxu0 %v934
      %944 = vmatmul.bf16.gmra.mxu0 %v931
      %v945 = vpop.f32.mrf.mxu0
      %v946 = vadd.f32 0.0, %v945
      %v947 = vpop.f32.mrf.mxu0
      %948 = vdwg.mxu0
      %949 = vrot.lane.b32.xlu0 %v425, 40
      %v950 = vpop.permute.xlu0 %949
      %v952 = vsel %vm403, %v927, 0
      %v955 = vsel %vm506, %v950, 0
      %957 = vmatpush.bf16.msra.mxu0 0
      %958 = vmatpush.bf16.msra.mxu0 0
      %959 = vmatpush.bf16.msra.mxu0 0
      %960 = vmatpush.bf16.msra.mxu0 0
      %961 = vmatpush.bf16.msra.mxu0 0
      %962 = vmatpush.bf16.msra.mxu0 0
      %963 = vmatpush.bf16.msra.mxu0 0
      %964 = vmatpush.bf16.msra.mxu0 %v955
      %965 = vmatmul.bf16.gmra.mxu0 %v952
      %v966 = vpop.f32.mrf.mxu0
      %v967 = vadd.f32 0.0, %v966
      %v968 = vpop.f32.mrf.mxu0
      %969 = vdwg.mxu0
      %972 = vrot.lane.b32.xlu0 %v666, 8
      %v973 = vpop.permute.xlu0 %972
      %974 = vrot.lane.b32.xlu0 %v687, 8
      %v975 = vpop.permute.xlu0 %974
      %980 = vrot.lane.b32.xlu0 %v806, 16
      %v981 = vpop.permute.xlu0 %980
      %982 = vrot.lane.b32.xlu0 %v827, 16
      %v983 = vpop.permute.xlu0 %982
      %988 = vrot.lane.b32.xlu0 %v946, 24
      %v989 = vpop.permute.xlu0 %988
      %990 = vrot.lane.b32.xlu0 %v967, 24
      %v991 = vpop.permute.xlu0 %990
      %v994 = vsel %vm403, %v520, %v973
      %v995 = vsel %vm403, %v541, %v975
      %vm996 = vcmask 130048
      %v997 = vsel %vm996, %v994, %v981
      %v998 = vsel %vm996, %v995, %v983
      %vm999 = vcmask 195584
      %v1000 = vsel %vm999, %v997, %v989
      %v1001 = vsel %vm999, %v998, %v991
      %v1002 = vld [vmem:[%s5] sm:$0xf]
      %v1003 = vld [vmem:[%s5 + $0x4] sm:$0xf]
      %v1004 = vld [vmem:[%s5 + $0x8] sm:$0xf]
      %v1005 = vld [vmem:[%s5 + $0xc] sm:$0xf]
      %v1006 = vpack.c.bf16 %v1001, %v1000
      %v1007 = vld [vmem:[%s6] sm:$0x1]
      %v1009 = vperm.slane %v1007, 0
      %v1015 = vunpack.c.l.b16 %v1002
      %v1016 = vunpack.c.l.b16 %v1003
      %v1017 = vunpack.c.l.b16 %v1004
      %v1018 = vunpack.c.l.b16 %v1005
      %v1019 = vpack.c.b16 %v1016, %v1015
      %v1020 = vpack.c.b16 %v1018, %v1017
      %v1024 = vsel %vm287, %v1006, 0
      %1026 = vmatpush.bf16.msra.mxu0 0
      %1027 = vmatpush.bf16.msra.mxu0 0
      %1028 = vmatpush.bf16.msra.mxu0 0
      %1029 = vmatpush.bf16.msra.mxu0 0
      %1030 = vmatpush.bf16.msra.mxu0 0
      %1031 = vmatpush.bf16.msra.mxu0 0
      %1032 = vmatpush.bf16.msra.mxu0 %v1020
      %1033 = vmatpush.bf16.msra.mxu0 %v1019
      %1034 = vmatmul.bf16.gmra.mxu0 %v1024
      %v1035 = vpop.f32.mrf.mxu0
      %v1036 = vadd.f32 %v1009, %v1035
      %v1037 = vpop.f32.mrf.mxu0
      %v1038 = vadd.f32 %v1009, %v1037
      %1039 = vdwg.mxu0
      %v1040 = vadd.f32 %v283, %v1036
      %v1041 = vadd.f32 %v284, %v1038
      %vm1042 = vweird.f32 %v1040
      %vm1043 = vweird.f32 %v1041
      %vm1044 = vmxor %vm1042, 1
      %vm1045 = vmxor %vm1043, 1
      %v1046 = vsel %vm1044, %v1040, 0.0
      %v1047 = vsel %vm1045, %v1041, 0.0
      %1048 = vst.msk [vmem:[%s280] sm:$0xff] %vm287, %v1046
      %1049 = vst.msk [vmem:[%s280 + $0x8] sm:$0xff] %vm287, %v1047
      %s1050 = smul.u32 2, %s18
      %p1051 = scmp.lt.s32.totalorder %s1050, 3
      %s1052 = scalar_select %p1051, %s1050, 3
      %s1053 = smul.addr %s1052, 8
      %s1054 = scalar_lea.vmem %s7, %s1053
      // Predicated region
      $region49: #{gpt_forward.6} parent=47 // pred_check
        %p1055 = pneg %p188
      $region50: #{gpt_forward.6} parent=47 // pred_check_branch
        %1057 = sbr.rel (%p1055) target = $region52
      $region51: #{gpt_forward.6} parent=47 // pred_region
        %s1058 = smul.u32 2, %s18
      $region52: #{gpt_forward.6} parent=47 // pred_fallthru
        _
    $region48: #{gpt_forward.6} parent=5 // pred_fallthru
      _
    %p1059 = scmp.le.s32.totalorder 2, %s13
    // Predicated region
    $region53: #{gpt_forward.6} parent=5 // pred_check
      %p1060 = pneg %p1059
    $region54: #{gpt_forward.6} parent=5 // pred_check_branch
      %1062 = sbr.rel (%p1060) target = $region56
    $region55: #{gpt_forward.6} parent=5 // pred_region
      %s1063 = ssub.s32 %s13, 2
      // Predicated region
      $region57: #{gpt_forward.6} parent=55 // pred_check
        %p1064 = pneg %p194
      $region58: #{gpt_forward.6} parent=55 // pred_check_branch
        %1066 = sbr.rel (%p1064) target = $region60
      $region59: #{gpt_forward.6} parent=55 // pred_region
        %s1067 = smul.u32 2, %s19
        %p1068 = scmp.lt.s32.totalorder %s1067, 3
        %s1069 = scalar_select %p1068, %s1067, 3
        %s1070 = smul.addr %s1069, 8
        %s1071 = scalar_lea.vmem %s7, %s1070
      $region60: #{gpt_forward.6} parent=55 // pred_fallthru
        _
    $region56: #{gpt_forward.6} parent=5 // pred_fallthru
      _
  $region6: #{gpt_forward.6} parent=0 // loop_footer
    %s17 = sadd.s32 1, %s13
  $region7: #{gpt_forward.6} parent=0 // loop_footer_branch
    %12 = sbr.rel target = $region3
  $region8: #{gpt_forward.6} parent=0 // loop_exit
    _

// kernel: gpt_forward.11
$region0: #{gpt_forward.11}
  #allocation0 [shape = 'u32[]', space=smem, size = 0x4, offset = 0x4, fixed_abs, tag = 'smem constant byte address 0x4 - core index']
  #allocation1 [shape = 'u32[72,128]{1,0:T(1,128)}', space=vmem, size = 0x9000, scoped, tag = 'internal scratch']
  #allocation2 [shape = 'f32[32,32]{1,0:T(8,128)}', space=vmem, size = 0x4000, scoped, tag = 'scratch operand']
  #allocation3 [shape = 'f32[32,1]{1,0:T(8,128)}', space=vmem, size = 0x4000, scoped, tag = 'scratch operand']
  %s0 = inlined_call_operand.vmem [shape: f32[32,32], index: 0, kind: input, shape index: {}]
  %s1 = inlined_call_operand.vmem [shape: f32[1,32], index: 1, kind: input, shape index: {}]
  %s2 = inlined_call_operand.vmem [shape: f32[1,32], index: 2, kind: input, shape index: {}]
  %s3 = inlined_call_operand.vmem [shape: f32[512,32], index: 3, kind: input, shape index: {}]
  %s4 = inlined_call_operand.vmem [shape: f32[1,512], index: 4, kind: input, shape index: {}]
  %s5 = inlined_call_operand.vmem [shape: f32[32,1], index: 5, kind: input, shape index: {}]
  %s6 = inlined_call_operand.vmem [shape: f32[32,1], index: 6, kind: input, shape index: {}]
  %s7 = inlined_call_operand.vmem [shape: s32[32,1], index: 7, kind: input, shape index: {}]
  %s8 = inlined_call_operand.hbm [shape: f32[32,512], index: 8, kind: output, shape index: {0}]
  %s9 = inlined_call_operand.vmem [shape: f32[32,1], index: 9, kind: output, shape index: {1}]
  %s10 = inlined_call_operand.vmem [shape: f32[32,1], index: 10, kind: output, shape index: {2}]
  %s11 = inlined_call_operand.hbm [shape: f32[32,1], index: 11, kind: output, shape index: {3}]
  %s12 = inlined_call_operand.vmem [shape: f32[32,1], index: 12, kind: output, shape index: {4}]
  %s13 = inlined_call_operand.vmem [shape: f32[32,1], index: 13, kind: output, shape index: {5}]
  %14 = xla_tuple %s8, %s9, %s10, %s11, %s12, %s13
  %s15 = sld [smem:[#allocation0]]
  $region86: #{gpt_forward.11} parent=0
    _
  %s17 = ssub.s32 1, %s15
  %s18 = scalar_select 0, %s17, %s15
  $region1: #{gpt_forward.11} parent=0
    #allocation4 [shape = 'u8[65536]{0}', space=vmem, size = 0x10000, scoped, tag = 'output window, operand 0, single buffered']
    #allocation5 [shape = 's32[1]{0}', space=sflag, size = 0x4, scoped, tag = 'scoped memory for gpt_forward.11']
    #allocation6 [shape = 'u8[16384]{0}', space=vmem, size = 0x4000, scoped, tag = 'output window, operand 3, single buffered']
    #allocation7 [shape = 's32[1]{0}', space=sflag, size = 0x4, scoped, tag = 'scoped memory for gpt_forward.11']
    %19 = vsyncpa [#allocation5], 0
    %20 = vsyncpa [#allocation7], 0
    // Predicated region
    $region2: #{gpt_forward.11} parent=1 // pred_check
      _
    $region3: #{gpt_forward.11} parent=1 // pred_check_branch
      %22 = sbr.rel (0) target = $region5
    $region4: #{gpt_forward.11} parent=1 // pred_region
      _
    $region5: #{gpt_forward.11} parent=1 // pred_fallthru
      _
    // Predicated region
    $region6: #{gpt_forward.11} parent=1 // pred_check
      _
    $region7: #{gpt_forward.11} parent=1 // pred_check_branch
      %24 = sbr.rel (0) target = $region9
    $region8: #{gpt_forward.11} parent=1 // pred_region
      _
    $region9: #{gpt_forward.11} parent=1 // pred_fallthru
      _
    // Predicated region
    $region10: #{gpt_forward.11} parent=1 // pred_check
      _
    $region11: #{gpt_forward.11} parent=1 // pred_check_branch
      %26 = sbr.rel (0) target = $region13
    $region12: #{gpt_forward.11} parent=1 // pred_region
      _
    $region13: #{gpt_forward.11} parent=1 // pred_fallthru
      _
    // Predicated region
    $region14: #{gpt_forward.11} parent=1 // pred_check
      _
    $region15: #{gpt_forward.11} parent=1 // pred_check_branch
      %28 = sbr.rel (0) target = $region17
    $region16: #{gpt_forward.11} parent=1 // pred_region
      _
    $region17: #{gpt_forward.11} parent=1 // pred_fallthru
      _
    // Predicated region
    $region18: #{gpt_forward.11} parent=1 // pred_check
      _
    $region19: #{gpt_forward.11} parent=1 // pred_check_branch
      %30 = sbr.rel (0) target = $region21
    $region20: #{gpt_forward.11} parent=1 // pred_region
      _
    $region21: #{gpt_forward.11} parent=1 // pred_fallthru
      _
    // Predicated region
    $region22: #{gpt_forward.11} parent=1 // pred_check
      _
    $region23: #{gpt_forward.11} parent=1 // pred_check_branch
      %32 = sbr.rel (0) target = $region25
    $region24: #{gpt_forward.11} parent=1 // pred_region
      _
    $region25: #{gpt_forward.11} parent=1 // pred_fallthru
      _
    // Predicated region
    $region26: #{gpt_forward.11} parent=1 // pred_check
      _
    $region27: #{gpt_forward.11} parent=1 // pred_check_branch
      %34 = sbr.rel (0) target = $region29
    $region28: #{gpt_forward.11} parent=1 // pred_region
      _
    $region29: #{gpt_forward.11} parent=1 // pred_fallthru
      _
    // Predicated region
    $region30: #{gpt_forward.11} parent=1 // pred_check
      _
    $region31: #{gpt_forward.11} parent=1 // pred_check_branch
      %36 = sbr.rel (0) target = $region33
    $region32: #{gpt_forward.11} parent=1 // pred_region
      _
    $region33: #{gpt_forward.11} parent=1 // pred_fallthru
      _
    %p37 = scmp.eq.s32.totalorder 0, 0
    // Predicated region
    $region34: #{gpt_forward.11} parent=1 // pred_check
      %p38 = pneg %p37
    $region35: #{gpt_forward.11} parent=1 // pred_check_branch
      %40 = sbr.rel (%p38) target = $region37
    $region36: #{gpt_forward.11} parent=1 // pred_region
      %v41 = vld [vmem:[%s0] sm:$0xff]
      %v42 = vld [vmem:[%s0 + $0x8] sm:$0xff]
      %v43 = vld [vmem:[%s0 + $0x10] sm:$0xff]
      %v44 = vld [vmem:[%s0 + $0x18] sm:$0xff]
      %v45 = vld [vmem:[%s1] sm:$0x1]
      %v46 = vld [vmem:[%s2] sm:$0x1]
      %vm47 = vcmask 261120
      %v48 = vsel %vm47, %v41, 0.0
      %49 = vadd.xlane.f32.xlu0 %v48
      %v50 = vpop.xlane.xlu0 %49
      %v51 = vsel %vm47, %v42, 0.0
      %52 = vadd.xlane.f32.xlu0 %v51
      %v53 = vpop.xlane.xlu0 %52
      %v54 = vsel %vm47, %v43, 0.0
      %55 = vadd.xlane.f32.xlu0 %v54
      %v56 = vpop.xlane.xlu0 %55
      %v57 = vsel %vm47, %v44, 0.0
      %58 = vadd.xlane.f32.xlu0 %v57
      %v59 = vpop.xlane.xlu0 %58
      %v60 = vrcp.pop 32.0
      %v61 = vmul.f32 32.0, %v60
      %v62 = vsub.f32 1.0, %v61
      %v63 = vmul.f32 %v60, %v62
      %v64 = vadd.f32 %v60, %v63
      %vm65 = vweird.f32 %v60
      %v66 = vsel %vm65, %v60, %v64
      %v67 = vmul.f32 %v50, %v66
      %v68 = vmul.f32 %v53, %v66
      %v69 = vmul.f32 %v56, %v66
      %v70 = vmul.f32 %v59, %v66
      %v71 = vsub.f32 %v41, %v67
      %v72 = vsub.f32 %v42, %v68
      %v73 = vsub.f32 %v43, %v69
      %v74 = vsub.f32 %v44, %v70
      %v75 = vmul.f32 %v71, %v71
      %v76 = vmul.f32 %v72, %v72
      %v77 = vmul.f32 %v73, %v73
      %v78 = vmul.f32 %v74, %v74
      %v79 = vsel %vm47, %v75, 0.0
      %80 = vadd.xlane.f32.xlu0 %v79
      %v81 = vpop.xlane.xlu0 %80
      %v82 = vsel %vm47, %v76, 0.0
      %83 = vadd.xlane.f32.xlu0 %v82
      %v84 = vpop.xlane.xlu0 %83
      %v85 = vsel %vm47, %v77, 0.0
      %86 = vadd.xlane.f32.xlu0 %v85
      %v87 = vpop.xlane.xlu0 %86
      %v88 = vsel %vm47, %v78, 0.0
      %89 = vadd.xlane.f32.xlu0 %v88
      %v90 = vpop.xlane.xlu0 %89
      %v91 = vmul.f32 %v81, %v66
      %v92 = vmul.f32 %v84, %v66
      %v93 = vmul.f32 %v87, %v66
      %v94 = vmul.f32 %v90, %v66
      %v95 = vadd.f32 %v91, 1e-05
      %v96 = vadd.f32 %v92, 1e-05
      %v97 = vadd.f32 %v93, 1e-05
      %v98 = vadd.f32 %v94, 1e-05
      %v99 = vrsqrt.pop %v95
      %v100 = vmul.f32 %v99, %v95
      %v101 = vmul.f32 %v100, %v99
      %v102 = vmul.f32 0.5, %v101
      %v103 = vsub.f32 1.5, %v102
      %v104 = vmul.f32 %v99, %v103
      %vm105 = vweird.f32 %v95
      %vm106 = vweird.f32 %v99
      %vm107 = vmor %vm105, %vm106
      %v108 = vsel %vm107, %v99, %v104
      %v109 = vrsqrt.pop %v96
      %v110 = vmul.f32 %v109, %v96
      %v111 = vmul.f32 %v110, %v109
      %v112 = vmul.f32 0.5, %v111
      %v113 = vsub.f32 1.5, %v112
      %v114 = vmul.f32 %v109, %v113
      %vm115 = vweird.f32 %v96
      %vm116 = vweird.f32 %v109
      %vm117 = vmor %vm115, %vm116
      %v118 = vsel %vm117, %v109, %v114
      %v119 = vrsqrt.pop %v97
      %v120 = vmul.f32 %v119, %v97
      %v121 = vmul.f32 %v120, %v119
      %v122 = vmul.f32 0.5, %v121
      %v123 = vsub.f32 1.5, %v122
      %v124 = vmul.f32 %v119, %v123
      %vm125 = vweird.f32 %v97
      %vm126 = vweird.f32 %v119
      %vm127 = vmor %vm125, %vm126
      %v128 = vsel %vm127, %v119, %v124
      %v129 = vrsqrt.pop %v98
      %v130 = vmul.f32 %v129, %v98
      %v131 = vmul.f32 %v130, %v129
      %v132 = vmul.f32 0.5, %v131
      %v133 = vsub.f32 1.5, %v132
      %v134 = vmul.f32 %v129, %v133
      %vm135 = vweird.f32 %v98
      %vm136 = vweird.f32 %v129
      %vm137 = vmor %vm135, %vm136
      %v138 = vsel %vm137, %v129, %v134
      %v139 = vmul.f32 %v71, %v108
      %v140 = vmul.f32 %v72, %v118
      %v141 = vmul.f32 %v73, %v128
      %v142 = vmul.f32 %v74, %v138
      %v144 = vperm.slane %v45, 0
      %v146 = vmul.f32 %v139, %v144
      %v147 = vmul.f32 %v140, %v144
      %v148 = vmul.f32 %v141, %v144
      %v149 = vmul.f32 %v142, %v144
      %v151 = vperm.slane %v46, 0
      %v153 = vadd.f32 %v146, %v151
      %v154 = vadd.f32 %v147, %v151
      %v155 = vadd.f32 %v148, %v151
      %v156 = vadd.f32 %v149, %v151
      %157 = vst.msk [vmem:[#allocation2] sm:$0xff] %vm47, %v153
      %158 = vst.msk [vmem:[#allocation2 + $0x8] sm:$0xff] %vm47, %v154
      %159 = vst.msk [vmem:[#allocation2 + $0x10] sm:$0xff] %vm47, %v155
      %160 = vst.msk [vmem:[#allocation2 + $0x18] sm:$0xff] %vm47, %v156
      %v161 = vmul.f32 %v153, %v153
      %v162 = vmul.f32 %v154, %v154
      %v163 = vmul.f32 %v155, %v155
      %v164 = vmul.f32 %v156, %v156
      %v165 = vsel %vm47, %v161, 0.0
      %166 = vadd.xlane.f32.xlu0 %v165
      %v167 = vpop.xlane.xlu0 %166
      %v168 = vsel %vm47, %v162, 0.0
      %169 = vadd.xlane.f32.xlu0 %v168
      %v170 = vpop.xlane.xlu0 %169
      %v171 = vsel %vm47, %v163, 0.0
      %172 = vadd.xlane.f32.xlu0 %v171
      %v173 = vpop.xlane.xlu0 %172
      %v174 = vsel %vm47, %v164, 0.0
      %175 = vadd.xlane.f32.xlu0 %v174
      %v176 = vpop.xlane.xlu0 %175
      %vm177 = vweird.f32 %v167
      %vm178 = vweird.f32 %v170
      %vm179 = vweird.f32 %v173
      %vm180 = vweird.f32 %v176
      %vm181 = vmxor %vm177, 1
      %vm182 = vmxor %vm178, 1
      %vm183 = vmxor %vm179, 1
      %vm184 = vmxor %vm180, 1
      %v185 = vsel %vm181, %v167, 1.0
      %v186 = vsel %vm182, %v170, 1.0
      %v187 = vsel %vm183, %v173, 1.0
      %v188 = vsel %vm184, %v176, 1.0
      %vm189 = vcmask 7168
      %190 = vst.msk [vmem:[#allocation3] sm:$0xff] %vm189, %v185
      %191 = vst.msk [vmem:[#allocation3 + $0x8] sm:$0xff] %vm189, %v186
      %192 = vst.msk [vmem:[#allocation3 + $0x10] sm:$0xff] %vm189, %v187
      %193 = vst.msk [vmem:[#allocation3 + $0x18] sm:$0xff] %vm189, %v188
    $region37: #{gpt_forward.11} parent=1 // pred_fallthru
      _
    %v194 = vld [vmem:[#allocation2] sm:$0xff]
    %v195 = vld [vmem:[#allocation2 + $0x8] sm:$0xff]
    %v196 = vld [vmem:[#allocation2 + $0x10] sm:$0xff]
    %v197 = vld [vmem:[#allocation2 + $0x18] sm:$0xff]
    %v198 = vld [vmem:[#allocation3] sm:$0xff]
    %v199 = vld [vmem:[#allocation3 + $0x8] sm:$0xff]
    %v200 = vld [vmem:[#allocation3 + $0x10] sm:$0xff]
    %v201 = vld [vmem:[#allocation3 + $0x18] sm:$0xff]
    %v202 = vld [vmem:[%s3] sm:$0xff]
    %v203 = vld [vmem:[%s3 + $0x8] sm:$0xff]
    %v204 = vld [vmem:[%s3 + $0x10] sm:$0xff]
    %v205 = vld [vmem:[%s3 + $0x18] sm:$0xff]
    %v206 = vld [vmem:[%s3 + $0x20] sm:$0xff]
    %v207 = vld [vmem:[%s3 + $0x28] sm:$0xff]
    %v208 = vld [vmem:[%s3 + $0x30] sm:$0xff]
    %v209 = vld [vmem:[%s3 + $0x38] sm:$0xff]
    %v210 = vld [vmem:[%s3 + $0x40] sm:$0xff]
    %v211 = vld [vmem:[%s3 + $0x48] sm:$0xff]
    %v212 = vld [vmem:[%s3 + $0x50] sm:$0xff]
    %v213 = vld [vmem:[%s3 + $0x58] sm:$0xff]
    %v214 = vld [vmem:[%s3 + $0x60] sm:$0xff]
    %v215 = vld [vmem:[%s3 + $0x68] sm:$0xff]
    %v216 = vld [vmem:[%s3 + $0x70] sm:$0xff]
    %v217 = vld [vmem:[%s3 + $0x78] sm:$0xff]
    %v218 = vld [vmem:[%s3 + $0x80] sm:$0xff]
    %v219 = vld [vmem:[%s3 + $0x88] sm:$0xff]
    %v220 = vld [vmem:[%s3 + $0x90] sm:$0xff]
    %v221 = vld [vmem:[%s3 + $0x98] sm:$0xff]
    %v222 = vld [vmem:[%s3 + $0xa0] sm:$0xff]
    %v223 = vld [vmem:[%s3 + $0xa8] sm:$0xff]
    %v224 = vld [vmem:[%s3 + $0xb0] sm:$0xff]
    %v225 = vld [vmem:[%s3 + $0xb8] sm:$0xff]
    %v226 = vld [vmem:[%s3 + $0xc0] sm:$0xff]
    %v227 = vld [vmem:[%s3 + $0xc8] sm:$0xff]
    %v228 = vld [vmem:[%s3 + $0xd0] sm:$0xff]
    %v229 = vld [vmem:[%s3 + $0xd8] sm:$0xff]
    %v230 = vld [vmem:[%s3 + $0xe0] sm:$0xff]
    %v231 = vld [vmem:[%s3 + $0xe8] sm:$0xff]
    %v232 = vld [vmem:[%s3 + $0xf0] sm:$0xff]
    %v233 = vld [vmem:[%s3 + $0xf8] sm:$0xff]
    %v234 = vld [vmem:[%s3 + $0x100] sm:$0xff]
    %v235 = vld [vmem:[%s3 + $0x108] sm:$0xff]
    %v236 = vld [vmem:[%s3 + $0x110] sm:$0xff]
    %v237 = vld [vmem:[%s3 + $0x118] sm:$0xff]
    %v238 = vld [vmem:[%s3 + $0x120] sm:$0xff]
    %v239 = vld [vmem:[%s3 + $0x128] sm:$0xff]
    %v240 = vld [vmem:[%s3 + $0x130] sm:$0xff]
    %v241 = vld [vmem:[%s3 + $0x138] sm:$0xff]
    %v242 = vld [vmem:[%s3 + $0x140] sm:$0xff]
    %v243 = vld [vmem:[%s3 + $0x148] sm:$0xff]
    %v244 = vld [vmem:[%s3 + $0x150] sm:$0xff]
    %v245 = vld [vmem:[%s3 + $0x158] sm:$0xff]
    %v246 = vld [vmem:[%s3 + $0x160] sm:$0xff]
    %v247 = vld [vmem:[%s3 + $0x168] sm:$0xff]
    %v248 = vld [vmem:[%s3 + $0x170] sm:$0xff]
    %v249 = vld [vmem:[%s3 + $0x178] sm:$0xff]
    %v250 = vld [vmem:[%s3 + $0x180] sm:$0xff]
    %v251 = vld [vmem:[%s3 + $0x188] sm:$0xff]
    %v252 = vld [vmem:[%s3 + $0x190] sm:$0xff]
    %v253 = vld [vmem:[%s3 + $0x198] sm:$0xff]
    %v254 = vld [vmem:[%s3 + $0x1a0] sm:$0xff]
    %v255 = vld [vmem:[%s3 + $0x1a8] sm:$0xff]
    %v256 = vld [vmem:[%s3 + $0x1b0] sm:$0xff]
    %v257 = vld [vmem:[%s3 + $0x1b8] sm:$0xff]
    %v258 = vld [vmem:[%s3 + $0x1c0] sm:$0xff]
    %v259 = vld [vmem:[%s3 + $0x1c8] sm:$0xff]
    %v260 = vld [vmem:[%s3 + $0x1d0] sm:$0xff]
    %v261 = vld [vmem:[%s3 + $0x1d8] sm:$0xff]
    %v262 = vld [vmem:[%s3 + $0x1e0] sm:$0xff]
    %v263 = vld [vmem:[%s3 + $0x1e8] sm:$0xff]
    %v264 = vld [vmem:[%s3 + $0x1f0] sm:$0xff]
    %v265 = vld [vmem:[%s3 + $0x1f8] sm:$0xff]
    %v266 = vld [vmem:[%s4] sm:$0xf]
    %vm267 = vcmask 261120
    %v269 = vsel %vm267, %v194, 0
    %v272 = vsel %vm267, %v195, 0
    %v275 = vsel %vm267, %v196, 0
    %v278 = vsel %vm267, %v197, 0
    %v281 = vsel %vm267, %v202, 0
    %v284 = vsel %vm267, %v203, 0
    %v287 = vsel %vm267, %v204, 0
    %v290 = vsel %vm267, %v205, 0
    %v293 = vsel %vm267, %v206, 0
    %v296 = vsel %vm267, %v207, 0
    %v299 = vsel %vm267, %v208, 0
    %v302 = vsel %vm267, %v209, 0
    %v305 = vsel %vm267, %v210, 0
    %v308 = vsel %vm267, %v211, 0
    %v311 = vsel %vm267, %v212, 0
    %v314 = vsel %vm267, %v213, 0
    %v317 = vsel %vm267, %v214, 0
    %v320 = vsel %vm267, %v215, 0
    %v323 = vsel %vm267, %v216, 0
    %v326 = vsel %vm267, %v217, 0
    %v329 = vsel %vm267, %v218, 0
    %v332 = vsel %vm267, %v219, 0
    %v335 = vsel %vm267, %v220, 0
    %v338 = vsel %vm267, %v221, 0
    %v341 = vsel %vm267, %v222, 0
    %v344 = vsel %vm267, %v223, 0
    %v347 = vsel %vm267, %v224, 0
    %v350 = vsel %vm267, %v225, 0
    %v353 = vsel %vm267, %v226, 0
    %v356 = vsel %vm267, %v227, 0
    %v359 = vsel %vm267, %v228, 0
    %v362 = vsel %vm267, %v229, 0
    %v365 = vsel %vm267, %v230, 0
    %v368 = vsel %vm267, %v231, 0
    %v371 = vsel %vm267, %v232, 0
    %v374 = vsel %vm267, %v233, 0
    %v377 = vsel %vm267, %v234, 0
    %v380 = vsel %vm267, %v235, 0
    %v383 = vsel %vm267, %v236, 0
    %v386 = vsel %vm267, %v237, 0
    %v389 = vsel %vm267, %v238, 0
    %v392 = vsel %vm267, %v239, 0
    %v395 = vsel %vm267, %v240, 0
    %v398 = vsel %vm267, %v241, 0
    %v401 = vsel %vm267, %v242, 0
    %v404 = vsel %vm267, %v243, 0
    %v407 = vsel %vm267, %v244, 0
    %v410 = vsel %vm267, %v245, 0
    %v413 = vsel %vm267, %v246, 0
    %v416 = vsel %vm267, %v247, 0
    %v419 = vsel %vm267, %v248, 0
    %v422 = vsel %vm267, %v249, 0
    %v425 = vsel %vm267, %v250, 0
    %v428 = vsel %vm267, %v251, 0
    %v431 = vsel %vm267, %v252, 0
    %v434 = vsel %vm267, %v253, 0
    %v437 = vsel %vm267, %v254, 0
    %v440 = vsel %vm267, %v255, 0
    %v443 = vsel %vm267, %v256, 0
    %v446 = vsel %vm267, %v257, 0
    %v449 = vsel %vm267, %v258, 0
    %v452 = vsel %vm267, %v259, 0
    %v455 = vsel %vm267, %v260, 0
    %v458 = vsel %vm267, %v261, 0
    %v461 = vsel %vm267, %v262, 0
    %v464 = vsel %vm267, %v263, 0
    %v467 = vsel %vm267, %v264, 0
    %v470 = vsel %vm267, %v265, 0
    %472 = vmatpush.xpose.msra.mxu0 %v326
    %473 = vmatpush.xpose.msra.mxu0 %v323
    %474 = vmatpush.xpose.msra.mxu0 %v320
    %475 = vmatpush.xpose.msra.mxu0 %v317
    %476 = vmatpush.xpose.msra.mxu0 %v314
    %477 = vmatpush.xpose.msra.mxu0 %v311
    %478 = vmatpush.xpose.msra.mxu0 %v308
    %479 = vmatpush.xpose.msra.mxu0 %v305
    %480 = vmatpush.xpose.msra.mxu0 %v302
    %481 = vmatpush.xpose.msra.mxu0 %v299
    %482 = vmatpush.xpose.msra.mxu0 %v296
    %483 = vmatpush.xpose.msra.mxu0 %v293
    %484 = vmatpush.xpose.msra.mxu0 %v290
    %485 = vmatpush.xpose.msra.mxu0 %v287
    %486 = vmatpush.xpose.msra.mxu0 %v284
    %487 = vmatpush.xpose.msra.mxu0 %v281
    %488 = vmatmul.f32.gmra.mxu0 %v269
    %v489 = vpop.f32.mrf.mxu0
    %v490 = vadd.f32 0.0, %v489
    %491 = vmatmul.f32.gmra.mxu0 %v272
    %v492 = vpop.f32.mrf.mxu0
    %v493 = vadd.f32 0.0, %v492
    %494 = vmatmul.f32.gmra.mxu0 %v275
    %v495 = vpop.f32.mrf.mxu0
    %v496 = vadd.f32 0.0, %v495
    %497 = vmatmul.f32.gmra.mxu0 %v278
    %v498 = vpop.f32.mrf.mxu0
    %v499 = vadd.f32 0.0, %v498
    %500 = vdwg.mxu0
    %501 = vmatpush.xpose.msra.mxu0 %v374
    %502 = vmatpush.xpose.msra.mxu0 %v371
    %503 = vmatpush.xpose.msra.mxu0 %v368
    %504 = vmatpush.xpose.msra.mxu0 %v365
    %505 = vmatpush.xpose.msra.mxu0 %v362
    %506 = vmatpush.xpose.msra.mxu0 %v359
    %507 = vmatpush.xpose.msra.mxu0 %v356
    %508 = vmatpush.xpose.msra.mxu0 %v353
    %509 = vmatpush.xpose.msra.mxu0 %v350
    %510 = vmatpush.xpose.msra.mxu0 %v347
    %511 = vmatpush.xpose.msra.mxu0 %v344
    %512 = vmatpush.xpose.msra.mxu0 %v341
    %513 = vmatpush.xpose.msra.mxu0 %v338
    %514 = vmatpush.xpose.msra.mxu0 %v335
    %515 = vmatpush.xpose.msra.mxu0 %v332
    %516 = vmatpush.xpose.msra.mxu0 %v329
    %517 = vmatmul.f32.gmra.mxu0 %v269
    %v518 = vpop.f32.mrf.mxu0
    %v519 = vadd.f32 0.0, %v518
    %520 = vmatmul.f32.gmra.mxu0 %v272
    %v521 = vpop.f32.mrf.mxu0
    %v522 = vadd.f32 0.0, %v521
    %523 = vmatmul.f32.gmra.mxu0 %v275
    %v524 = vpop.f32.mrf.mxu0
    %v525 = vadd.f32 0.0, %v524
    %526 = vmatmul.f32.gmra.mxu0 %v278
    %v527 = vpop.f32.mrf.mxu0
    %v528 = vadd.f32 0.0, %v527
    %529 = vdwg.mxu0
    %530 = vmatpush.xpose.msra.mxu0 %v422
    %531 = vmatpush.xpose.msra.mxu0 %v419
    %532 = vmatpush.xpose.msra.mxu0 %v416
    %533 = vmatpush.xpose.msra.mxu0 %v413
    %534 = vmatpush.xpose.msra.mxu0 %v410
    %535 = vmatpush.xpose.msra.mxu0 %v407
    %536 = vmatpush.xpose.msra.mxu0 %v404
    %537 = vmatpush.xpose.msra.mxu0 %v401
    %538 = vmatpush.xpose.msra.mxu0 %v398
    %539 = vmatpush.xpose.msra.mxu0 %v395
    %540 = vmatpush.xpose.msra.mxu0 %v392
    %541 = vmatpush.xpose.msra.mxu0 %v389
    %542 = vmatpush.xpose.msra.mxu0 %v386
    %543 = vmatpush.xpose.msra.mxu0 %v383
    %544 = vmatpush.xpose.msra.mxu0 %v380
    %545 = vmatpush.xpose.msra.mxu0 %v377
    %546 = vmatmul.f32.gmra.mxu0 %v269
    %v547 = vpop.f32.mrf.mxu0
    %v548 = vadd.f32 0.0, %v547
    %549 = vmatmul.f32.gmra.mxu0 %v272
    %v550 = vpop.f32.mrf.mxu0
    %v551 = vadd.f32 0.0, %v550
    %552 = vmatmul.f32.gmra.mxu0 %v275
    %v553 = vpop.f32.mrf.mxu0
    %v554 = vadd.f32 0.0, %v553
    %555 = vmatmul.f32.gmra.mxu0 %v278
    %v556 = vpop.f32.mrf.mxu0
    %v557 = vadd.f32 0.0, %v556
    %558 = vdwg.mxu0
    %559 = vmatpush.xpose.msra.mxu0 %v470
    %560 = vmatpush.xpose.msra.mxu0 %v467
    %561 = vmatpush.xpose.msra.mxu0 %v464
    %562 = vmatpush.xpose.msra.mxu0 %v461
    %563 = vmatpush.xpose.msra.mxu0 %v458
    %564 = vmatpush.xpose.msra.mxu0 %v455
    %565 = vmatpush.xpose.msra.mxu0 %v452
    %566 = vmatpush.xpose.msra.mxu0 %v449
    %567 = vmatpush.xpose.msra.mxu0 %v446
    %568 = vmatpush.xpose.msra.mxu0 %v443
    %569 = vmatpush.xpose.msra.mxu0 %v440
    %570 = vmatpush.xpose.msra.mxu0 %v437
    %571 = vmatpush.xpose.msra.mxu0 %v434
    %572 = vmatpush.xpose.msra.mxu0 %v431
    %573 = vmatpush.xpose.msra.mxu0 %v428
    %574 = vmatpush.xpose.msra.mxu0 %v425
    %575 = vmatmul.f32.gmra.mxu0 %v269
    %v576 = vpop.f32.mrf.mxu0
    %v577 = vadd.f32 0.0, %v576
    %578 = vmatmul.f32.gmra.mxu0 %v272
    %v579 = vpop.f32.mrf.mxu0
    %v580 = vadd.f32 0.0, %v579
    %581 = vmatmul.f32.gmra.mxu0 %v275
    %v582 = vpop.f32.mrf.mxu0
    %v583 = vadd.f32 0.0, %v582
    %584 = vmatmul.f32.gmra.mxu0 %v278
    %v585 = vpop.f32.mrf.mxu0
    %v586 = vadd.f32 0.0, %v585
    %587 = vdwg.mxu0
    %vm588 = vweird.f32 %v490
    %vm589 = vweird.f32 %v519
    %vm590 = vweird.f32 %v548
    %vm591 = vweird.f32 %v577
    %vm592 = vweird.f32 %v493
    %vm593 = vweird.f32 %v522
    %vm594 = vweird.f32 %v551
    %vm595 = vweird.f32 %v580
    %vm596 = vweird.f32 %v496
    %vm597 = vweird.f32 %v525
    %vm598 = vweird.f32 %v554
    %vm599 = vweird.f32 %v583
    %vm600 = vweird.f32 %v499
    %vm601 = vweird.f32 %v528
    %vm602 = vweird.f32 %v557
    %vm603 = vweird.f32 %v586
    %vm604 = vmxor %vm588, 1
    %vm605 = vmxor %vm589, 1
    %vm606 = vmxor %vm590, 1
    %vm607 = vmxor %vm591, 1
    %vm608 = vmxor %vm592, 1
    %vm609 = vmxor %vm593, 1
    %vm610 = vmxor %vm594, 1
    %vm611 = vmxor %vm595, 1
    %vm612 = vmxor %vm596, 1
    %vm613 = vmxor %vm597, 1
    %vm614 = vmxor %vm598, 1
    %vm615 = vmxor %vm599, 1
    %vm616 = vmxor %vm600, 1
    %vm617 = vmxor %vm601, 1
    %vm618 = vmxor %vm602, 1
    %vm619 = vmxor %vm603, 1
    %v620 = vsel %vm604, %v490, 0.0
    %v621 = vsel %vm605, %v519, 0.0
    %v622 = vsel %vm606, %v548, 0.0
    %v623 = vsel %vm607, %v577, 0.0
    %v624 = vsel %vm608, %v493, 0.0
    %v625 = vsel %vm609, %v522, 0.0
    %v626 = vsel %vm610, %v551, 0.0
    %v627 = vsel %vm611, %v580, 0.0
    %v628 = vsel %vm612, %v496, 0.0
    %v629 = vsel %vm613, %v525, 0.0
    %v630 = vsel %vm614, %v554, 0.0
    %v631 = vsel %vm615, %v583, 0.0
    %v632 = vsel %vm616, %v499, 0.0
    %v633 = vsel %vm617, %v528, 0.0
    %v634 = vsel %vm618, %v557, 0.0
    %v635 = vsel %vm619, %v586, 0.0
    %v637 = vperm.slane %v266, 0
    %v638 = vperm.slane %v266, 1
    %v639 = vperm.slane %v266, 2
    %v640 = vperm.slane %v266, 3
    %646 = vset.pattern.permute.xlu0 0
    %647 = vperm.xlu0 %646, %v198
    %v648 = vpop.permute.xlu0 %647
    %651 = vset.pattern.permute.xlu0 0
    %652 = vperm.xlu0 %651, %v199
    %v653 = vpop.permute.xlu0 %652
    %656 = vset.pattern.permute.xlu0 0
    %657 = vperm.xlu0 %656, %v200
    %v658 = vpop.permute.xlu0 %657
    %661 = vset.pattern.permute.xlu0 0
    %662 = vperm.xlu0 %661, %v201
    %v663 = vpop.permute.xlu0 %662
    %v665 = vadd.f32 %v637, %v648
    %v666 = vadd.f32 %v638, %v648
    %v667 = vadd.f32 %v639, %v648
    %v668 = vadd.f32 %v640, %v648
    %v669 = vadd.f32 %v637, %v653
    %v670 = vadd.f32 %v638, %v653
    %v671 = vadd.f32 %v639, %v653
    %v672 = vadd.f32 %v640, %v653
    %v673 = vadd.f32 %v637, %v658
    %v674 = vadd.f32 %v638, %v658
    %v675 = vadd.f32 %v639, %v658
    %v676 = vadd.f32 %v640, %v658
    %v677 = vadd.f32 %v637, %v663
    %v678 = vadd.f32 %v638, %v663
    %v679 = vadd.f32 %v639, %v663
    %v680 = vadd.f32 %v640, %v663
    %v681 = vmul.f32 %v620, 2.0
    %v682 = vmul.f32 %v621, 2.0
    %v683 = vmul.f32 %v622, 2.0
    %v684 = vmul.f32 %v623, 2.0
    %v685 = vmul.f32 %v624, 2.0
    %v686 = vmul.f32 %v625, 2.0
    %v687 = vmul.f32 %v626, 2.0
    %v688 = vmul.f32 %v627, 2.0
    %v689 = vmul.f32 %v628, 2.0
    %v690 = vmul.f32 %v629, 2.0
    %v691 = vmul.f32 %v630, 2.0
    %v692 = vmul.f32 %v631, 2.0
    %v693 = vmul.f32 %v632, 2.0
    %v694 = vmul.f32 %v633, 2.0
    %v695 = vmul.f32 %v634, 2.0
    %v696 = vmul.f32 %v635, 2.0
    %v697 = vsub.f32 %v665, %v681
    %v698 = vsub.f32 %v666, %v682
    %v699 = vsub.f32 %v667, %v683
    %v700 = vsub.f32 %v668, %v684
    %v701 = vsub.f32 %v669, %v685
    %v702 = vsub.f32 %v670, %v686
    %v703 = vsub.f32 %v671, %v687
    %v704 = vsub.f32 %v672, %v688
    %v705 = vsub.f32 %v673, %v689
    %v706 = vsub.f32 %v674, %v690
    %v707 = vsub.f32 %v675, %v691
    %v708 = vsub.f32 %v676, %v692
    %v709 = vsub.f32 %v677, %v693
    %v710 = vsub.f32 %v678, %v694
    %v711 = vsub.f32 %v679, %v695
    %v712 = vsub.f32 %v680, %v696
    %vm713 = vweird.f32 %v697
    %vm714 = vweird.f32 %v698
    %vm715 = vweird.f32 %v699
    %vm716 = vweird.f32 %v700
    %vm717 = vweird.f32 %v701
    %vm718 = vweird.f32 %v702
    %vm719 = vweird.f32 %v703
    %vm720 = vweird.f32 %v704
    %vm721 = vweird.f32 %v705
    %vm722 = vweird.f32 %v706
    %vm723 = vweird.f32 %v707
    %vm724 = vweird.f32 %v708
    %vm725 = vweird.f32 %v709
    %vm726 = vweird.f32 %v710
    %vm727 = vweird.f32 %v711
    %vm728 = vweird.f32 %v712
    %vm729 = vmxor %vm713, 1
    %vm730 = vmxor %vm714, 1
    %vm731 = vmxor %vm715, 1
    %vm732 = vmxor %vm716, 1
    %vm733 = vmxor %vm717, 1
    %vm734 = vmxor %vm718, 1
    %vm735 = vmxor %vm719, 1
    %vm736 = vmxor %vm720, 1
    %vm737 = vmxor %vm721, 1
    %vm738 = vmxor %vm722, 1
    %vm739 = vmxor %vm723, 1
    %vm740 = vmxor %vm724, 1
    %vm741 = vmxor %vm725, 1
    %vm742 = vmxor %vm726, 1
    %vm743 = vmxor %vm727, 1
    %vm744 = vmxor %vm728, 1
    %v745 = vsel %vm729, %v697, 768.0
    %v746 = vsel %vm730, %v698, 768.0
    %v747 = vsel %vm731, %v699, 768.0
    %v748 = vsel %vm732, %v700, 768.0
    %v749 = vsel %vm733, %v701, 768.0
    %v750 = vsel %vm734, %v702, 768.0
    %v751 = vsel %vm735, %v703, 768.0
    %v752 = vsel %vm736, %v704, 768.0
    %v753 = vsel %vm737, %v705, 768.0
    %v754 = vsel %vm738, %v706, 768.0
    %v755 = vsel %vm739, %v707, 768.0
    %v756 = vsel %vm740, %v708, 768.0
    %v757 = vsel %vm741, %v709, 768.0
    %v758 = vsel %vm742, %v710, 768.0
    %v759 = vsel %vm743, %v711, 768.0
    %v760 = vsel %vm744, %v712, 768.0
    %v761 = vrcp.pop 32.0
    %v762 = vmul.f32 32.0, %v761
    %v763 = vsub.f32 1.0, %v762
    %v764 = vmul.f32 %v761, %v763
    %v765 = vadd.f32 %v761, %v764
    %vm766 = vweird.f32 %v761
    %v767 = vsel %vm766, %v761, %v765
    %v768 = vmul.f32 %v745, %v767
    %v769 = vmul.f32 %v746, %v767
    %v770 = vmul.f32 %v747, %v767
    %v771 = vmul.f32 %v748, %v767
    %v772 = vmul.f32 %v749, %v767
    %v773 = vmul.f32 %v750, %v767
    %v774 = vmul.f32 %v751, %v767
    %v775 = vmul.f32 %v752, %v767
    %v776 = vmul.f32 %v753, %v767
    %v777 = vmul.f32 %v754, %v767
    %v778 = vmul.f32 %v755, %v767
    %v779 = vmul.f32 %v756, %v767
    %v780 = vmul.f32 %v757, %v767
    %v781 = vmul.f32 %v758, %v767
    %v782 = vmul.f32 %v759, %v767
    %v783 = vmul.f32 %v760, %v767
    %vm784 = vweird.f32 %v768
    %vm785 = vweird.f32 %v769
    %vm786 = vweird.f32 %v770
    %vm787 = vweird.f32 %v771
    %vm788 = vweird.f32 %v772
    %vm789 = vweird.f32 %v773
    %vm790 = vweird.f32 %v774
    %vm791 = vweird.f32 %v775
    %vm792 = vweird.f32 %v776
    %vm793 = vweird.f32 %v777
    %vm794 = vweird.f32 %v778
    %vm795 = vweird.f32 %v779
    %vm796 = vweird.f32 %v780
    %vm797 = vweird.f32 %v781
    %vm798 = vweird.f32 %v782
    %vm799 = vweird.f32 %v783
    %vm800 = vmxor %vm784, 1
    %vm801 = vmxor %vm785, 1
    %vm802 = vmxor %vm786, 1
    %vm803 = vmxor %vm787, 1
    %vm804 = vmxor %vm788, 1
    %vm805 = vmxor %vm789, 1
    %vm806 = vmxor %vm790, 1
    %vm807 = vmxor %vm791, 1
    %vm808 = vmxor %vm792, 1
    %vm809 = vmxor %vm793, 1
    %vm810 = vmxor %vm794, 1
    %vm811 = vmxor %vm795, 1
    %vm812 = vmxor %vm796, 1
    %vm813 = vmxor %vm797, 1
    %vm814 = vmxor %vm798, 1
    %vm815 = vmxor %vm799, 1
    %v816 = vsel %vm800, %v768, 1.0
    %v817 = vsel %vm801, %v769, 1.0
    %v818 = vsel %vm802, %v770, 1.0
    %v819 = vsel %vm803, %v771, 1.0
    %v820 = vsel %vm804, %v772, 1.0
    %v821 = vsel %vm805, %v773, 1.0
    %v822 = vsel %vm806, %v774, 1.0
    %v823 = vsel %vm807, %v775, 1.0
    %v824 = vsel %vm808, %v776, 1.0
    %v825 = vsel %vm809, %v777, 1.0
    %v826 = vsel %vm810, %v778, 1.0
    %v827 = vsel %vm811, %v779, 1.0
    %v828 = vsel %vm812, %v780, 1.0
    %v829 = vsel %vm813, %v781, 1.0
    %v830 = vsel %vm814, %v782, 1.0
    %v831 = vsel %vm815, %v783, 1.0
    %v832 = vld [vmem:[%s5] sm:$0xff]
    %v833 = vld [vmem:[%s5 + $0x8] sm:$0xff]
    %v834 = vld [vmem:[%s5 + $0x10] sm:$0xff]
    %v835 = vld [vmem:[%s5 + $0x18] sm:$0xff]
    %837 = vset.pattern.permute.xlu0 0
    %838 = vperm.xlu0 %837, %v832
    %v839 = vpop.permute.xlu0 %838
    %842 = vset.pattern.permute.xlu0 0
    %843 = vperm.xlu0 %842, %v833
    %v844 = vpop.permute.xlu0 %843
    %847 = vset.pattern.permute.xlu0 0
    %848 = vperm.xlu0 %847, %v834
    %v849 = vpop.permute.xlu0 %848
    %852 = vset.pattern.permute.xlu0 0
    %853 = vperm.xlu0 %852, %v835
    %v854 = vpop.permute.xlu0 %853
    %v856 = vrcp.pop %v839
    %v857 = vmul.f32 %v839, %v856
    %v858 = vsub.f32 1.0, %v857
    %v859 = vmul.f32 %v856, %v858
    %v860 = vadd.f32 %v856, %v859
    %vm861 = vweird.f32 %v839
    %vm862 = vweird.f32 %v856
    %vm863 = vmor %vm861, %vm862
    %v864 = vsel %vm863, %v856, %v860
    %v865 = vand.u32 2147483647, %v839
    %vm866 = vcmp.eq.f32.partialorder %v865, 8.507059e+37
    %v867 = vand.u32 %v839, 2147483648
    %v868 = vor.u32 1.1754944e-38, %v867
    %v869 = vsel %vm866, %v868, %v864
    %v870 = vmul.f32 %v816, %v869
    %v871 = vmul.f32 %v817, %v869
    %v872 = vmul.f32 %v818, %v869
    %v873 = vmul.f32 %v819, %v869
    %v874 = vrcp.pop %v844
    %v875 = vmul.f32 %v844, %v874
    %v876 = vsub.f32 1.0, %v875
    %v877 = vmul.f32 %v874, %v876
    %v878 = vadd.f32 %v874, %v877
    %vm879 = vweird.f32 %v844
    %vm880 = vweird.f32 %v874
    %vm881 = vmor %vm879, %vm880
    %v882 = vsel %vm881, %v874, %v878
    %v883 = vand.u32 2147483647, %v844
    %vm884 = vcmp.eq.f32.partialorder %v883, 8.507059e+37
    %v885 = vand.u32 %v844, 2147483648
    %v886 = vor.u32 1.1754944e-38, %v885
    %v887 = vsel %vm884, %v886, %v882
    %v888 = vmul.f32 %v820, %v887
    %v889 = vmul.f32 %v821, %v887
    %v890 = vmul.f32 %v822, %v887
    %v891 = vmul.f32 %v823, %v887
    %v892 = vrcp.pop %v849
    %v893 = vmul.f32 %v849, %v892
    %v894 = vsub.f32 1.0, %v893
    %v895 = vmul.f32 %v892, %v894
    %v896 = vadd.f32 %v892, %v895
    %vm897 = vweird.f32 %v849
    %vm898 = vweird.f32 %v892
    %vm899 = vmor %vm897, %vm898
    %v900 = vsel %vm899, %v892, %v896
    %v901 = vand.u32 2147483647, %v849
    %vm902 = vcmp.eq.f32.partialorder %v901, 8.507059e+37
    %v903 = vand.u32 %v849, 2147483648
    %v904 = vor.u32 1.1754944e-38, %v903
    %v905 = vsel %vm902, %v904, %v900
    %v906 = vmul.f32 %v824, %v905
    %v907 = vmul.f32 %v825, %v905
    %v908 = vmul.f32 %v826, %v905
    %v909 = vmul.f32 %v827, %v905
    %v910 = vrcp.pop %v854
    %v911 = vmul.f32 %v854, %v910
    %v912 = vsub.f32 1.0, %v911
    %v913 = vmul.f32 %v910, %v912
    %v914 = vadd.f32 %v910, %v913
    %vm915 = vweird.f32 %v854
    %vm916 = vweird.f32 %v910
    %vm917 = vmor %vm915, %vm916
    %v918 = vsel %vm917, %v910, %v914
    %v919 = vand.u32 2147483647, %v854
    %vm920 = vcmp.eq.f32.partialorder %v919, 8.507059e+37
    %v921 = vand.u32 %v854, 2147483648
    %v922 = vor.u32 1.1754944e-38, %v921
    %v923 = vsel %vm920, %v922, %v918
    %v924 = vmul.f32 %v828, %v923
    %v925 = vmul.f32 %v829, %v923
    %v926 = vmul.f32 %v830, %v923
    %v927 = vmul.f32 %v831, %v923
    %vm928 = vweird.f32 %v870
    %vm929 = vweird.f32 %v871
    %vm930 = vweird.f32 %v872
    %vm931 = vweird.f32 %v873
    %vm932 = vweird.f32 %v888
    %vm933 = vweird.f32 %v889
    %vm934 = vweird.f32 %v890
    %vm935 = vweird.f32 %v891
    %vm936 = vweird.f32 %v906
    %vm937 = vweird.f32 %v907
    %vm938 = vweird.f32 %v908
    %vm939 = vweird.f32 %v909
    %vm940 = vweird.f32 %v924
    %vm941 = vweird.f32 %v925
    %vm942 = vweird.f32 %v926
    %vm943 = vweird.f32 %v927
    %vm944 = vmxor %vm928, 1
    %vm945 = vmxor %vm929, 1
    %vm946 = vmxor %vm930, 1
    %vm947 = vmxor %vm931, 1
    %vm948 = vmxor %vm932, 1
    %vm949 = vmxor %vm933, 1
    %vm950 = vmxor %vm934, 1
    %vm951 = vmxor %vm935, 1
    %vm952 = vmxor %vm936, 1
    %vm953 = vmxor %vm937, 1
    %vm954 = vmxor %vm938, 1
    %vm955 = vmxor %vm939, 1
    %vm956 = vmxor %vm940, 1
    %vm957 = vmxor %vm941, 1
    %vm958 = vmxor %vm942, 1
    %vm959 = vmxor %vm943, 1
    %v960 = vsel %vm944, %v870, 1.0
    %v961 = vsel %vm945, %v871, 1.0
    %v962 = vsel %vm946, %v872, 1.0
    %v963 = vsel %vm947, %v873, 1.0
    %v964 = vsel %vm948, %v888, 1.0
    %v965 = vsel %vm949, %v889, 1.0
    %v966 = vsel %vm950, %v890, 1.0
    %v967 = vsel %vm951, %v891, 1.0
    %v968 = vsel %vm952, %v906, 1.0
    %v969 = vsel %vm953, %v907, 1.0
    %v970 = vsel %vm954, %v908, 1.0
    %v971 = vsel %vm955, %v909, 1.0
    %v972 = vsel %vm956, %v924, 1.0
    %v973 = vsel %vm957, %v925, 1.0
    %v974 = vsel %vm958, %v926, 1.0
    %v975 = vsel %vm959, %v927, 1.0
    %v976 = vmul.f32 %v960, %v960
    %v977 = vmul.f32 %v961, %v961
    %v978 = vmul.f32 %v962, %v962
    %v979 = vmul.f32 %v963, %v963
    %v980 = vmul.f32 %v964, %v964
    %v981 = vmul.f32 %v965, %v965
    %v982 = vmul.f32 %v966, %v966
    %v983 = vmul.f32 %v967, %v967
    %v984 = vmul.f32 %v968, %v968
    %v985 = vmul.f32 %v969, %v969
    %v986 = vmul.f32 %v970, %v970
    %v987 = vmul.f32 %v971, %v971
    %v988 = vmul.f32 %v972, %v972
    %v989 = vmul.f32 %v973, %v973
    %v990 = vmul.f32 %v974, %v974
    %v991 = vmul.f32 %v975, %v975
    %v992 = vmul.f32 %v976, %v976
    %v993 = vmul.f32 %v977, %v977
    %v994 = vmul.f32 %v978, %v978
    %v995 = vmul.f32 %v979, %v979
    %v996 = vmul.f32 %v980, %v980
    %v997 = vmul.f32 %v981, %v981
    %v998 = vmul.f32 %v982, %v982
    %v999 = vmul.f32 %v983, %v983
    %v1000 = vmul.f32 %v984, %v984
    %v1001 = vmul.f32 %v985, %v985
    %v1002 = vmul.f32 %v986, %v986
    %v1003 = vmul.f32 %v987, %v987
    %v1004 = vmul.f32 %v988, %v988
    %v1005 = vmul.f32 %v989, %v989
    %v1006 = vmul.f32 %v990, %v990
    %v1007 = vmul.f32 %v991, %v991
    %v1008 = vmul.f32 %v992, %v992
    %v1009 = vmul.f32 %v993, %v993
    %v1010 = vmul.f32 %v994, %v994
    %v1011 = vmul.f32 %v995, %v995
    %v1012 = vmul.f32 %v996, %v996
    %v1013 = vmul.f32 %v997, %v997
    %v1014 = vmul.f32 %v998, %v998
    %v1015 = vmul.f32 %v999, %v999
    %v1016 = vmul.f32 %v1000, %v1000
    %v1017 = vmul.f32 %v1001, %v1001
    %v1018 = vmul.f32 %v1002, %v1002
    %v1019 = vmul.f32 %v1003, %v1003
    %v1020 = vmul.f32 %v1004, %v1004
    %v1021 = vmul.f32 %v1005, %v1005
    %v1022 = vmul.f32 %v1006, %v1006
    %v1023 = vmul.f32 %v1007, %v1007
    %v1024 = vmul.f32 %v1008, %v1008
    %v1025 = vmul.f32 %v1009, %v1009
    %v1026 = vmul.f32 %v1010, %v1010
    %v1027 = vmul.f32 %v1011, %v1011
    %v1028 = vmul.f32 %v1012, %v1012
    %v1029 = vmul.f32 %v1013, %v1013
    %v1030 = vmul.f32 %v1014, %v1014
    %v1031 = vmul.f32 %v1015, %v1015
    %v1032 = vmul.f32 %v1016, %v1016
    %v1033 = vmul.f32 %v1017, %v1017
    %v1034 = vmul.f32 %v1018, %v1018
    %v1035 = vmul.f32 %v1019, %v1019
    %v1036 = vmul.f32 %v1020, %v1020
    %v1037 = vmul.f32 %v1021, %v1021
    %v1038 = vmul.f32 %v1022, %v1022
    %v1039 = vmul.f32 %v1023, %v1023
    %v1040 = vmul.f32 %v1024, %v1024
    %v1041 = vmul.f32 %v1025, %v1025
    %v1042 = vmul.f32 %v1026, %v1026
    %v1043 = vmul.f32 %v1027, %v1027
    %v1044 = vmul.f32 %v1028, %v1028
    %v1045 = vmul.f32 %v1029, %v1029
    %v1046 = vmul.f32 %v1030, %v1030
    %v1047 = vmul.f32 %v1031, %v1031
    %v1048 = vmul.f32 %v1032, %v1032
    %v1049 = vmul.f32 %v1033, %v1033
    %v1050 = vmul.f32 %v1034, %v1034
    %v1051 = vmul.f32 %v1035, %v1035
    %v1052 = vmul.f32 %v1036, %v1036
    %v1053 = vmul.f32 %v1037, %v1037
    %v1054 = vmul.f32 %v1038, %v1038
    %v1055 = vmul.f32 %v1039, %v1039
    %v1056 = vrcp.pop %v1040
    %v1057 = vmul.f32 %v1040, %v1056
    %v1058 = vsub.f32 1.0, %v1057
    %v1059 = vmul.f32 %v1056, %v1058
    %v1060 = vadd.f32 %v1056, %v1059
    %vm1061 = vweird.f32 %v1040
    %vm1062 = vweird.f32 %v1056
    %vm1063 = vmor %vm1061, %vm1062
    %v1064 = vsel %vm1063, %v1056, %v1060
    %v1065 = vand.u32 2147483647, %v1040
    %vm1066 = vcmp.eq.f32.partialorder %v1065, 8.507059e+37
    %v1067 = vand.u32 %v1040, 2147483648
    %v1068 = vor.u32 1.1754944e-38, %v1067
    %v1069 = vsel %vm1066, %v1068, %v1064
    %v1070 = vmul.f32 1.0, %v1069
    %v1071 = vrcp.pop %v1041
    %v1072 = vmul.f32 %v1041, %v1071
    %v1073 = vsub.f32 1.0, %v1072
    %v1074 = vmul.f32 %v1071, %v1073
    %v1075 = vadd.f32 %v1071, %v1074
    %vm1076 = vweird.f32 %v1041
    %vm1077 = vweird.f32 %v1071
    %vm1078 = vmor %vm1076, %vm1077
    %v1079 = vsel %vm1078, %v1071, %v1075
    %v1080 = vand.u32 2147483647, %v1041
    %vm1081 = vcmp.eq.f32.partialorder %v1080, 8.507059e+37
    %v1082 = vand.u32 %v1041, 2147483648
    %v1083 = vor.u32 1.1754944e-38, %v1082
    %v1084 = vsel %vm1081, %v1083, %v1079
    %v1085 = vmul.f32 1.0, %v1084
    %v1086 = vrcp.pop %v1042
    %v1087 = vmul.f32 %v1042, %v1086
    %v1088 = vsub.f32 1.0, %v1087
    %v1089 = vmul.f32 %v1086, %v1088
    %v1090 = vadd.f32 %v1086, %v1089
    %vm1091 = vweird.f32 %v1042
    %vm1092 = vweird.f32 %v1086
    %vm1093 = vmor %vm1091, %vm1092
    %v1094 = vsel %vm1093, %v1086, %v1090
    %v1095 = vand.u32 2147483647, %v1042
    %vm1096 = vcmp.eq.f32.partialorder %v1095, 8.507059e+37
    %v1097 = vand.u32 %v1042, 2147483648
    %v1098 = vor.u32 1.1754944e-38, %v1097
    %v1099 = vsel %vm1096, %v1098, %v1094
    %v1100 = vmul.f32 1.0, %v1099
    %v1101 = vrcp.pop %v1043
    %v1102 = vmul.f32 %v1043, %v1101
    %v1103 = vsub.f32 1.0, %v1102
    %v1104 = vmul.f32 %v1101, %v1103
    %v1105 = vadd.f32 %v1101, %v1104
    %vm1106 = vweird.f32 %v1043
    %vm1107 = vweird.f32 %v1101
    %vm1108 = vmor %vm1106, %vm1107
    %v1109 = vsel %vm1108, %v1101, %v1105
    %v1110 = vand.u32 2147483647, %v1043
    %vm1111 = vcmp.eq.f32.partialorder %v1110, 8.507059e+37
    %v1112 = vand.u32 %v1043, 2147483648
    %v1113 = vor.u32 1.1754944e-38, %v1112
    %v1114 = vsel %vm1111, %v1113, %v1109
    %v1115 = vmul.f32 1.0, %v1114
    %v1116 = vrcp.pop %v1044
    %v1117 = vmul.f32 %v1044, %v1116
    %v1118 = vsub.f32 1.0, %v1117
    %v1119 = vmul.f32 %v1116, %v1118
    %v1120 = vadd.f32 %v1116, %v1119
    %vm1121 = vweird.f32 %v1044
    %vm1122 = vweird.f32 %v1116
    %vm1123 = vmor %vm1121, %vm1122
    %v1124 = vsel %vm1123, %v1116, %v1120
    %v1125 = vand.u32 2147483647, %v1044
    %vm1126 = vcmp.eq.f32.partialorder %v1125, 8.507059e+37
    %v1127 = vand.u32 %v1044, 2147483648
    %v1128 = vor.u32 1.1754944e-38, %v1127
    %v1129 = vsel %vm1126, %v1128, %v1124
    %v1130 = vmul.f32 1.0, %v1129
    %v1131 = vrcp.pop %v1045
    %v1132 = vmul.f32 %v1045, %v1131
    %v1133 = vsub.f32 1.0, %v1132
    %v1134 = vmul.f32 %v1131, %v1133
    %v1135 = vadd.f32 %v1131, %v1134
    %vm1136 = vweird.f32 %v1045
    %vm1137 = vweird.f32 %v1131
    %vm1138 = vmor %vm1136, %vm1137
    %v1139 = vsel %vm1138, %v1131, %v1135
    %v1140 = vand.u32 2147483647, %v1045
    %vm1141 = vcmp.eq.f32.partialorder %v1140, 8.507059e+37
    %v1142 = vand.u32 %v1045, 2147483648
    %v1143 = vor.u32 1.1754944e-38, %v1142
    %v1144 = vsel %vm1141, %v1143, %v1139
    %v1145 = vmul.f32 1.0, %v1144
    %v1146 = vrcp.pop %v1046
    %v1147 = vmul.f32 %v1046, %v1146
    %v1148 = vsub.f32 1.0, %v1147
    %v1149 = vmul.f32 %v1146, %v1148
    %v1150 = vadd.f32 %v1146, %v1149
    %vm1151 = vweird.f32 %v1046
    %vm1152 = vweird.f32 %v1146
    %vm1153 = vmor %vm1151, %vm1152
    %v1154 = vsel %vm1153, %v1146, %v1150
    %v1155 = vand.u32 2147483647, %v1046
    %vm1156 = vcmp.eq.f32.partialorder %v1155, 8.507059e+37
    %v1157 = vand.u32 %v1046, 2147483648
    %v1158 = vor.u32 1.1754944e-38, %v1157
    %v1159 = vsel %vm1156, %v1158, %v1154
    %v1160 = vmul.f32 1.0, %v1159
    %v1161 = vrcp.pop %v1047
    %v1162 = vmul.f32 %v1047, %v1161
    %v1163 = vsub.f32 1.0, %v1162
    %v1164 = vmul.f32 %v1161, %v1163
    %v1165 = vadd.f32 %v1161, %v1164
    %vm1166 = vweird.f32 %v1047
    %vm1167 = vweird.f32 %v1161
    %vm1168 = vmor %vm1166, %vm1167
    %v1169 = vsel %vm1168, %v1161, %v1165
    %v1170 = vand.u32 2147483647, %v1047
    %vm1171 = vcmp.eq.f32.partialorder %v1170, 8.507059e+37
    %v1172 = vand.u32 %v1047, 2147483648
    %v1173 = vor.u32 1.1754944e-38, %v1172
    %v1174 = vsel %vm1171, %v1173, %v1169
    %v1175 = vmul.f32 1.0, %v1174
    %v1176 = vrcp.pop %v1048
    %v1177 = vmul.f32 %v1048, %v1176
    %v1178 = vsub.f32 1.0, %v1177
    %v1179 = vmul.f32 %v1176, %v1178
    %v1180 = vadd.f32 %v1176, %v1179
    %vm1181 = vweird.f32 %v1048
    %vm1182 = vweird.f32 %v1176
    %vm1183 = vmor %vm1181, %vm1182
    %v1184 = vsel %vm1183, %v1176, %v1180
    %v1185 = vand.u32 2147483647, %v1048
    %vm1186 = vcmp.eq.f32.partialorder %v1185, 8.507059e+37
    %v1187 = vand.u32 %v1048, 2147483648
    %v1188 = vor.u32 1.1754944e-38, %v1187
    %v1189 = vsel %vm1186, %v1188, %v1184
    %v1190 = vmul.f32 1.0, %v1189
    %v1191 = vrcp.pop %v1049
    %v1192 = vmul.f32 %v1049, %v1191
    %v1193 = vsub.f32 1.0, %v1192
    %v1194 = vmul.f32 %v1191, %v1193
    %v1195 = vadd.f32 %v1191, %v1194
    %vm1196 = vweird.f32 %v1049
    %vm1197 = vweird.f32 %v1191
    %vm1198 = vmor %vm1196, %vm1197
    %v1199 = vsel %vm1198, %v1191, %v1195
    %v1200 = vand.u32 2147483647, %v1049
    %vm1201 = vcmp.eq.f32.partialorder %v1200, 8.507059e+37
    %v1202 = vand.u32 %v1049, 2147483648
    %v1203 = vor.u32 1.1754944e-38, %v1202
    %v1204 = vsel %vm1201, %v1203, %v1199
    %v1205 = vmul.f32 1.0, %v1204
    %v1206 = vrcp.pop %v1050
    %v1207 = vmul.f32 %v1050, %v1206
    %v1208 = vsub.f32 1.0, %v1207
    %v1209 = vmul.f32 %v1206, %v1208
    %v1210 = vadd.f32 %v1206, %v1209
    %vm1211 = vweird.f32 %v1050
    %vm1212 = vweird.f32 %v1206
    %vm1213 = vmor %vm1211, %vm1212
    %v1214 = vsel %vm1213, %v1206, %v1210
    %v1215 = vand.u32 2147483647, %v1050
    %vm1216 = vcmp.eq.f32.partialorder %v1215, 8.507059e+37
    %v1217 = vand.u32 %v1050, 2147483648
    %v1218 = vor.u32 1.1754944e-38, %v1217
    %v1219 = vsel %vm1216, %v1218, %v1214
    %v1220 = vmul.f32 1.0, %v1219
    %v1221 = vrcp.pop %v1051
    %v1222 = vmul.f32 %v1051, %v1221
    %v1223 = vsub.f32 1.0, %v1222
    %v1224 = vmul.f32 %v1221, %v1223
    %v1225 = vadd.f32 %v1221, %v1224
    %vm1226 = vweird.f32 %v1051
    %vm1227 = vweird.f32 %v1221
    %vm1228 = vmor %vm1226, %vm1227
    %v1229 = vsel %vm1228, %v1221, %v1225
    %v1230 = vand.u32 2147483647, %v1051
    %vm1231 = vcmp.eq.f32.partialorder %v1230, 8.507059e+37
    %v1232 = vand.u32 %v1051, 2147483648
    %v1233 = vor.u32 1.1754944e-38, %v1232
    %v1234 = vsel %vm1231, %v1233, %v1229
    %v1235 = vmul.f32 1.0, %v1234
    %v1236 = vrcp.pop %v1052
    %v1237 = vmul.f32 %v1052, %v1236
    %v1238 = vsub.f32 1.0, %v1237
    %v1239 = vmul.f32 %v1236, %v1238
    %v1240 = vadd.f32 %v1236, %v1239
    %vm1241 = vweird.f32 %v1052
    %vm1242 = vweird.f32 %v1236
    %vm1243 = vmor %vm1241, %vm1242
    %v1244 = vsel %vm1243, %v1236, %v1240
    %v1245 = vand.u32 2147483647, %v1052
    %vm1246 = vcmp.eq.f32.partialorder %v1245, 8.507059e+37
    %v1247 = vand.u32 %v1052, 2147483648
    %v1248 = vor.u32 1.1754944e-38, %v1247
    %v1249 = vsel %vm1246, %v1248, %v1244
    %v1250 = vmul.f32 1.0, %v1249
    %v1251 = vrcp.pop %v1053
    %v1252 = vmul.f32 %v1053, %v1251
    %v1253 = vsub.f32 1.0, %v1252
    %v1254 = vmul.f32 %v1251, %v1253
    %v1255 = vadd.f32 %v1251, %v1254
    %vm1256 = vweird.f32 %v1053
    %vm1257 = vweird.f32 %v1251
    %vm1258 = vmor %vm1256, %vm1257
    %v1259 = vsel %vm1258, %v1251, %v1255
    %v1260 = vand.u32 2147483647, %v1053
    %vm1261 = vcmp.eq.f32.partialorder %v1260, 8.507059e+37
    %v1262 = vand.u32 %v1053, 2147483648
    %v1263 = vor.u32 1.1754944e-38, %v1262
    %v1264 = vsel %vm1261, %v1263, %v1259
    %v1265 = vmul.f32 1.0, %v1264
    %v1266 = vrcp.pop %v1054
    %v1267 = vmul.f32 %v1054, %v1266
    %v1268 = vsub.f32 1.0, %v1267
    %v1269 = vmul.f32 %v1266, %v1268
    %v1270 = vadd.f32 %v1266, %v1269
    %vm1271 = vweird.f32 %v1054
    %vm1272 = vweird.f32 %v1266
    %vm1273 = vmor %vm1271, %vm1272
    %v1274 = vsel %vm1273, %v1266, %v1270
    %v1275 = vand.u32 2147483647, %v1054
    %vm1276 = vcmp.eq.f32.partialorder %v1275, 8.507059e+37
    %v1277 = vand.u32 %v1054, 2147483648
    %v1278 = vor.u32 1.1754944e-38, %v1277
    %v1279 = vsel %vm1276, %v1278, %v1274
    %v1280 = vmul.f32 1.0, %v1279
    %v1281 = vrcp.pop %v1055
    %v1282 = vmul.f32 %v1055, %v1281
    %v1283 = vsub.f32 1.0, %v1282
    %v1284 = vmul.f32 %v1281, %v1283
    %v1285 = vadd.f32 %v1281, %v1284
    %vm1286 = vweird.f32 %v1055
    %vm1287 = vweird.f32 %v1281
    %vm1288 = vmor %vm1286, %vm1287
    %v1289 = vsel %vm1288, %v1281, %v1285
    %v1290 = vand.u32 2147483647, %v1055
    %vm1291 = vcmp.eq.f32.partialorder %v1290, 8.507059e+37
    %v1292 = vand.u32 %v1055, 2147483648
    %v1293 = vor.u32 1.1754944e-38, %v1292
    %v1294 = vsel %vm1291, %v1293, %v1289
    %v1295 = vmul.f32 1.0, %v1294
    %vm1296 = vweird.f32 %v1070
    %vm1297 = vweird.f32 %v1085
    %vm1298 = vweird.f32 %v1100
    %vm1299 = vweird.f32 %v1115
    %vm1300 = vweird.f32 %v1130
    %vm1301 = vweird.f32 %v1145
    %vm1302 = vweird.f32 %v1160
    %vm1303 = vweird.f32 %v1175
    %vm1304 = vweird.f32 %v1190
    %vm1305 = vweird.f32 %v1205
    %vm1306 = vweird.f32 %v1220
    %vm1307 = vweird.f32 %v1235
    %vm1308 = vweird.f32 %v1250
    %vm1309 = vweird.f32 %v1265
    %vm1310 = vweird.f32 %v1280
    %vm1311 = vweird.f32 %v1295
    %vm1312 = vmxor %vm1296, 1
    %vm1313 = vmxor %vm1297, 1
    %vm1314 = vmxor %vm1298, 1
    %vm1315 = vmxor %vm1299, 1
    %vm1316 = vmxor %vm1300, 1
    %vm1317 = vmxor %vm1301, 1
    %vm1318 = vmxor %vm1302, 1
    %vm1319 = vmxor %vm1303, 1
    %vm1320 = vmxor %vm1304, 1
    %vm1321 = vmxor %vm1305, 1
    %vm1322 = vmxor %vm1306, 1
    %vm1323 = vmxor %vm1307, 1
    %vm1324 = vmxor %vm1308, 1
    %vm1325 = vmxor %vm1309, 1
    %vm1326 = vmxor %vm1310, 1
    %vm1327 = vmxor %vm1311, 1
    %v1328 = vsel %vm1312, %v1070, 1.0
    %v1329 = vsel %vm1313, %v1085, 1.0
    %v1330 = vsel %vm1314, %v1100, 1.0
    %v1331 = vsel %vm1315, %v1115, 1.0
    %v1332 = vsel %vm1316, %v1130, 1.0
    %v1333 = vsel %vm1317, %v1145, 1.0
    %v1334 = vsel %vm1318, %v1160, 1.0
    %v1335 = vsel %vm1319, %v1175, 1.0
    %v1336 = vsel %vm1320, %v1190, 1.0
    %v1337 = vsel %vm1321, %v1205, 1.0
    %v1338 = vsel %vm1322, %v1220, 1.0
    %v1339 = vsel %vm1323, %v1235, 1.0
    %v1340 = vsel %vm1324, %v1250, 1.0
    %v1341 = vsel %vm1325, %v1265, 1.0
    %v1342 = vsel %vm1326, %v1280, 1.0
    %v1343 = vsel %vm1327, %v1295, 1.0
    %v1344 = vld [vmem:[%s6] sm:$0xff]
    %v1345 = vld [vmem:[%s6 + $0x8] sm:$0xff]
    %v1346 = vld [vmem:[%s6 + $0x10] sm:$0xff]
    %v1347 = vld [vmem:[%s6 + $0x18] sm:$0xff]
    %1349 = vset.pattern.permute.xlu0 0
    %1350 = vperm.xlu0 %1349, %v1344
    %v1351 = vpop.permute.xlu0 %1350
    %1354 = vset.pattern.permute.xlu0 0
    %1355 = vperm.xlu0 %1354, %v1345
    %v1356 = vpop.permute.xlu0 %1355
    %1359 = vset.pattern.permute.xlu0 0
    %1360 = vperm.xlu0 %1359, %v1346
    %v1361 = vpop.permute.xlu0 %1360
    %1364 = vset.pattern.permute.xlu0 0
    %1365 = vperm.xlu0 %1364, %v1347
    %v1366 = vpop.permute.xlu0 %1365
    %v1368 = vrcp.pop %v1351
    %v1369 = vmul.f32 %v1351, %v1368
    %v1370 = vsub.f32 1.0, %v1369
    %v1371 = vmul.f32 %v1368, %v1370
    %v1372 = vadd.f32 %v1368, %v1371
    %vm1373 = vweird.f32 %v1351
    %vm1374 = vweird.f32 %v1368
    %vm1375 = vmor %vm1373, %vm1374
    %v1376 = vsel %vm1375, %v1368, %v1372
    %v1377 = vand.u32 2147483647, %v1351
    %vm1378 = vcmp.eq.f32.partialorder %v1377, 8.507059e+37
    %v1379 = vand.u32 %v1351, 2147483648
    %v1380 = vor.u32 1.1754944e-38, %v1379
    %v1381 = vsel %vm1378, %v1380, %v1376
    %v1382 = vmul.f32 %v1328, %v1381
    %v1383 = vmul.f32 %v1329, %v1381
    %v1384 = vmul.f32 %v1330, %v1381
    %v1385 = vmul.f32 %v1331, %v1381
    %v1386 = vrcp.pop %v1356
    %v1387 = vmul.f32 %v1356, %v1386
    %v1388 = vsub.f32 1.0, %v1387
    %v1389 = vmul.f32 %v1386, %v1388
    %v1390 = vadd.f32 %v1386, %v1389
    %vm1391 = vweird.f32 %v1356
    %vm1392 = vweird.f32 %v1386
    %vm1393 = vmor %vm1391, %vm1392
    %v1394 = vsel %vm1393, %v1386, %v1390
    %v1395 = vand.u32 2147483647, %v1356
    %vm1396 = vcmp.eq.f32.partialorder %v1395, 8.507059e+37
    %v1397 = vand.u32 %v1356, 2147483648
    %v1398 = vor.u32 1.1754944e-38, %v1397
    %v1399 = vsel %vm1396, %v1398, %v1394
    %v1400 = vmul.f32 %v1332, %v1399
    %v1401 = vmul.f32 %v1333, %v1399
    %v1402 = vmul.f32 %v1334, %v1399
    %v1403 = vmul.f32 %v1335, %v1399
    %v1404 = vrcp.pop %v1361
    %v1405 = vmul.f32 %v1361, %v1404
    %v1406 = vsub.f32 1.0, %v1405
    %v1407 = vmul.f32 %v1404, %v1406
    %v1408 = vadd.f32 %v1404, %v1407
    %vm1409 = vweird.f32 %v1361
    %vm1410 = vweird.f32 %v1404
    %vm1411 = vmor %vm1409, %vm1410
    %v1412 = vsel %vm1411, %v1404, %v1408
    %v1413 = vand.u32 2147483647, %v1361
    %vm1414 = vcmp.eq.f32.partialorder %v1413, 8.507059e+37
    %v1415 = vand.u32 %v1361, 2147483648
    %v1416 = vor.u32 1.1754944e-38, %v1415
    %v1417 = vsel %vm1414, %v1416, %v1412
    %v1418 = vmul.f32 %v1336, %v1417
    %v1419 = vmul.f32 %v1337, %v1417
    %v1420 = vmul.f32 %v1338, %v1417
    %v1421 = vmul.f32 %v1339, %v1417
    %v1422 = vrcp.pop %v1366
    %v1423 = vmul.f32 %v1366, %v1422
    %v1424 = vsub.f32 1.0, %v1423
    %v1425 = vmul.f32 %v1422, %v1424
    %v1426 = vadd.f32 %v1422, %v1425
    %vm1427 = vweird.f32 %v1366
    %vm1428 = vweird.f32 %v1422
    %vm1429 = vmor %vm1427, %vm1428
    %v1430 = vsel %vm1429, %v1422, %v1426
    %v1431 = vand.u32 2147483647, %v1366
    %vm1432 = vcmp.eq.f32.partialorder %v1431, 8.507059e+37
    %v1433 = vand.u32 %v1366, 2147483648
    %v1434 = vor.u32 1.1754944e-38, %v1433
    %v1435 = vsel %vm1432, %v1434, %v1430
    %v1436 = vmul.f32 %v1340, %v1435
    %v1437 = vmul.f32 %v1341, %v1435
    %v1438 = vmul.f32 %v1342, %v1435
    %v1439 = vmul.f32 %v1343, %v1435
    %vm1440 = vweird.f32 %v1382
    %vm1441 = vweird.f32 %v1383
    %vm1442 = vweird.f32 %v1384
    %vm1443 = vweird.f32 %v1385
    %vm1444 = vweird.f32 %v1400
    %vm1445 = vweird.f32 %v1401
    %vm1446 = vweird.f32 %v1402
    %vm1447 = vweird.f32 %v1403
    %vm1448 = vweird.f32 %v1418
    %vm1449 = vweird.f32 %v1419
    %vm1450 = vweird.f32 %v1420
    %vm1451 = vweird.f32 %v1421
    %vm1452 = vweird.f32 %v1436
    %vm1453 = vweird.f32 %v1437
    %vm1454 = vweird.f32 %v1438
    %vm1455 = vweird.f32 %v1439
    %vm1456 = vmxor %vm1440, 1
    %vm1457 = vmxor %vm1441, 1
    %vm1458 = vmxor %vm1442, 1
    %vm1459 = vmxor %vm1443, 1
    %vm1460 = vmxor %vm1444, 1
    %vm1461 = vmxor %vm1445, 1
    %vm1462 = vmxor %vm1446, 1
    %vm1463 = vmxor %vm1447, 1
    %vm1464 = vmxor %vm1448, 1
    %vm1465 = vmxor %vm1449, 1
    %vm1466 = vmxor %vm1450, 1
    %vm1467 = vmxor %vm1451, 1
    %vm1468 = vmxor %vm1452, 1
    %vm1469 = vmxor %vm1453, 1
    %vm1470 = vmxor %vm1454, 1
    %vm1471 = vmxor %vm1455, 1
    %v1472 = vsel %vm1456, %v1382, 0.0
    %v1473 = vsel %vm1457, %v1383, 0.0
    %v1474 = vsel %vm1458, %v1384, 0.0
    %v1475 = vsel %vm1459, %v1385, 0.0
    %v1476 = vsel %vm1460, %v1400, 0.0
    %v1477 = vsel %vm1461, %v1401, 0.0
    %v1478 = vsel %vm1462, %v1402, 0.0
    %v1479 = vsel %vm1463, %v1403, 0.0
    %v1480 = vsel %vm1464, %v1418, 0.0
    %v1481 = vsel %vm1465, %v1419, 0.0
    %v1482 = vsel %vm1466, %v1420, 0.0
    %v1483 = vsel %vm1467, %v1421, 0.0
    %v1484 = vsel %vm1468, %v1436, 0.0
    %v1485 = vsel %vm1469, %v1437, 0.0
    %v1486 = vsel %vm1470, %v1438, 0.0
    %v1487 = vsel %vm1471, %v1439, 0.0
    %v1488 = vadd.f32 %v1472, 1.9879135e-07
    %v1489 = vadd.f32 %v1473, 1.9879135e-07
    %v1490 = vadd.f32 %v1474, 1.9879135e-07
    %v1491 = vadd.f32 %v1475, 1.9879135e-07
    %v1492 = vadd.f32 %v1476, 1.9879135e-07
    %v1493 = vadd.f32 %v1477, 1.9879135e-07
    %v1494 = vadd.f32 %v1478, 1.9879135e-07
    %v1495 = vadd.f32 %v1479, 1.9879135e-07
    %v1496 = vadd.f32 %v1480, 1.9879135e-07
    %v1497 = vadd.f32 %v1481, 1.9879135e-07
    %v1498 = vadd.f32 %v1482, 1.9879135e-07
    %v1499 = vadd.f32 %v1483, 1.9879135e-07
    %v1500 = vadd.f32 %v1484, 1.9879135e-07
    %v1501 = vadd.f32 %v1485, 1.9879135e-07
    %v1502 = vadd.f32 %v1486, 1.9879135e-07
    %v1503 = vadd.f32 %v1487, 1.9879135e-07
    %v1504 = vlog2.pop %v1488
    %v1505 = vmul.f32 %v1504, 0.6931472
    %v1506 = vlog2.pop %v1489
    %v1507 = vmul.f32 %v1506, 0.6931472
    %v1508 = vlog2.pop %v1490
    %v1509 = vmul.f32 %v1508, 0.6931472
    %v1510 = vlog2.pop %v1491
    %v1511 = vmul.f32 %v1510, 0.6931472
    %v1512 = vlog2.pop %v1492
    %v1513 = vmul.f32 %v1512, 0.6931472
    %v1514 = vlog2.pop %v1493
    %v1515 = vmul.f32 %v1514, 0.6931472
    %v1516 = vlog2.pop %v1494
    %v1517 = vmul.f32 %v1516, 0.6931472
    %v1518 = vlog2.pop %v1495
    %v1519 = vmul.f32 %v1518, 0.6931472
    %v1520 = vlog2.pop %v1496
    %v1521 = vmul.f32 %v1520, 0.6931472
    %v1522 = vlog2.pop %v1497
    %v1523 = vmul.f32 %v1522, 0.6931472
    %v1524 = vlog2.pop %v1498
    %v1525 = vmul.f32 %v1524, 0.6931472
    %v1526 = vlog2.pop %v1499
    %v1527 = vmul.f32 %v1526, 0.6931472
    %v1528 = vlog2.pop %v1500
    %v1529 = vmul.f32 %v1528, 0.6931472
    %v1530 = vlog2.pop %v1501
    %v1531 = vmul.f32 %v1530, 0.6931472
    %v1532 = vlog2.pop %v1502
    %v1533 = vmul.f32 %v1532, 0.6931472
    %v1534 = vlog2.pop %v1503
    %v1535 = vmul.f32 %v1534, 0.6931472
    %vm1536 = vweird.f32 %v1505
    %vm1537 = vweird.f32 %v1507
    %vm1538 = vweird.f32 %v1509
    %vm1539 = vweird.f32 %v1511
    %vm1540 = vweird.f32 %v1513
    %vm1541 = vweird.f32 %v1515
    %vm1542 = vweird.f32 %v1517
    %vm1543 = vweird.f32 %v1519
    %vm1544 = vweird.f32 %v1521
    %vm1545 = vweird.f32 %v1523
    %vm1546 = vweird.f32 %v1525
    %vm1547 = vweird.f32 %v1527
    %vm1548 = vweird.f32 %v1529
    %vm1549 = vweird.f32 %v1531
    %vm1550 = vweird.f32 %v1533
    %vm1551 = vweird.f32 %v1535
    %vm1552 = vmxor %vm1536, 1
    %vm1553 = vmxor %vm1537, 1
    %vm1554 = vmxor %vm1538, 1
    %vm1555 = vmxor %vm1539, 1
    %vm1556 = vmxor %vm1540, 1
    %vm1557 = vmxor %vm1541, 1
    %vm1558 = vmxor %vm1542, 1
    %vm1559 = vmxor %vm1543, 1
    %vm1560 = vmxor %vm1544, 1
    %vm1561 = vmxor %vm1545, 1
    %vm1562 = vmxor %vm1546, 1
    %vm1563 = vmxor %vm1547, 1
    %vm1564 = vmxor %vm1548, 1
    %vm1565 = vmxor %vm1549, 1
    %vm1566 = vmxor %vm1550, 1
    %vm1567 = vmxor %vm1551, 1
    %v1568 = vsel %vm1552, %v1505, 0.0
    %v1569 = vsel %vm1553, %v1507, 0.0
    %v1570 = vsel %vm1554, %v1509, 0.0
    %v1571 = vsel %vm1555, %v1511, 0.0
    %v1572 = vsel %vm1556, %v1513, 0.0
    %v1573 = vsel %vm1557, %v1515, 0.0
    %v1574 = vsel %vm1558, %v1517, 0.0
    %v1575 = vsel %vm1559, %v1519, 0.0
    %v1576 = vsel %vm1560, %v1521, 0.0
    %v1577 = vsel %vm1561, %v1523, 0.0
    %v1578 = vsel %vm1562, %v1525, 0.0
    %v1579 = vsel %vm1563, %v1527, 0.0
    %v1580 = vsel %vm1564, %v1529, 0.0
    %v1581 = vsel %vm1565, %v1531, 0.0
    %v1582 = vsel %vm1566, %v1533, 0.0
    %v1583 = vsel %vm1567, %v1535, 0.0
    %1584 = vst [vmem:[#allocation4] sm:$0xff] %v1568
    %1585 = vst [vmem:[#allocation4 + $0x8] sm:$0xff] %v1569
    %1586 = vst [vmem:[#allocation4 + $0x10] sm:$0xff] %v1570
    %1587 = vst [vmem:[#allocation4 + $0x18] sm:$0xff] %v1571
    %1588 = vst [vmem:[#allocation4 + $0x20] sm:$0xff] %v1572
    %1589 = vst [vmem:[#allocation4 + $0x28] sm:$0xff] %v1573
    %1590 = vst [vmem:[#allocation4 + $0x30] sm:$0xff] %v1574
    %1591 = vst [vmem:[#allocation4 + $0x38] sm:$0xff] %v1575
    %1592 = vst [vmem:[#allocation4 + $0x40] sm:$0xff] %v1576
    %1593 = vst [vmem:[#allocation4 + $0x48] sm:$0xff] %v1577
    %1594 = vst [vmem:[#allocation4 + $0x50] sm:$0xff] %v1578
    %1595 = vst [vmem:[#allocation4 + $0x58] sm:$0xff] %v1579
    %1596 = vst [vmem:[#allocation4 + $0x60] sm:$0xff] %v1580
    %1597 = vst [vmem:[#allocation4 + $0x68] sm:$0xff] %v1581
    %1598 = vst [vmem:[#allocation4 + $0x70] sm:$0xff] %v1582
    %1599 = vst [vmem:[#allocation4 + $0x78] sm:$0xff] %v1583
    %s1600 = smul.u32 0, 512
    %v1601 = vlaneseq
    %v1602 = vand.u32 %v1601, 127
    %v1603 = vadd.s32 %v1602, 128
    %v1604 = vadd.s32 %v1602, 256
    %v1605 = vadd.s32 %v1602, 384
    %v1606 = vstv %s1600
    %v1607 = vadd.s32 %v1606, %v1602
    %v1608 = vadd.s32 %v1606, %v1603
    %v1609 = vadd.s32 %v1606, %v1604
    %v1610 = vadd.s32 %v1606, %v1605
    %vm1611 = vcmp.lt.s32.totalorder %v1607, 512
    %vm1612 = vcmp.lt.s32.totalorder %v1608, 512
    %vm1613 = vcmp.lt.s32.totalorder %v1609, 512
    %vm1614 = vcmp.lt.s32.totalorder %v1610, 512
    %v1615 = vsel %vm1611, %v1568, -inf
    %v1616 = vsel %vm1612, %v1569, -inf
    %v1617 = vsel %vm1613, %v1570, -inf
    %v1618 = vsel %vm1614, %v1571, -inf
    %v1619 = vsel %vm1611, %v1572, -inf
    %v1620 = vsel %vm1612, %v1573, -inf
    %v1621 = vsel %vm1613, %v1574, -inf
    %v1622 = vsel %vm1614, %v1575, -inf
    %v1623 = vsel %vm1611, %v1576, -inf
    %v1624 = vsel %vm1612, %v1577, -inf
    %v1625 = vsel %vm1613, %v1578, -inf
    %v1626 = vsel %vm1614, %v1579, -inf
    %v1627 = vsel %vm1611, %v1580, -inf
    %v1628 = vsel %vm1612, %v1581, -inf
    %v1629 = vsel %vm1613, %v1582, -inf
    %v1630 = vsel %vm1614, %v1583, -inf
    %v1631 = vmax.f32 %v1615, %v1616
    %v1632 = vmax.f32 %v1631, %v1617
    %v1633 = vmax.f32 %v1632, %v1618
    %1634 = vmax.xlane.f32.xlu0 %v1633
    %v1635 = vpop.xlane.xlu0 %1634
    %v1636 = vmax.f32 %v1619, %v1620
    %v1637 = vmax.f32 %v1636, %v1621
    %v1638 = vmax.f32 %v1637, %v1622
    %1639 = vmax.xlane.f32.xlu0 %v1638
    %v1640 = vpop.xlane.xlu0 %1639
    %v1641 = vmax.f32 %v1623, %v1624
    %v1642 = vmax.f32 %v1641, %v1625
    %v1643 = vmax.f32 %v1642, %v1626
    %1644 = vmax.xlane.f32.xlu0 %v1643
    %v1645 = vpop.xlane.xlu0 %1644
    %v1646 = vmax.f32 %v1627, %v1628
    %v1647 = vmax.f32 %v1646, %v1629
    %v1648 = vmax.f32 %v1647, %v1630
    %1649 = vmax.xlane.f32.xlu0 %v1648
    %v1650 = vpop.xlane.xlu0 %1649
    %v1651 = vld [vmem:[%s9] sm:$0xff]
    %v1652 = vld [vmem:[%s9 + $0x8] sm:$0xff]
    %v1653 = vld [vmem:[%s9 + $0x10] sm:$0xff]
    %v1654 = vld [vmem:[%s9 + $0x18] sm:$0xff]
    %s1655 = scalar_select %p37, 1, 0
    %v1656 = vstv %s1655
    %vm1657 = vcmp.eq.s32.totalorder %v1656, 1
    %v1658 = vsel %vm1657, %v1635, %v1651
    %v1659 = vsel %vm1657, %v1640, %v1652
    %v1660 = vsel %vm1657, %v1645, %v1653
    %v1661 = vsel %vm1657, %v1650, %v1654
    %v1662 = vmax.f32 %v1658, %v1635
    %v1663 = vmax.f32 %v1659, %v1640
    %v1664 = vmax.f32 %v1660, %v1645
    %v1665 = vmax.f32 %v1661, %v1650
    %v1666 = vld [vmem:[%s10] sm:$0xff]
    %v1667 = vld [vmem:[%s10 + $0x8] sm:$0xff]
    %v1668 = vld [vmem:[%s10 + $0x10] sm:$0xff]
    %v1669 = vld [vmem:[%s10 + $0x18] sm:$0xff]
    %v1670 = vsub.f32 %v1658, %v1662
    %v1671 = vsub.f32 %v1659, %v1663
    %v1672 = vsub.f32 %v1660, %v1664
    %v1673 = vsub.f32 %v1661, %v1665
    %v1674 = vmul.f32 %v1670, 1.442695
    %v1675 = vpow.pop %v1674
    %v1676 = vmul.f32 %v1671, 1.442695
    %v1677 = vpow.pop %v1676
    %v1678 = vmul.f32 %v1672, 1.442695
    %v1679 = vpow.pop %v1678
    %v1680 = vmul.f32 %v1673, 1.442695
    %v1681 = vpow.pop %v1680
    %v1682 = vmul.f32 %v1666, %v1675
    %v1683 = vmul.f32 %v1667, %v1677
    %v1684 = vmul.f32 %v1668, %v1679
    %v1685 = vmul.f32 %v1669, %v1681
    %v1686 = vsel %vm1657, 0.0, %v1682
    %v1687 = vsel %vm1657, 0.0, %v1683
    %v1688 = vsel %vm1657, 0.0, %v1684
    %v1689 = vsel %vm1657, 0.0, %v1685
    %1691 = vset.pattern.permute.xlu0 0
    %1692 = vperm.xlu0 %1691, %v1662
    %v1693 = vpop.permute.xlu0 %1692
    %1696 = vset.pattern.permute.xlu0 0
    %1697 = vperm.xlu0 %1696, %v1663
    %v1698 = vpop.permute.xlu0 %1697
    %1701 = vset.pattern.permute.xlu0 0
    %1702 = vperm.xlu0 %1701, %v1664
    %v1703 = vpop.permute.xlu0 %1702
    %1706 = vset.pattern.permute.xlu0 0
    %1707 = vperm.xlu0 %1706, %v1665
    %v1708 = vpop.permute.xlu0 %1707
    %v1710 = vsub.f32 %v1615, %v1693
    %v1711 = vsub.f32 %v1616, %v1693
    %v1712 = vsub.f32 %v1617, %v1693
    %v1713 = vsub.f32 %v1618, %v1693
    %v1714 = vsub.f32 %v1619, %v1698
    %v1715 = vsub.f32 %v1620, %v1698
    %v1716 = vsub.f32 %v1621, %v1698
    %v1717 = vsub.f32 %v1622, %v1698
    %v1718 = vsub.f32 %v1623, %v1703
    %v1719 = vsub.f32 %v1624, %v1703
    %v1720 = vsub.f32 %v1625, %v1703
    %v1721 = vsub.f32 %v1626, %v1703
    %v1722 = vsub.f32 %v1627, %v1708
    %v1723 = vsub.f32 %v1628, %v1708
    %v1724 = vsub.f32 %v1629, %v1708
    %v1725 = vsub.f32 %v1630, %v1708
    %v1726 = vmul.f32 %v1710, 1.442695
    %v1727 = vpow.pop %v1726
    %v1728 = vmul.f32 %v1711, 1.442695
    %v1729 = vpow.pop %v1728
    %v1730 = vmul.f32 %v1712, 1.442695
    %v1731 = vpow.pop %v1730
    %v1732 = vmul.f32 %v1713, 1.442695
    %v1733 = vpow.pop %v1732
    %v1734 = vmul.f32 %v1714, 1.442695
    %v1735 = vpow.pop %v1734
    %v1736 = vmul.f32 %v1715, 1.442695
    %v1737 = vpow.pop %v1736
    %v1738 = vmul.f32 %v1716, 1.442695
    %v1739 = vpow.pop %v1738
    %v1740 = vmul.f32 %v1717, 1.442695
    %v1741 = vpow.pop %v1740
    %v1742 = vmul.f32 %v1718, 1.442695
    %v1743 = vpow.pop %v1742
    %v1744 = vmul.f32 %v1719, 1.442695
    %v1745 = vpow.pop %v1744
    %v1746 = vmul.f32 %v1720, 1.442695
    %v1747 = vpow.pop %v1746
    %v1748 = vmul.f32 %v1721, 1.442695
    %v1749 = vpow.pop %v1748
    %v1750 = vmul.f32 %v1722, 1.442695
    %v1751 = vpow.pop %v1750
    %v1752 = vmul.f32 %v1723, 1.442695
    %v1753 = vpow.pop %v1752
    %v1754 = vmul.f32 %v1724, 1.442695
    %v1755 = vpow.pop %v1754
    %v1756 = vmul.f32 %v1725, 1.442695
    %v1757 = vpow.pop %v1756
    %v1758 = vadd.f32 %v1727, %v1729
    %v1759 = vadd.f32 %v1758, %v1731
    %v1760 = vadd.f32 %v1759, %v1733
    %1761 = vadd.xlane.f32.xlu0 %v1760
    %v1762 = vpop.xlane.xlu0 %1761
    %v1763 = vadd.f32 %v1735, %v1737
    %v1764 = vadd.f32 %v1763, %v1739
    %v1765 = vadd.f32 %v1764, %v1741
    %1766 = vadd.xlane.f32.xlu0 %v1765
    %v1767 = vpop.xlane.xlu0 %1766
    %v1768 = vadd.f32 %v1743, %v1745
    %v1769 = vadd.f32 %v1768, %v1747
    %v1770 = vadd.f32 %v1769, %v1749
    %1771 = vadd.xlane.f32.xlu0 %v1770
    %v1772 = vpop.xlane.xlu0 %1771
    %v1773 = vadd.f32 %v1751, %v1753
    %v1774 = vadd.f32 %v1773, %v1755
    %v1775 = vadd.f32 %v1774, %v1757
    %1776 = vadd.xlane.f32.xlu0 %v1775
    %v1777 = vpop.xlane.xlu0 %1776
    %v1778 = vadd.f32 %v1686, %v1762
    %v1779 = vadd.f32 %v1687, %v1767
    %v1780 = vadd.f32 %v1688, %v1772
    %v1781 = vadd.f32 %v1689, %v1777
    %vm1782 = vcmask 7168
    %1783 = vst.msk [vmem:[%s10] sm:$0xff] %vm1782, %v1778
    %1784 = vst.msk [vmem:[%s10 + $0x8] sm:$0xff] %vm1782, %v1779
    %1785 = vst.msk [vmem:[%s10 + $0x10] sm:$0xff] %vm1782, %v1780
    %1786 = vst.msk [vmem:[%s10 + $0x18] sm:$0xff] %vm1782, %v1781
    %1787 = vst.msk [vmem:[%s9] sm:$0xff] %vm1782, %v1662
    %1788 = vst.msk [vmem:[%s9 + $0x8] sm:$0xff] %vm1782, %v1663
    %1789 = vst.msk [vmem:[%s9 + $0x10] sm:$0xff] %vm1782, %v1664
    %1790 = vst.msk [vmem:[%s9 + $0x18] sm:$0xff] %vm1782, %v1665
    %v1791 = vcvt.s32.f32 %v1607
    %v1792 = vcvt.s32.f32 %v1608
    %v1793 = vcvt.s32.f32 %v1609
    %v1794 = vcvt.s32.f32 %v1610
    %vm1795 = vcmp.ge.f32.partialorder %v1615, %v1635
    %vm1796 = vcmp.ge.f32.partialorder %v1616, %v1635
    %vm1797 = vcmp.ge.f32.partialorder %v1617, %v1635
    %vm1798 = vcmp.ge.f32.partialorder %v1618, %v1635
    %vm1799 = vcmp.ge.f32.partialorder %v1619, %v1640
    %vm1800 = vcmp.ge.f32.partialorder %v1620, %v1640
    %vm1801 = vcmp.ge.f32.partialorder %v1621, %v1640
    %vm1802 = vcmp.ge.f32.partialorder %v1622, %v1640
    %vm1803 = vcmp.ge.f32.partialorder %v1623, %v1645
    %vm1804 = vcmp.ge.f32.partialorder %v1624, %v1645
    %vm1805 = vcmp.ge.f32.partialorder %v1625, %v1645
    %vm1806 = vcmp.ge.f32.partialorder %v1626, %v1645
    %vm1807 = vcmp.ge.f32.partialorder %v1627, %v1650
    %vm1808 = vcmp.ge.f32.partialorder %v1628, %v1650
    %vm1809 = vcmp.ge.f32.partialorder %v1629, %v1650
    %vm1810 = vcmp.ge.f32.partialorder %v1630, %v1650
    %v1811 = vsel %vm1795, %v1791, 3e+38
    %v1812 = vsel %vm1796, %v1792, 3e+38
    %v1813 = vsel %vm1797, %v1793, 3e+38
    %v1814 = vsel %vm1798, %v1794, 3e+38
    %v1815 = vsel %vm1799, %v1791, 3e+38
    %v1816 = vsel %vm1800, %v1792, 3e+38
    %v1817 = vsel %vm1801, %v1793, 3e+38
    %v1818 = vsel %vm1802, %v1794, 3e+38
    %v1819 = vsel %vm1803, %v1791, 3e+38
    %v1820 = vsel %vm1804, %v1792, 3e+38
    %v1821 = vsel %vm1805, %v1793, 3e+38
    %v1822 = vsel %vm1806, %v1794, 3e+38
    %v1823 = vsel %vm1807, %v1791, 3e+38
    %v1824 = vsel %vm1808, %v1792, 3e+38
    %v1825 = vsel %vm1809, %v1793, 3e+38
    %v1826 = vsel %vm1810, %v1794, 3e+38
    %v1827 = vmin.f32 %v1811, %v1812
    %v1828 = vmin.f32 %v1827, %v1813
    %v1829 = vmin.f32 %v1828, %v1814
    %1830 = vmin.xlane.f32.xlu0 %v1829
    %v1831 = vpop.xlane.xlu0 %1830
    %v1832 = vmin.f32 %v1815, %v1816
    %v1833 = vmin.f32 %v1832, %v1817
    %v1834 = vmin.f32 %v1833, %v1818
    %1835 = vmin.xlane.f32.xlu0 %v1834
    %v1836 = vpop.xlane.xlu0 %1835
    %v1837 = vmin.f32 %v1819, %v1820
    %v1838 = vmin.f32 %v1837, %v1821
    %v1839 = vmin.f32 %v1838, %v1822
    %1840 = vmin.xlane.f32.xlu0 %v1839
    %v1841 = vpop.xlane.xlu0 %1840
    %v1842 = vmin.f32 %v1823, %v1824
    %v1843 = vmin.f32 %v1842, %v1825
    %v1844 = vmin.f32 %v1843, %v1826
    %1845 = vmin.xlane.f32.xlu0 %v1844
    %v1846 = vpop.xlane.xlu0 %1845
    %v1847 = vld [vmem:[#allocation6] sm:$0xff]
    %v1848 = vld [vmem:[#allocation6 + $0x8] sm:$0xff]
    %v1849 = vld [vmem:[#allocation6 + $0x10] sm:$0xff]
    %v1850 = vld [vmem:[#allocation6 + $0x18] sm:$0xff]
    %v1851 = vsel %vm1657, -inf, %v1847
    %v1852 = vsel %vm1657, -inf, %v1848
    %v1853 = vsel %vm1657, -inf, %v1849
    %v1854 = vsel %vm1657, -inf, %v1850
    %v1855 = vld [vmem:[%s12] sm:$0xff]
    %v1856 = vld [vmem:[%s12 + $0x8] sm:$0xff]
    %v1857 = vld [vmem:[%s12 + $0x10] sm:$0xff]
    %v1858 = vld [vmem:[%s12 + $0x18] sm:$0xff]
    %v1859 = vsel %vm1657, 0.0, %v1855
    %v1860 = vsel %vm1657, 0.0, %v1856
    %v1861 = vsel %vm1657, 0.0, %v1857
    %v1862 = vsel %vm1657, 0.0, %v1858
    %vm1863 = vcmp.gt.f32.partialorder %v1635, %v1851
    %vm1864 = vcmp.gt.f32.partialorder %v1640, %v1852
    %vm1865 = vcmp.gt.f32.partialorder %v1645, %v1853
    %vm1866 = vcmp.gt.f32.partialorder %v1650, %v1854
    %v1867 = vsel %vm1863, %v1635, %v1851
    %v1868 = vsel %vm1864, %v1640, %v1852
    %v1869 = vsel %vm1865, %v1645, %v1853
    %v1870 = vsel %vm1866, %v1650, %v1854
    %1871 = vst.msk [vmem:[#allocation6] sm:$0xff] %vm1782, %v1867
    %1872 = vst.msk [vmem:[#allocation6 + $0x8] sm:$0xff] %vm1782, %v1868
    %1873 = vst.msk [vmem:[#allocation6 + $0x10] sm:$0xff] %vm1782, %v1869
    %1874 = vst.msk [vmem:[#allocation6 + $0x18] sm:$0xff] %vm1782, %v1870
    %v1875 = vsel %vm1863, %v1831, %v1859
    %v1876 = vsel %vm1864, %v1836, %v1860
    %v1877 = vsel %vm1865, %v1841, %v1861
    %v1878 = vsel %vm1866, %v1846, %v1862
    %1879 = vst.msk [vmem:[%s12] sm:$0xff] %vm1782, %v1875
    %1880 = vst.msk [vmem:[%s12 + $0x8] sm:$0xff] %vm1782, %v1876
    %1881 = vst.msk [vmem:[%s12 + $0x10] sm:$0xff] %vm1782, %v1877
    %1882 = vst.msk [vmem:[%s12 + $0x18] sm:$0xff] %vm1782, %v1878
    %v1883 = vld [vmem:[%s7] sm:$0xff]
    %v1884 = vld [vmem:[%s7 + $0x8] sm:$0xff]
    %v1885 = vld [vmem:[%s7 + $0x10] sm:$0xff]
    %v1886 = vld [vmem:[%s7 + $0x18] sm:$0xff]
    %1887 = vset.pattern.permute.xlu0 0
    %1888 = vperm.xlu0 %1887, %v1883
    %v1889 = vpop.permute.xlu0 %1888
    %1890 = vset.pattern.permute.xlu0 0
    %1891 = vperm.xlu0 %1890, %v1884
    %v1892 = vpop.permute.xlu0 %1891
    %1893 = vset.pattern.permute.xlu0 0
    %1894 = vperm.xlu0 %1893, %v1885
    %v1895 = vpop.permute.xlu0 %1894
    %1896 = vset.pattern.permute.xlu0 0
    %1897 = vperm.xlu0 %1896, %v1886
    %v1898 = vpop.permute.xlu0 %1897
    %vm1899 = vcmp.eq.s32.totalorder %v1607, %v1889
    %vm1900 = vcmp.eq.s32.totalorder %v1608, %v1889
    %vm1901 = vcmp.eq.s32.totalorder %v1609, %v1889
    %vm1902 = vcmp.eq.s32.totalorder %v1610, %v1889
    %vm1903 = vcmp.eq.s32.totalorder %v1607, %v1892
    %vm1904 = vcmp.eq.s32.totalorder %v1608, %v1892
    %vm1905 = vcmp.eq.s32.totalorder %v1609, %v1892
    %vm1906 = vcmp.eq.s32.totalorder %v1610, %v1892
    %vm1907 = vcmp.eq.s32.totalorder %v1607, %v1895
    %vm1908 = vcmp.eq.s32.totalorder %v1608, %v1895
    %vm1909 = vcmp.eq.s32.totalorder %v1609, %v1895
    %vm1910 = vcmp.eq.s32.totalorder %v1610, %v1895
    %vm1911 = vcmp.eq.s32.totalorder %v1607, %v1898
    %vm1912 = vcmp.eq.s32.totalorder %v1608, %v1898
    %vm1913 = vcmp.eq.s32.totalorder %v1609, %v1898
    %vm1914 = vcmp.eq.s32.totalorder %v1610, %v1898
    %v1915 = vsel %vm1899, %v1568, 0.0
    %v1916 = vsel %vm1900, %v1569, 0.0
    %v1917 = vsel %vm1901, %v1570, 0.0
    %v1918 = vsel %vm1902, %v1571, 0.0
    %v1919 = vsel %vm1903, %v1572, 0.0
    %v1920 = vsel %vm1904, %v1573, 0.0
    %v1921 = vsel %vm1905, %v1574, 0.0
    %v1922 = vsel %vm1906, %v1575, 0.0
    %v1923 = vsel %vm1907, %v1576, 0.0
    %v1924 = vsel %vm1908, %v1577, 0.0
    %v1925 = vsel %vm1909, %v1578, 0.0
    %v1926 = vsel %vm1910, %v1579, 0.0
    %v1927 = vsel %vm1911, %v1580, 0.0
    %v1928 = vsel %vm1912, %v1581, 0.0
    %v1929 = vsel %vm1913, %v1582, 0.0
    %v1930 = vsel %vm1914, %v1583, 0.0
    %v1931 = vadd.f32 %v1915, %v1916
    %v1932 = vadd.f32 %v1931, %v1917
    %v1933 = vadd.f32 %v1932, %v1918
    %1934 = vadd.xlane.f32.xlu0 %v1933
    %v1935 = vpop.xlane.xlu0 %1934
    %v1936 = vadd.f32 %v1919, %v1920
    %v1937 = vadd.f32 %v1936, %v1921
    %v1938 = vadd.f32 %v1937, %v1922
    %1939 = vadd.xlane.f32.xlu0 %v1938
    %v1940 = vpop.xlane.xlu0 %1939
    %v1941 = vadd.f32 %v1923, %v1924
    %v1942 = vadd.f32 %v1941, %v1925
    %v1943 = vadd.f32 %v1942, %v1926
    %1944 = vadd.xlane.f32.xlu0 %v1943
    %v1945 = vpop.xlane.xlu0 %1944
    %v1946 = vadd.f32 %v1927, %v1928
    %v1947 = vadd.f32 %v1946, %v1929
    %v1948 = vadd.f32 %v1947, %v1930
    %1949 = vadd.xlane.f32.xlu0 %v1948
    %v1950 = vpop.xlane.xlu0 %1949
    %v1951 = vld [vmem:[%s13] sm:$0xff]
    %v1952 = vld [vmem:[%s13 + $0x8] sm:$0xff]
    %v1953 = vld [vmem:[%s13 + $0x10] sm:$0xff]
    %v1954 = vld [vmem:[%s13 + $0x18] sm:$0xff]
    %v1955 = vadd.f32 %v1951, %v1935
    %v1956 = vadd.f32 %v1952, %v1940
    %v1957 = vadd.f32 %v1953, %v1945
    %v1958 = vadd.f32 %v1954, %v1950
    %v1959 = vsel %vm1657, %v1935, %v1955
    %v1960 = vsel %vm1657, %v1940, %v1956
    %v1961 = vsel %vm1657, %v1945, %v1957
    %v1962 = vsel %vm1657, %v1950, %v1958
    %1963 = vst.msk [vmem:[%s13] sm:$0xff] %vm1782, %v1959
    %1964 = vst.msk [vmem:[%s13 + $0x8] sm:$0xff] %vm1782, %v1960
    %1965 = vst.msk [vmem:[%s13 + $0x10] sm:$0xff] %vm1782, %v1961
    %1966 = vst.msk [vmem:[%s13 + $0x18] sm:$0xff] %vm1782, %v1962
    // Predicated region
    $region38: #{gpt_forward.11} parent=1 // pred_check
      _
    $region39: #{gpt_forward.11} parent=1 // pred_check_branch
      %1968 = sbr.rel (0) target = $region41
    $region40: #{gpt_forward.11} parent=1 // pred_region
      %1970 = vsyncadd [#allocation5], 0
      %s1971 = sshll.u32 [#allocation4], 4
      %s1972 = int_to_ptr.vmem [resolvable:$true] %s1971
      %s1973 = sshll.u32 %s8, 4
      %s1974 = int_to_ptr.hbm [resolvable:$true] %s1973
      %1979 = dma.vmem_to_hbm [thread:$0]  %s1972, 2048, %s1974, [#allocation5], 512, 512, 32
    $region41: #{gpt_forward.11} parent=1 // pred_fallthru
      _
    // Predicated region
    $region42: #{gpt_forward.11} parent=1 // pred_check
      _
    $region43: #{gpt_forward.11} parent=1 // pred_check_branch
      %1981 = sbr.rel (0) target = $region45
    $region44: #{gpt_forward.11} parent=1 // pred_region
      _
    $region45: #{gpt_forward.11} parent=1 // pred_fallthru
      _
    // Predicated region
    $region46: #{gpt_forward.11} parent=1 // pred_check
      _
    $region47: #{gpt_forward.11} parent=1 // pred_check_branch
      %1983 = sbr.rel (0) target = $region49
    $region48: #{gpt_forward.11} parent=1 // pred_region
      _
    $region49: #{gpt_forward.11} parent=1 // pred_fallthru
      _
    // Predicated region
    $region50: #{gpt_forward.11} parent=1 // pred_check
      _
    $region51: #{gpt_forward.11} parent=1 // pred_check_branch
      %1985 = sbr.rel (0) target = $region53
    $region52: #{gpt_forward.11} parent=1 // pred_region
      %1987 = vsyncadd [#allocation7], 0
      %s1988 = sshll.u32 [#allocation6], 4
      %s1989 = int_to_ptr.vmem [resolvable:$true] %s1988
      %s1990 = sshll.u32 %s11, 4
      %s1991 = int_to_ptr.hbm [resolvable:$true] %s1990
      %1996 = dma.vmem_to_hbm [thread:$0]  %s1989, 512, %s1991, [#allocation7], 128, 128, 8
    $region53: #{gpt_forward.11} parent=1 // pred_fallthru
      _
    // Predicated region
    $region54: #{gpt_forward.11} parent=1 // pred_check
      _
    $region55: #{gpt_forward.11} parent=1 // pred_check_branch
      %1998 = sbr.rel (0) target = $region57
    $region56: #{gpt_forward.11} parent=1 // pred_region
      _
    $region57: #{gpt_forward.11} parent=1 // pred_fallthru
      _
    // Predicated region
    $region58: #{gpt_forward.11} parent=1 // pred_check
      _
    $region59: #{gpt_forward.11} parent=1 // pred_check_branch
      %2000 = sbr.rel (0) target = $region61
    $region60: #{gpt_forward.11} parent=1 // pred_region
      _
    $region61: #{gpt_forward.11} parent=1 // pred_fallthru
      _
    // Predicated region
    $region62: #{gpt_forward.11} parent=1 // pred_check
      _
    $region63: #{gpt_forward.11} parent=1 // pred_check_branch
      %2002 = sbr.rel (0) target = $region65
    $region64: #{gpt_forward.11} parent=1 // pred_region
      %2004 = dma.done [#allocation5], 2048
    $region65: #{gpt_forward.11} parent=1 // pred_fallthru
      _
    // Predicated region
    $region66: #{gpt_forward.11} parent=1 // pred_check
      _
    $region67: #{gpt_forward.11} parent=1 // pred_check_branch
      %2006 = sbr.rel (0) target = $region69
    $region68: #{gpt_forward.11} parent=1 // pred_region
      _
    $region69: #{gpt_forward.11} parent=1 // pred_fallthru
      _
    // Predicated region
    $region70: #{gpt_forward.11} parent=1 // pred_check
      _
    $region71: #{gpt_forward.11} parent=1 // pred_check_branch
      %2008 = sbr.rel (0) target = $region73
    $region72: #{gpt_forward.11} parent=1 // pred_region
      _
    $region73: #{gpt_forward.11} parent=1 // pred_fallthru
      _
    // Predicated region
    $region74: #{gpt_forward.11} parent=1 // pred_check
      _
    $region75: #{gpt_forward.11} parent=1 // pred_check_branch
      %2010 = sbr.rel (0) target = $region77
    $region76: #{gpt_forward.11} parent=1 // pred_region
      %2012 = dma.done [#allocation7], 512
    $region77: #{gpt_forward.11} parent=1 // pred_fallthru
      _
    // Predicated region
    $region78: #{gpt_forward.11} parent=1 // pred_check
      _
    $region79: #{gpt_forward.11} parent=1 // pred_check_branch
      %2014 = sbr.rel (0) target = $region81
    $region80: #{gpt_forward.11} parent=1 // pred_region
      _
    $region81: #{gpt_forward.11} parent=1 // pred_fallthru
      _
    // Predicated region
    $region82: #{gpt_forward.11} parent=1 // pred_check
      _
    $region83: #{gpt_forward.11} parent=1 // pred_check_branch
      %2016 = sbr.rel (0) target = $region85
    $region84: #{gpt_forward.11} parent=1 // pred_region
      _
    $region85: #{gpt_forward.11} parent=1 // pred_fallthru
      _
    %2017 = vsyncpa [#allocation5], 1
    %2018 = vsyncpa [#allocation7], 1

</llo_original>
